<compile_context>
chip_gen: v5e
topology: v5e:2x2
jax: 0.10.0
libtpu: 0.0.40
codegen_flags: <defaults>
</compile_context>

<pallas_src>
import jax
import jax.numpy as jnp
from jax.experimental import pallas as pl
from jax.experimental.pallas import tpu as pltpu


def _fused_mlp_kernel(x_ref, w1_ref, b1_ref, w2_ref, b2_ref, w3_ref, b3_ref,
                      w4_ref, b4_ref, o_ref):
    # Hidden layers: tiny matmuls on VMEM-resident weights; recomputed per tile
    # (cost is negligible vs. the W4-tile DMA and keeps grid steps independent).
    h = jnp.dot(x_ref[...], w1_ref[...], preferred_element_type=jnp.float32)
    h = jnp.maximum(h + b1_ref[...], 0.0)
    h = jnp.dot(h, w2_ref[...], preferred_element_type=jnp.float32)
    h = jnp.maximum(h + b2_ref[...], 0.0)
    h = jnp.dot(h, w3_ref[...], preferred_element_type=jnp.float32)
    h = jnp.maximum(h + b3_ref[...], 0.0)
    # Output layer: one (1024, tn) weight tile per grid step.
    out = jnp.dot(h.astype(w4_ref.dtype), w4_ref[...],
                  preferred_element_type=jnp.float32)
    out = out + b4_ref[...]
    o_ref[...] = out.astype(o_ref.dtype)


def init_params(key, num_vertices=1000, dtype=jnp.float32):
    """torch.nn.Linear-style params: list of (W[in,out], b[out])."""
    dims = [100, 256, 512, 1024, num_vertices * 3]
    params = []
    for i in range(4):
        key, kw, kb = jax.random.split(key, 3)
        bound = 1.0 / (dims[i] ** 0.5)  # matches torch.nn.Linear default init
        w = jax.random.uniform(kw, (dims[i], dims[i + 1]), dtype, -bound, bound)
        b = jax.random.uniform(kb, (dims[i + 1],), dtype, -bound, bound)
        params.append((w, b))
    return params


def prepare_params(params, tn=512):
    """One-time padding/reshaping so the forward never pads weights per call."""
    (w1, b1), (w2, b2), (w3, b3), (w4, b4) = params
    n = w4.shape[1]
    n_pad = ((n + tn - 1) // tn) * tn
    if n_pad != n:
        w4 = jnp.pad(w4, ((0, 0), (0, n_pad - n)))
        b4 = jnp.pad(b4, ((0, n_pad - n),))
    return dict(
        w1=w1, b1=b1.reshape(1, -1),
        w2=w2, b2=b2.reshape(1, -1),
        w3=w3, b3=b3.reshape(1, -1),
        w4=w4, b4=b4.reshape(1, -1),
        n=n, n_pad=n_pad, tn=tn,
    )


def simple3d_generator_forward(x, prep, num_vertices=1000):
    B, K = x.shape
    tn, n, n_pad = prep["tn"], prep["n"], prep["n_pad"]
    w1, b1 = prep["w1"], prep["b1"]
    w2, b2 = prep["w2"], prep["b2"]
    w3, b3 = prep["w3"], prep["b3"]
    w4, b4 = prep["w4"], prep["b4"]
    d1, d2, d3 = w1.shape[1], w2.shape[1], w3.shape[1]

    out = pl.pallas_call(
        _fused_mlp_kernel,
        out_shape=jax.ShapeDtypeStruct((B, n_pad), x.dtype),
        grid_spec=pltpu.PrefetchScalarGridSpec(
            num_scalar_prefetch=0,
            grid=(n_pad // tn,),
            in_specs=[
                pl.BlockSpec((B, K), lambda j: (0, 0)),     # x   (resident)
                pl.BlockSpec((K, d1), lambda j: (0, 0)),    # W1  (resident)
                pl.BlockSpec((1, d1), lambda j: (0, 0)),    # b1
                pl.BlockSpec((d1, d2), lambda j: (0, 0)),   # W2  (resident)
                pl.BlockSpec((1, d2), lambda j: (0, 0)),    # b2
                pl.BlockSpec((d2, d3), lambda j: (0, 0)),   # W3  (resident)
                pl.BlockSpec((1, d3), lambda j: (0, 0)),    # b3
                pl.BlockSpec((d3, tn), lambda j: (0, j)),   # W4 column tile
                pl.BlockSpec((1, tn), lambda j: (0, j)),    # b4 tile
            ],
            out_specs=pl.BlockSpec((B, tn), lambda j: (0, j)),
        ),
        compiler_params=pltpu.CompilerParams(
            dimension_semantics=("parallel",),
            vmem_limit_bytes=32 << 20,
        ),
        cost_estimate=pl.CostEstimate(
            flops=2 * B * (K * d1 + d1 * d2 + d2 * d3 + d3 * n_pad),
            transcendentals=0,
            bytes_accessed=4 * (K * d1 + d1 * d2 + d2 * d3 + d3 * n_pad
                                + B * (K + n_pad)),
        ),
    )(x, w1, b1, w2, b2, w3, b3, w4, b4)

    if n_pad != n:
        out = out[:, :n]
    return out.reshape(-1, num_vertices, 3)


def _reference_forward(x, params, num_vertices=1000):
    h = x
    for i, (w, b) in enumerate(params):
        h = h @ w + b
        if i < 3:
            h = jnp.maximum(h, 0.0)
    return h.reshape(-1, num_vertices, 3)


if __name__ == "__main__":
    num_vertices = 1000
    batch = 2

    key = jax.random.PRNGKey(0)
    key, kx = jax.random.split(key)
    x = jax.random.normal(kx, (batch, 100), dtype=jnp.float32)
    params = init_params(key, num_vertices=num_vertices)
    prep = prepare_params(params, tn=512)   # one-time pad of W4/b4 to 3072

    out = simple3d_generator_forward(x, prep, num_vertices=num_vertices)
    out = jax.block_until_ready(out)

    ref = _reference_forward(x, params, num_vertices=num_vertices)
    assert out.shape == (batch, num_vertices, 3), out.shape
    assert jnp.allclose(out, ref, atol=1e-4, rtol=1e-4), "mismatch vs reference"

    print("KERNEL_OK")
</pallas_src>

<mosaic_0001>
module attributes {stable_mosaic.version = 11 : i64} {
  func.func @_fused_mlp_kernel(%arg0: i32, %arg1: memref<2x100xf32, #tpu.memory_space<vmem>>, %arg2: memref<100x256xf32, #tpu.memory_space<vmem>>, %arg3: memref<1x256xf32, #tpu.memory_space<vmem>>, %arg4: memref<256x512xf32, #tpu.memory_space<vmem>>, %arg5: memref<1x512xf32, #tpu.memory_space<vmem>>, %arg6: memref<512x1024xf32, #tpu.memory_space<vmem>>, %arg7: memref<1x1024xf32, #tpu.memory_space<vmem>>, %arg8: memref<1024x512xf32, #tpu.memory_space<vmem>>, %arg9: memref<1x512xf32, #tpu.memory_space<vmem>>, %arg10: memref<2x512xf32, #tpu.memory_space<vmem>>) attributes {dimension_semantics = [#tpu.dimension_semantics<parallel>], iteration_bounds = array<i64: 6>, scalar_prefetch = 0 : i64, scratch_operands = 0 : i64, tpu.core_type = #tpu.core_type<tc>, window_params = [{pipeline_mode = #tpu.pipeline_mode<synchronous>, transform_indices = @transform_0, window_bounds = array<i64: 2, 100>}, {pipeline_mode = #tpu.pipeline_mode<synchronous>, transform_indices = @transform_1, window_bounds = array<i64: 100, 256>}, {pipeline_mode = #tpu.pipeline_mode<synchronous>, transform_indices = @transform_2, window_bounds = array<i64: 1, 256>}, {pipeline_mode = #tpu.pipeline_mode<synchronous>, transform_indices = @transform_3, window_bounds = array<i64: 256, 512>}, {pipeline_mode = #tpu.pipeline_mode<synchronous>, transform_indices = @transform_4, window_bounds = array<i64: 1, 512>}, {pipeline_mode = #tpu.pipeline_mode<synchronous>, transform_indices = @transform_5, window_bounds = array<i64: 512, 1024>}, {pipeline_mode = #tpu.pipeline_mode<synchronous>, transform_indices = @transform_6, window_bounds = array<i64: 1, 1024>}, {transform_indices = @transform_7, window_bounds = array<i64: 1024, 512>}, {transform_indices = @transform_8, window_bounds = array<i64: 1, 512>}, {transform_indices = @transform_9, window_bounds = array<i64: 2, 512>}]} {
    %c0 = arith.constant 0 : index
    %c0_0 = arith.constant 0 : index
    %0 = vector.load %arg1[%c0, %c0_0] : memref<2x100xf32, #tpu.memory_space<vmem>>, vector<2x100xf32>
    %c0_1 = arith.constant 0 : index
    %c0_2 = arith.constant 0 : index
    %1 = vector.load %arg2[%c0_1, %c0_2] : memref<100x256xf32, #tpu.memory_space<vmem>>, vector<100x256xf32>
    %cst = arith.constant dense<0.000000e+00> : vector<2x256xf32>
    %2 = tpu.matmul %0, %1, %cst {dimension_numbers = #tpu.dot_dimension_numbers<[1], [0], [0], [1], [0, 0, 1, 1], [], []>} : vector<2x100xf32>, vector<100x256xf32>, vector<2x256xf32> -> vector<2x256xf32>
    %c0_3 = arith.constant 0 : index
    %c0_4 = arith.constant 0 : index
    %3 = vector.load %arg3[%c0_3, %c0_4] : memref<1x256xf32, #tpu.memory_space<vmem>>, vector<1x256xf32>
    %4 = vector.broadcast %3 : vector<1x256xf32> to vector<2x256xf32>
    %5 = arith.addf %2, %4 : vector<2x256xf32>
    %cst_5 = arith.constant 0.000000e+00 : f32
    %6 = vector.broadcast %cst_5 : f32 to vector<2x256xf32>
    %7 = arith.maximumf %5, %6 : vector<2x256xf32>
    %c0_6 = arith.constant 0 : index
    %c0_7 = arith.constant 0 : index
    %8 = vector.load %arg4[%c0_6, %c0_7] : memref<256x512xf32, #tpu.memory_space<vmem>>, vector<256x512xf32>
    %cst_8 = arith.constant dense<0.000000e+00> : vector<2x512xf32>
    %9 = tpu.matmul %7, %8, %cst_8 {dimension_numbers = #tpu.dot_dimension_numbers<[1], [0], [0], [1], [0, 0, 1, 1], [], []>} : vector<2x256xf32>, vector<256x512xf32>, vector<2x512xf32> -> vector<2x512xf32>
    %c0_9 = arith.constant 0 : index
    %c0_10 = arith.constant 0 : index
    %10 = vector.load %arg5[%c0_9, %c0_10] : memref<1x512xf32, #tpu.memory_space<vmem>>, vector<1x512xf32>
    %11 = vector.broadcast %10 : vector<1x512xf32> to vector<2x512xf32>
    %12 = arith.addf %9, %11 : vector<2x512xf32>
    %cst_11 = arith.constant 0.000000e+00 : f32
    %13 = vector.broadcast %cst_11 : f32 to vector<2x512xf32>
    %14 = arith.maximumf %12, %13 : vector<2x512xf32>
    %c0_12 = arith.constant 0 : index
    %c0_13 = arith.constant 0 : index
    %15 = vector.load %arg6[%c0_12, %c0_13] : memref<512x1024xf32, #tpu.memory_space<vmem>>, vector<512x1024xf32>
    %cst_14 = arith.constant dense<0.000000e+00> : vector<2x1024xf32>
    %16 = tpu.matmul %14, %15, %cst_14 {dimension_numbers = #tpu.dot_dimension_numbers<[1], [0], [0], [1], [0, 0, 1, 1], [], []>} : vector<2x512xf32>, vector<512x1024xf32>, vector<2x1024xf32> -> vector<2x1024xf32>
    %c0_15 = arith.constant 0 : index
    %c0_16 = arith.constant 0 : index
    %17 = vector.load %arg7[%c0_15, %c0_16] : memref<1x1024xf32, #tpu.memory_space<vmem>>, vector<1x1024xf32>
    %18 = vector.broadcast %17 : vector<1x1024xf32> to vector<2x1024xf32>
    %19 = arith.addf %16, %18 : vector<2x1024xf32>
    %cst_17 = arith.constant 0.000000e+00 : f32
    %20 = vector.broadcast %cst_17 : f32 to vector<2x1024xf32>
    %21 = arith.maximumf %19, %20 : vector<2x1024xf32>
    %c0_18 = arith.constant 0 : index
    %c0_19 = arith.constant 0 : index
    %22 = vector.load %arg8[%c0_18, %c0_19] : memref<1024x512xf32, #tpu.memory_space<vmem>>, vector<1024x512xf32>
    %cst_20 = arith.constant dense<0.000000e+00> : vector<2x512xf32>
    %23 = tpu.matmul %21, %22, %cst_20 {dimension_numbers = #tpu.dot_dimension_numbers<[1], [0], [0], [1], [0, 0, 1, 1], [], []>} : vector<2x1024xf32>, vector<1024x512xf32>, vector<2x512xf32> -> vector<2x512xf32>
    %c0_21 = arith.constant 0 : index
    %c0_22 = arith.constant 0 : index
    %24 = vector.load %arg9[%c0_21, %c0_22] : memref<1x512xf32, #tpu.memory_space<vmem>>, vector<1x512xf32>
    %25 = vector.broadcast %24 : vector<1x512xf32> to vector<2x512xf32>
    %26 = arith.addf %23, %25 : vector<2x512xf32>
    %c0_23 = arith.constant 0 : index
    %c0_24 = arith.constant 0 : index
    %27 = vector.load %arg10[%c0_23, %c0_24] : memref<2x512xf32, #tpu.memory_space<vmem>>, vector<2x512xf32>
    tpu.vector_store %arg10[%c0_23, %c0_24], %26 {strides = array<i32>} : memref<2x512xf32, #tpu.memory_space<vmem>>, vector<2x512xf32>,
    return
  }
  func.func @transform_0(%arg0: i32) -> (i32, i32) {
    %c0_i32 = arith.constant 0 : i32
    %c0_i32_0 = arith.constant 0 : i32
    %c0_i32_1 = arith.constant 0 : i32
    return %c0_i32, %c0_i32_0 : i32, i32
  }
  func.func @transform_1(%arg0: i32) -> (i32, i32) {
    %c0_i32 = arith.constant 0 : i32
    %c0_i32_0 = arith.constant 0 : i32
    %c0_i32_1 = arith.constant 0 : i32
    return %c0_i32, %c0_i32_0 : i32, i32
  }
  func.func @transform_2(%arg0: i32) -> (i32, i32) {
    %c0_i32 = arith.constant 0 : i32
    %c0_i32_0 = arith.constant 0 : i32
    %c0_i32_1 = arith.constant 0 : i32
    return %c0_i32, %c0_i32_0 : i32, i32
  }
  func.func @transform_3(%arg0: i32) -> (i32, i32) {
    %c0_i32 = arith.constant 0 : i32
    %c0_i32_0 = arith.constant 0 : i32
    %c0_i32_1 = arith.constant 0 : i32
    return %c0_i32, %c0_i32_0 : i32, i32
  }
  func.func @transform_4(%arg0: i32) -> (i32, i32) {
    %c0_i32 = arith.constant 0 : i32
    %c0_i32_0 = arith.constant 0 : i32
    %c0_i32_1 = arith.constant 0 : i32
    return %c0_i32, %c0_i32_0 : i32, i32
  }
  func.func @transform_5(%arg0: i32) -> (i32, i32) {
    %c0_i32 = arith.constant 0 : i32
    %c0_i32_0 = arith.constant 0 : i32
    %c0_i32_1 = arith.constant 0 : i32
    return %c0_i32, %c0_i32_0 : i32, i32
  }
  func.func @transform_6(%arg0: i32) -> (i32, i32) {
    %c0_i32 = arith.constant 0 : i32
    %c0_i32_0 = arith.constant 0 : i32
    %c0_i32_1 = arith.constant 0 : i32
    return %c0_i32, %c0_i32_0 : i32, i32
  }
  func.func @transform_7(%arg0: i32) -> (i32, i32) {
    %c0_i32 = arith.constant 0 : i32
    %c0_i32_0 = arith.constant 0 : i32
    return %c0_i32, %arg0 : i32, i32
  }
  func.func @transform_8(%arg0: i32) -> (i32, i32) {
    %c0_i32 = arith.constant 0 : i32
    %c0_i32_0 = arith.constant 0 : i32
    return %c0_i32, %arg0 : i32, i32
  }
  func.func @transform_9(%arg0: i32) -> (i32, i32) {
    %c0_i32 = arith.constant 0 : i32
    %c0_i32_0 = arith.constant 0 : i32
    return %c0_i32, %arg0 : i32, i32
  }
}

</mosaic_0001>

<llo_original>
// kernel: tpu_custom_call.1
$region0: #{tpu_custom_call.1}
  #allocation0 [shape = 'u32[]', space=smem, size = 0x4, offset = 0x4, fixed_abs, tag = 'smem constant byte address 0x4 - core index']
  #allocation1 [shape = 'u32[72,128]{1,0:T(1,128)}', space=vmem, size = 0x9000, scoped, tag = 'internal scratch']
  %s0 = inlined_call_operand.hbm [shape: f32[2,100], index: 0, kind: input, shape index: {}]
  %s1 = inlined_call_operand.hbm [shape: f32[100,256], index: 1, kind: input, shape index: {}]
  %s2 = inlined_call_operand.hbm [shape: f32[1,256], index: 2, kind: input, shape index: {}]
  %s3 = inlined_call_operand.hbm [shape: f32[256,512], index: 3, kind: input, shape index: {}]
  %s4 = inlined_call_operand.hbm [shape: f32[1,512], index: 4, kind: input, shape index: {}]
  %s5 = inlined_call_operand.hbm [shape: f32[512,1024], index: 5, kind: input, shape index: {}]
  %s6 = inlined_call_operand.hbm [shape: f32[1,1024], index: 6, kind: input, shape index: {}]
  %s7 = inlined_call_operand.hbm [shape: f32[1024,3072], index: 7, kind: input, shape index: {}]
  %s8 = inlined_call_operand.hbm [shape: f32[1,3072], index: 8, kind: input, shape index: {}]
  %s9 = inlined_call_operand.hbm [shape: f32[2,3072], index: 9, kind: output, shape index: {}]
  %s10 = sld [smem:[#allocation0]]
  $region105: #{tpu_custom_call.1} parent=0
    _
  %s12 = ssub.s32 1, %s10
  %s13 = scalar_select 0, %s12, %s10
  $region1: #{tpu_custom_call.1} parent=0
    #allocation2 [shape = 'u8[1024]{0}', space=vmem, size = 0x400, scoped, tag = 'input window, operand 0, single buffered']
    #allocation3 [shape = 's32[2]{0}', space=sflag, size = 0x8, scoped, tag = 'scoped memory for tpu_custom_call.1']
    #allocation4 [shape = 's32[2]{0}', space=sflag, size = 0x8, scoped, tag = 'scoped memory for tpu_custom_call.1']
    #allocation5 [shape = 'u8[106496]{0}', space=vmem, size = 0x1a000, scoped, tag = 'input window, operand 1, single buffered']
    #allocation6 [shape = 's32[1]{0}', space=sflag, size = 0x4, scoped, tag = 'scoped memory for tpu_custom_call.1']
    #allocation7 [shape = 'u8[1024]{0}', space=vmem, size = 0x400, scoped, tag = 'input window, operand 2, single buffered']
    #allocation8 [shape = 'u8[524288]{0}', space=vmem, size = 0x80000, scoped, tag = 'input window, operand 3, single buffered']
    #allocation9 [shape = 's32[1]{0}', space=sflag, size = 0x4, scoped, tag = 'scoped memory for tpu_custom_call.1']
    #allocation10 [shape = 'u8[2048]{0}', space=vmem, size = 0x800, scoped, tag = 'input window, operand 4, single buffered']
    #allocation11 [shape = 'u8[2097152]{0}', space=vmem, size = 0x200000, scoped, tag = 'input window, operand 5, single buffered']
    #allocation12 [shape = 's32[1]{0}', space=sflag, size = 0x4, scoped, tag = 'scoped memory for tpu_custom_call.1']
    #allocation13 [shape = 'u8[4096]{0}', space=vmem, size = 0x1000, scoped, tag = 'input window, operand 6, single buffered']
    #allocation14 [shape = 'u8[4194304]{0}', space=vmem, size = 0x400000, scoped, tag = 'input window, operand 7']
    #allocation15 [shape = 's32[2]{0}', space=sflag, size = 0x8, scoped, tag = 'scoped memory for tpu_custom_call.1']
    #allocation16 [shape = 'u8[4096]{0}', space=vmem, size = 0x1000, scoped, tag = 'input window, operand 8']
    #allocation17 [shape = 'u8[8192]{0}', space=vmem, size = 0x2000, scoped, tag = 'output window, operand 0']
    %14 = vsyncpa [#allocation3], 0
    %15 = vsyncpa [#allocation6], 0
    %16 = vsyncpa [#allocation9], 0
    %17 = vsyncpa [#allocation12], 0
    %18 = vsyncpa [#allocation15], 0
    %s19 = scalar_lea.sflag [#allocation15], 1
    %20 = vsyncpa %s19, 0
    %21 = vsyncpa [#allocation4], 0
    %s22 = scalar_lea.sflag [#allocation4], 1
    %23 = vsyncpa %s22, 0
    loop: start=0, step=1, limit=8
    $region2: #{tpu_custom_call.1} parent=1 // loop_pre_header
      _
    $region3: #{tpu_custom_call.1} parent=1 // loop_header
      %s25 = sphi 0, %s29
      %p26 = scmp.ge.s32.totalorder %s25, 8
      %s33 = sphi 0, %s33
      %s35 = sphi 0, %s33
      %s36 = sphi 0, %s35
      %s50 = sphi 0, %s36
      %s54 = sphi 0, %s54
      %s56 = sphi 0, %s54
      %s57 = sphi 0, %s56
      %s71 = sphi 0, %s57
      %s75 = sphi 0, %s75
      %s77 = sphi 0, %s75
      %s78 = sphi 0, %s77
      %s92 = sphi 0, %s78
      %s96 = sphi 0, %s96
      %s98 = sphi 0, %s96
      %s99 = sphi 0, %s98
      %s113 = sphi 0, %s99
      %s117 = sphi 0, %s117
      %s119 = sphi 0, %s117
      %s120 = sphi 0, %s119
      %s134 = sphi 0, %s120
      %s138 = sphi 0, %s138
      %s140 = sphi 0, %s138
      %s141 = sphi 0, %s140
      %s155 = sphi 0, %s141
      %s159 = sphi 0, %s159
      %s161 = sphi 0, %s159
      %s162 = sphi 0, %s161
      %s176 = sphi 0, %s162
      %s182 = sphi 0, %s184
      %s185 = sphi 0, %s182
      %s186 = sphi 0, %s185
      %s202 = sphi 0, %s186
      %s208 = sphi 0, %s210
      %s211 = sphi 0, %s208
      %s212 = sphi 0, %s211
      %s228 = sphi 0, %s212
      %s234 = sphi 0, %s236
      %s237 = sphi 0, %s234
      %s238 = sphi 0, %s237
      %s254 = sphi 0, %s238
    $region4: #{tpu_custom_call.1} parent=1 // loop_header_branch
      %28 = sbr.rel (%p26) target = $region8
    $region5: #{tpu_custom_call.1} parent=1 // loop_body
      %s30 = ssub.s32 %s25, 1
      %s31 = ssub.s32 %s25, 2
      %s32 = sadd.s32 %s25, 1
      %s34 = sadd.s32 %s33, 1
      %p37 = scmp.eq.s32.totalorder %s25, 5
      %p38 = scmp.ne.s32.totalorder %s33, %s35
      %p39 = scmp.eq.s32.totalorder %s25, 0
      %p40 = por %p38, %p39
      %p41 = scmp.ne.s32.totalorder %s33, %s35
      %p42 = scmp.eq.s32.totalorder %s30, 5
      %p43 = por %p41, %p42
      %p44 = scmp.ne.s32.totalorder %s35, %s36
      %p45 = scmp.eq.s32.totalorder %s30, 0
      %p46 = por %p44, %p45
      %p47 = scmp.ne.s32.totalorder %s35, %s36
      %p48 = scmp.eq.s32.totalorder %s31, 5
      %p49 = por %p47, %p48
      %p51 = scmp.ne.s32.totalorder %s36, %s50
      %p52 = scmp.eq.s32.totalorder %s31, 0
      %p53 = por %p51, %p52
      %s55 = sadd.s32 %s54, 1
      %p58 = scmp.eq.s32.totalorder %s25, 5
      %p59 = scmp.ne.s32.totalorder %s54, %s56
      %p60 = scmp.eq.s32.totalorder %s25, 0
      %p61 = por %p59, %p60
      %p62 = scmp.ne.s32.totalorder %s54, %s56
      %p63 = scmp.eq.s32.totalorder %s30, 5
      %p64 = por %p62, %p63
      %p65 = scmp.ne.s32.totalorder %s56, %s57
      %p66 = scmp.eq.s32.totalorder %s30, 0
      %p67 = por %p65, %p66
      %p68 = scmp.ne.s32.totalorder %s56, %s57
      %p69 = scmp.eq.s32.totalorder %s31, 5
      %p70 = por %p68, %p69
      %p72 = scmp.ne.s32.totalorder %s57, %s71
      %p73 = scmp.eq.s32.totalorder %s31, 0
      %p74 = por %p72, %p73
      %s76 = sadd.s32 %s75, 1
      %p79 = scmp.eq.s32.totalorder %s25, 5
      %p80 = scmp.ne.s32.totalorder %s75, %s77
      %p81 = scmp.eq.s32.totalorder %s25, 0
      %p82 = por %p80, %p81
      %p83 = scmp.ne.s32.totalorder %s75, %s77
      %p84 = scmp.eq.s32.totalorder %s30, 5
      %p85 = por %p83, %p84
      %p86 = scmp.ne.s32.totalorder %s77, %s78
      %p87 = scmp.eq.s32.totalorder %s30, 0
      %p88 = por %p86, %p87
      %p89 = scmp.ne.s32.totalorder %s77, %s78
      %p90 = scmp.eq.s32.totalorder %s31, 5
      %p91 = por %p89, %p90
      %p93 = scmp.ne.s32.totalorder %s78, %s92
      %p94 = scmp.eq.s32.totalorder %s31, 0
      %p95 = por %p93, %p94
      %s97 = sadd.s32 %s96, 1
      %p100 = scmp.eq.s32.totalorder %s25, 5
      %p101 = scmp.ne.s32.totalorder %s96, %s98
      %p102 = scmp.eq.s32.totalorder %s25, 0
      %p103 = por %p101, %p102
      %p104 = scmp.ne.s32.totalorder %s96, %s98
      %p105 = scmp.eq.s32.totalorder %s30, 5
      %p106 = por %p104, %p105
      %p107 = scmp.ne.s32.totalorder %s98, %s99
      %p108 = scmp.eq.s32.totalorder %s30, 0
      %p109 = por %p107, %p108
      %p110 = scmp.ne.s32.totalorder %s98, %s99
      %p111 = scmp.eq.s32.totalorder %s31, 5
      %p112 = por %p110, %p111
      %p114 = scmp.ne.s32.totalorder %s99, %s113
      %p115 = scmp.eq.s32.totalorder %s31, 0
      %p116 = por %p114, %p115
      %s118 = sadd.s32 %s117, 1
      %p121 = scmp.eq.s32.totalorder %s25, 5
      %p122 = scmp.ne.s32.totalorder %s117, %s119
      %p123 = scmp.eq.s32.totalorder %s25, 0
      %p124 = por %p122, %p123
      %p125 = scmp.ne.s32.totalorder %s117, %s119
      %p126 = scmp.eq.s32.totalorder %s30, 5
      %p127 = por %p125, %p126
      %p128 = scmp.ne.s32.totalorder %s119, %s120
      %p129 = scmp.eq.s32.totalorder %s30, 0
      %p130 = por %p128, %p129
      %p131 = scmp.ne.s32.totalorder %s119, %s120
      %p132 = scmp.eq.s32.totalorder %s31, 5
      %p133 = por %p131, %p132
      %p135 = scmp.ne.s32.totalorder %s120, %s134
      %p136 = scmp.eq.s32.totalorder %s31, 0
      %p137 = por %p135, %p136
      %s139 = sadd.s32 %s138, 1
      %p142 = scmp.eq.s32.totalorder %s25, 5
      %p143 = scmp.ne.s32.totalorder %s138, %s140
      %p144 = scmp.eq.s32.totalorder %s25, 0
      %p145 = por %p143, %p144
      %p146 = scmp.ne.s32.totalorder %s138, %s140
      %p147 = scmp.eq.s32.totalorder %s30, 5
      %p148 = por %p146, %p147
      %p149 = scmp.ne.s32.totalorder %s140, %s141
      %p150 = scmp.eq.s32.totalorder %s30, 0
      %p151 = por %p149, %p150
      %p152 = scmp.ne.s32.totalorder %s140, %s141
      %p153 = scmp.eq.s32.totalorder %s31, 5
      %p154 = por %p152, %p153
      %p156 = scmp.ne.s32.totalorder %s141, %s155
      %p157 = scmp.eq.s32.totalorder %s31, 0
      %p158 = por %p156, %p157
      %s160 = sadd.s32 %s159, 1
      %p163 = scmp.eq.s32.totalorder %s25, 5
      %p164 = scmp.ne.s32.totalorder %s159, %s161
      %p165 = scmp.eq.s32.totalorder %s25, 0
      %p166 = por %p164, %p165
      %p167 = scmp.ne.s32.totalorder %s159, %s161
      %p168 = scmp.eq.s32.totalorder %s30, 5
      %p169 = por %p167, %p168
      %p170 = scmp.ne.s32.totalorder %s161, %s162
      %p171 = scmp.eq.s32.totalorder %s30, 0
      %p172 = por %p170, %p171
      %p173 = scmp.ne.s32.totalorder %s161, %s162
      %p174 = scmp.eq.s32.totalorder %s31, 5
      %p175 = por %p173, %p174
      %p177 = scmp.ne.s32.totalorder %s162, %s176
      %p178 = scmp.eq.s32.totalorder %s31, 0
      %p179 = por %p177, %p178
      %s180 = ssub.s32 %s25, %s32
      %p181 = scmp.eq.s32.totalorder %s180, 0
      %s183 = sadd.s32 %s182, 1
      %s184 = scalar_select %p181, %s182, %s183
      %p187 = pneg %p181
      %p188 = scmp.eq.s32.totalorder %s25, 5
      %p189 = por %p187, %p188
      %p190 = scmp.ne.s32.totalorder %s182, %s185
      %p191 = scmp.eq.s32.totalorder %s25, 0
      %p192 = por %p190, %p191
      %p193 = scmp.ne.s32.totalorder %s182, %s185
      %p194 = scmp.eq.s32.totalorder %s30, 5
      %p195 = por %p193, %p194
      %p196 = scmp.ne.s32.totalorder %s185, %s186
      %p197 = scmp.eq.s32.totalorder %s30, 0
      %p198 = por %p196, %p197
      %p199 = scmp.ne.s32.totalorder %s185, %s186
      %p200 = scmp.eq.s32.totalorder %s31, 5
      %p201 = por %p199, %p200
      %p203 = scmp.ne.s32.totalorder %s186, %s202
      %p204 = scmp.eq.s32.totalorder %s31, 0
      %p205 = por %p203, %p204
      %s206 = ssub.s32 %s25, %s32
      %p207 = scmp.eq.s32.totalorder %s206, 0
      %s209 = sadd.s32 %s208, 1
      %s210 = scalar_select %p207, %s208, %s209
      %p213 = pneg %p207
      %p214 = scmp.eq.s32.totalorder %s25, 5
      %p215 = por %p213, %p214
      %p216 = scmp.ne.s32.totalorder %s208, %s211
      %p217 = scmp.eq.s32.totalorder %s25, 0
      %p218 = por %p216, %p217
      %p219 = scmp.ne.s32.totalorder %s208, %s211
      %p220 = scmp.eq.s32.totalorder %s30, 5
      %p221 = por %p219, %p220
      %p222 = scmp.ne.s32.totalorder %s211, %s212
      %p223 = scmp.eq.s32.totalorder %s30, 0
      %p224 = por %p222, %p223
      %p225 = scmp.ne.s32.totalorder %s211, %s212
      %p226 = scmp.eq.s32.totalorder %s31, 5
      %p227 = por %p225, %p226
      %p229 = scmp.ne.s32.totalorder %s212, %s228
      %p230 = scmp.eq.s32.totalorder %s31, 0
      %p231 = por %p229, %p230
      %s232 = ssub.s32 %s25, %s32
      %p233 = scmp.eq.s32.totalorder %s232, 0
      %s235 = sadd.s32 %s234, 1
      %s236 = scalar_select %p233, %s234, %s235
      %p239 = pneg %p233
      %p240 = scmp.eq.s32.totalorder %s25, 5
      %p241 = por %p239, %p240
      %p242 = scmp.ne.s32.totalorder %s234, %s237
      %p243 = scmp.eq.s32.totalorder %s25, 0
      %p244 = por %p242, %p243
      %p245 = scmp.ne.s32.totalorder %s234, %s237
      %p246 = scmp.eq.s32.totalorder %s30, 5
      %p247 = por %p245, %p246
      %p248 = scmp.ne.s32.totalorder %s237, %s238
      %p249 = scmp.eq.s32.totalorder %s30, 0
      %p250 = por %p248, %p249
      %p251 = scmp.ne.s32.totalorder %s237, %s238
      %p252 = scmp.eq.s32.totalorder %s31, 5
      %p253 = por %p251, %p252
      %p255 = scmp.ne.s32.totalorder %s238, %s254
      %p256 = scmp.eq.s32.totalorder %s31, 0
      %p257 = por %p255, %p256
      %p258 = scmp.le.s32.totalorder 1, %s25
      %p259 = scmp.lt.s32.totalorder %s25, 7
      %p260 = pnand %p258, %p259
      %p261 = pneg %p260
      // Predicated region
      $region9: #{tpu_custom_call.1} parent=5 // pred_check
        _
      $region10: #{tpu_custom_call.1} parent=5 // pred_check_branch
        %263 = sbr.rel (%p260) target = $region12
      $region11: #{tpu_custom_call.1} parent=5 // pred_region
        %s264 = ssub.s32 %s25, 1
        // Predicated region
        $region13: #{tpu_custom_call.1} parent=11 // pred_check
          %p265 = pneg %p46
        $region14: #{tpu_custom_call.1} parent=11 // pred_check_branch
          %267 = sbr.rel (%p265) target = $region16
        $region15: #{tpu_custom_call.1} parent=11 // pred_region
          %269 = vsyncadd [#allocation3], 0
          %s271 = sshll.u32 %s0, 4
          %s272 = int_to_ptr.hbm [resolvable:$true] %s271
          %s273 = sshll.u32 [#allocation2], 4
          %s274 = int_to_ptr.vmem [resolvable:$true] %s273
          %276 = dma.hbm_to_vmem [thread:$0]  %s272, 32, %s274, [#allocation3]
        $region16: #{tpu_custom_call.1} parent=11 // pred_fallthru
          _
        // Predicated region
        $region17: #{tpu_custom_call.1} parent=11 // pred_check
          %p277 = pneg %p67
        $region18: #{tpu_custom_call.1} parent=11 // pred_check_branch
          %279 = sbr.rel (%p277) target = $region20
        $region19: #{tpu_custom_call.1} parent=11 // pred_region
          %281 = vsyncadd [#allocation6], 0
          %s282 = sshll.u32 %s1, 4
          %s283 = int_to_ptr.hbm [resolvable:$true] %s282
          %s284 = sshll.u32 [#allocation5], 4
          %s285 = int_to_ptr.vmem [resolvable:$true] %s284
          %290 = dma.hbm_to_vmem [thread:$0]  %s283, 3328, %s285, [#allocation6], 256, 256, 16
        $region20: #{tpu_custom_call.1} parent=11 // pred_fallthru
          _
        // Predicated region
        $region21: #{tpu_custom_call.1} parent=11 // pred_check
          %p291 = pneg %p88
        $region22: #{tpu_custom_call.1} parent=11 // pred_check_branch
          %293 = sbr.rel (%p291) target = $region24
        $region23: #{tpu_custom_call.1} parent=11 // pred_region
          %295 = vsyncadd [#allocation6], 0
          %s297 = sshll.u32 %s2, 4
          %s298 = int_to_ptr.hbm [resolvable:$true] %s297
          %s299 = sshll.u32 [#allocation7], 4
          %s300 = int_to_ptr.vmem [resolvable:$true] %s299
          %302 = dma.hbm_to_vmem [thread:$0]  %s298, 32, %s300, [#allocation6]
        $region24: #{tpu_custom_call.1} parent=11 // pred_fallthru
          _
        // Predicated region
        $region25: #{tpu_custom_call.1} parent=11 // pred_check
          %p303 = pneg %p109
        $region26: #{tpu_custom_call.1} parent=11 // pred_check_branch
          %305 = sbr.rel (%p303) target = $region28
        $region27: #{tpu_custom_call.1} parent=11 // pred_region
          %307 = vsyncadd [#allocation9], 0
          %s308 = sshll.u32 %s3, 4
          %s309 = int_to_ptr.hbm [resolvable:$true] %s308
          %s310 = sshll.u32 [#allocation8], 4
          %s311 = int_to_ptr.vmem [resolvable:$true] %s310
          %316 = dma.hbm_to_vmem [thread:$0]  %s309, 16384, %s311, [#allocation9], 512, 512, 32
        $region28: #{tpu_custom_call.1} parent=11 // pred_fallthru
          _
        // Predicated region
        $region29: #{tpu_custom_call.1} parent=11 // pred_check
          %p317 = pneg %p130
        $region30: #{tpu_custom_call.1} parent=11 // pred_check_branch
          %319 = sbr.rel (%p317) target = $region32
        $region31: #{tpu_custom_call.1} parent=11 // pred_region
          %321 = vsyncadd [#allocation9], 0
          %s323 = sshll.u32 %s4, 4
          %s324 = int_to_ptr.hbm [resolvable:$true] %s323
          %s325 = sshll.u32 [#allocation10], 4
          %s326 = int_to_ptr.vmem [resolvable:$true] %s325
          %328 = dma.hbm_to_vmem [thread:$0]  %s324, 64, %s326, [#allocation9]
        $region32: #{tpu_custom_call.1} parent=11 // pred_fallthru
          _
        // Predicated region
        $region33: #{tpu_custom_call.1} parent=11 // pred_check
          %p329 = pneg %p151
        $region34: #{tpu_custom_call.1} parent=11 // pred_check_branch
          %331 = sbr.rel (%p329) target = $region36
        $region35: #{tpu_custom_call.1} parent=11 // pred_region
          %333 = vsyncadd [#allocation12], 0
          %s334 = sshll.u32 %s5, 4
          %s335 = int_to_ptr.hbm [resolvable:$true] %s334
          %s336 = sshll.u32 [#allocation11], 4
          %s337 = int_to_ptr.vmem [resolvable:$true] %s336
          %342 = dma.hbm_to_vmem [thread:$0]  %s335, 65536, %s337, [#allocation12], 1024, 1024, 64
        $region36: #{tpu_custom_call.1} parent=11 // pred_fallthru
          _
        // Predicated region
        $region37: #{tpu_custom_call.1} parent=11 // pred_check
          %p343 = pneg %p172
        $region38: #{tpu_custom_call.1} parent=11 // pred_check_branch
          %345 = sbr.rel (%p343) target = $region40
        $region39: #{tpu_custom_call.1} parent=11 // pred_region
          %347 = vsyncadd [#allocation12], 0
          %s349 = sshll.u32 %s6, 4
          %s350 = int_to_ptr.hbm [resolvable:$true] %s349
          %s351 = sshll.u32 [#allocation13], 4
          %s352 = int_to_ptr.vmem [resolvable:$true] %s351
          %354 = dma.hbm_to_vmem [thread:$0]  %s350, 128, %s352, [#allocation12]
        $region40: #{tpu_custom_call.1} parent=11 // pred_fallthru
          _
      $region12: #{tpu_custom_call.1} parent=5 // pred_fallthru
        _
      %p355 = scmp.lt.s32.totalorder %s25, 6
      // Predicated region
      $region41: #{tpu_custom_call.1} parent=5 // pred_check
        %p356 = pneg %p355
      $region42: #{tpu_custom_call.1} parent=5 // pred_check_branch
        %358 = sbr.rel (%p356) target = $region44
      $region43: #{tpu_custom_call.1} parent=5 // pred_region
        // Predicated region
        $region45: #{tpu_custom_call.1} parent=43 // pred_check
          %p359 = pneg %p192
        $region46: #{tpu_custom_call.1} parent=43 // pred_check_branch
          %361 = sbr.rel (%p359) target = $region48
        $region47: #{tpu_custom_call.1} parent=43 // pred_region
          %s362 = sand.u32 %s25, 1
          %s363 = scalar_lea.sflag [#allocation15], %s362
          %s364 = sand.u32 %s182, 1
          %s365 = smul.addr %s364, 4096
          %s366 = scalar_lea.vmem [#allocation14], %s365
          %s367 = smul.u32 4, %s25
          %369 = vsyncadd %s363, 0
          %s370 = smul.addr %s367, 8
          %s371 = scalar_lea.hbm %s7, %s370
          %s372 = sshll.u32 %s371, 4
          %s373 = int_to_ptr.hbm [resolvable:$true] %s372
          %s374 = sshll.u32 %s366, 4
          %s375 = int_to_ptr.vmem [resolvable:$true] %s374
          %380 = dma.hbm_to_vmem [thread:$0]  %s373, 65536, %s375, %s363, 3072, 512, 32
        $region48: #{tpu_custom_call.1} parent=43 // pred_fallthru
          _
        // Predicated region
        $region49: #{tpu_custom_call.1} parent=43 // pred_check
          %p381 = pneg %p218
        $region50: #{tpu_custom_call.1} parent=43 // pred_check_branch
          %383 = sbr.rel (%p381) target = $region52
        $region51: #{tpu_custom_call.1} parent=43 // pred_region
          %s384 = sand.u32 %s25, 1
          %s385 = scalar_lea.sflag [#allocation15], %s384
          %s386 = sand.u32 %s208, 1
          %s387 = smul.addr %s386, 4
          %s388 = scalar_lea.vmem [#allocation16], %s387
          %s389 = smul.u32 4, %s25
          %391 = vsyncadd %s385, 0
          %s392 = scalar_lea.hbm %s8, %s389
          %s394 = sshll.u32 %s392, 4
          %s395 = int_to_ptr.hbm [resolvable:$true] %s394
          %s396 = sshll.u32 %s388, 4
          %s397 = int_to_ptr.vmem [resolvable:$true] %s396
          %399 = dma.hbm_to_vmem [thread:$0]  %s395, 64, %s397, %s385
        $region52: #{tpu_custom_call.1} parent=43 // pred_fallthru
          _
      $region44: #{tpu_custom_call.1} parent=5 // pred_fallthru
        _
      %p400 = scmp.le.s32.totalorder 1, %s25
      %p401 = scmp.lt.s32.totalorder %s25, 7
      %p402 = pnand %p400, %p401
      %p403 = pneg %p402
      // Predicated region
      $region53: #{tpu_custom_call.1} parent=5 // pred_check
        _
      $region54: #{tpu_custom_call.1} parent=5 // pred_check_branch
        %405 = sbr.rel (%p402) target = $region56
      $region55: #{tpu_custom_call.1} parent=5 // pred_region
        %s406 = ssub.s32 %s25, 1
        // Predicated region
        $region57: #{tpu_custom_call.1} parent=55 // pred_check
          %p407 = pneg %p46
        $region58: #{tpu_custom_call.1} parent=55 // pred_check_branch
          %409 = sbr.rel (%p407) target = $region60
        $region59: #{tpu_custom_call.1} parent=55 // pred_region
          %411 = dma.done [#allocation3], 32
        $region60: #{tpu_custom_call.1} parent=55 // pred_fallthru
          _
        // Predicated region
        $region61: #{tpu_custom_call.1} parent=55 // pred_check
          %p412 = pneg %p67
        $region62: #{tpu_custom_call.1} parent=55 // pred_check_branch
          %414 = sbr.rel (%p412) target = $region64
        $region63: #{tpu_custom_call.1} parent=55 // pred_region
          %416 = dma.done [#allocation6], 3328
        $region64: #{tpu_custom_call.1} parent=55 // pred_fallthru
          _
        // Predicated region
        $region65: #{tpu_custom_call.1} parent=55 // pred_check
          %p417 = pneg %p88
        $region66: #{tpu_custom_call.1} parent=55 // pred_check_branch
          %419 = sbr.rel (%p417) target = $region68
        $region67: #{tpu_custom_call.1} parent=55 // pred_region
          %421 = dma.done [#allocation6], 32
        $region68: #{tpu_custom_call.1} parent=55 // pred_fallthru
          _
        // Predicated region
        $region69: #{tpu_custom_call.1} parent=55 // pred_check
          %p422 = pneg %p109
        $region70: #{tpu_custom_call.1} parent=55 // pred_check_branch
          %424 = sbr.rel (%p422) target = $region72
        $region71: #{tpu_custom_call.1} parent=55 // pred_region
          %426 = dma.done [#allocation9], 16384
        $region72: #{tpu_custom_call.1} parent=55 // pred_fallthru
          _
        // Predicated region
        $region73: #{tpu_custom_call.1} parent=55 // pred_check
          %p427 = pneg %p130
        $region74: #{tpu_custom_call.1} parent=55 // pred_check_branch
          %429 = sbr.rel (%p427) target = $region76
        $region75: #{tpu_custom_call.1} parent=55 // pred_region
          %431 = dma.done [#allocation9], 64
        $region76: #{tpu_custom_call.1} parent=55 // pred_fallthru
          _
        // Predicated region
        $region77: #{tpu_custom_call.1} parent=55 // pred_check
          %p432 = pneg %p151
        $region78: #{tpu_custom_call.1} parent=55 // pred_check_branch
          %434 = sbr.rel (%p432) target = $region80
        $region79: #{tpu_custom_call.1} parent=55 // pred_region
          %436 = dma.done [#allocation12], 65536
        $region80: #{tpu_custom_call.1} parent=55 // pred_fallthru
          _
        // Predicated region
        $region81: #{tpu_custom_call.1} parent=55 // pred_check
          %p437 = pneg %p172
        $region82: #{tpu_custom_call.1} parent=55 // pred_check_branch
          %439 = sbr.rel (%p437) target = $region84
        $region83: #{tpu_custom_call.1} parent=55 // pred_region
          %441 = dma.done [#allocation12], 128
        $region84: #{tpu_custom_call.1} parent=55 // pred_fallthru
          _
        %s442 = sand.u32 %s30, 1
        %s443 = scalar_lea.sflag [#allocation15], %s442
        %s444 = sand.u32 %s185, 1
        %s445 = smul.addr %s444, 4096
        %s446 = scalar_lea.vmem [#allocation14], %s445
        // Predicated region
        $region85: #{tpu_custom_call.1} parent=55 // pred_check
          %p447 = pneg %p198
        $region86: #{tpu_custom_call.1} parent=55 // pred_check_branch
          %449 = sbr.rel (%p447) target = $region88
        $region87: #{tpu_custom_call.1} parent=55 // pred_region
          %451 = dma.done %s443, 65536
        $region88: #{tpu_custom_call.1} parent=55 // pred_fallthru
          _
        %s452 = sand.u32 %s30, 1
        %s453 = scalar_lea.sflag [#allocation15], %s452
        %s454 = sand.u32 %s211, 1
        %s455 = smul.addr %s454, 4
        %s456 = scalar_lea.vmem [#allocation16], %s455
        // Predicated region
        $region89: #{tpu_custom_call.1} parent=55 // pred_check
          %p457 = pneg %p224
        $region90: #{tpu_custom_call.1} parent=55 // pred_check_branch
          %459 = sbr.rel (%p457) target = $region92
        $region91: #{tpu_custom_call.1} parent=55 // pred_region
          %461 = dma.done %s453, 64
        $region92: #{tpu_custom_call.1} parent=55 // pred_fallthru
          _
        %p462 = pneg %p46
        %p463 = pneg %p43
        %p464 = pneg %p67
        %p465 = pneg %p64
        %p466 = pneg %p88
        %p467 = pneg %p85
        %p468 = pneg %p109
        %p469 = pneg %p106
        %p470 = pneg %p130
        %p471 = pneg %p127
        %p472 = pneg %p151
        %p473 = pneg %p148
        %p474 = pneg %p172
        %p475 = pneg %p169
        %s476 = sand.u32 %s30, 1
        %s477 = scalar_lea.sflag [#allocation15], %s476
        %s478 = sand.u32 %s185, 1
        %s479 = smul.addr %s478, 4096
        %s480 = scalar_lea.vmem [#allocation14], %s479
        %p481 = pneg %p198
        %p482 = pneg %p195
        %s483 = sand.u32 %s30, 1
        %s484 = scalar_lea.sflag [#allocation15], %s483
        %s485 = sand.u32 %s211, 1
        %s486 = smul.addr %s485, 4
        %s487 = scalar_lea.vmem [#allocation16], %s486
        %p488 = pneg %p224
        %p489 = pneg %p221
        %p490 = pneg %p250
        %p491 = pneg %p247
        %s492 = sand.u32 %s237, 1
        %s493 = scalar_lea.sflag [#allocation4], %s492
        %s494 = sand.u32 %s237, 1
        %s495 = smul.addr %s494, 8
        %s496 = scalar_lea.vmem [#allocation17], %s495
        %s497 = smul.u32 4, %s30
        %s498 = smul.u32 4, %s30
        %s499 = smul.u32 4, %s30
        %v500 = vld [vmem:[#allocation2] sm:$0x3]
        %v501 = vld [vmem:[#allocation5] sm:$0xff]
        %v502 = vld [vmem:[#allocation5 + $0x8] sm:$0xff]
        %v503 = vld [vmem:[#allocation5 + $0x10] sm:$0xff]
        %v504 = vld [vmem:[#allocation5 + $0x18] sm:$0xff]
        %v505 = vld [vmem:[#allocation5 + $0x20] sm:$0xff]
        %v506 = vld [vmem:[#allocation5 + $0x28] sm:$0xff]
        %v507 = vld [vmem:[#allocation5 + $0x30] sm:$0xff]
        %v508 = vld [vmem:[#allocation5 + $0x38] sm:$0xff]
        %v509 = vld [vmem:[#allocation5 + $0x40] sm:$0xff]
        %v510 = vld [vmem:[#allocation5 + $0x48] sm:$0xff]
        %v511 = vld [vmem:[#allocation5 + $0x50] sm:$0xff]
        %v512 = vld [vmem:[#allocation5 + $0x58] sm:$0xff]
        %v513 = vld [vmem:[#allocation5 + $0x60] sm:$0xff]
        %v514 = vld [vmem:[#allocation5 + $0x68] sm:$0xff]
        %v515 = vld [vmem:[#allocation5 + $0x70] sm:$0xff]
        %v516 = vld [vmem:[#allocation5 + $0x78] sm:$0xff]
        %v517 = vld [vmem:[#allocation5 + $0x80] sm:$0xff]
        %v518 = vld [vmem:[#allocation5 + $0x88] sm:$0xff]
        %v519 = vld [vmem:[#allocation5 + $0x90] sm:$0xff]
        %v520 = vld [vmem:[#allocation5 + $0x98] sm:$0xff]
        %v521 = vld [vmem:[#allocation5 + $0xa0] sm:$0xff]
        %v522 = vld [vmem:[#allocation5 + $0xa8] sm:$0xff]
        %v523 = vld [vmem:[#allocation5 + $0xb0] sm:$0xff]
        %v524 = vld [vmem:[#allocation5 + $0xb8] sm:$0xff]
        %v525 = vld [vmem:[#allocation5 + $0xc0] sm:$0xf]
        %v526 = vld [vmem:[#allocation5 + $0xc8] sm:$0xf]
        %v527 = vld [vmem:[#allocation7] sm:$0x3]
        %v529 = vperm.slane %v527, 0
        %v530 = vperm.slane %v527, 1
        %vm533 = vcmask 818176
        %v535 = vsel %vm533, %v500, 0
        %vm537 = vcmask 1043456
        %v539 = vsel %vm537, %v525, 0
        %v542 = vsel %vm537, %v526, 0
        %544 = vmatpush.msra.mxu0 0.0
        %545 = vmatpush.msra.mxu0 0.0
        %546 = vmatpush.msra.mxu0 0.0
        %547 = vmatpush.msra.mxu0 %v539
        %548 = vmatpush.msra.mxu0 %v523
        %549 = vmatpush.msra.mxu0 %v521
        %550 = vmatpush.msra.mxu0 %v519
        %551 = vmatpush.msra.mxu0 %v517
        %552 = vmatpush.msra.mxu0 %v515
        %553 = vmatpush.msra.mxu0 %v513
        %554 = vmatpush.msra.mxu0 %v511
        %555 = vmatpush.msra.mxu0 %v509
        %556 = vmatpush.msra.mxu0 %v507
        %557 = vmatpush.msra.mxu0 %v505
        %558 = vmatpush.msra.mxu0 %v503
        %559 = vmatpush.msra.mxu0 %v501
        %560 = vmatmul.f32.gmra.mxu0 %v535
        %v561 = vpop.f32.mrf.mxu0
        %v562 = vadd.f32 %v529, %v561
        %563 = vdwg.mxu0
        %564 = vmatpush.msra.mxu0 0.0
        %565 = vmatpush.msra.mxu0 0.0
        %566 = vmatpush.msra.mxu0 0.0
        %567 = vmatpush.msra.mxu0 %v542
        %568 = vmatpush.msra.mxu0 %v524
        %569 = vmatpush.msra.mxu0 %v522
        %570 = vmatpush.msra.mxu0 %v520
        %571 = vmatpush.msra.mxu0 %v518
        %572 = vmatpush.msra.mxu0 %v516
        %573 = vmatpush.msra.mxu0 %v514
        %574 = vmatpush.msra.mxu0 %v512
        %575 = vmatpush.msra.mxu0 %v510
        %576 = vmatpush.msra.mxu0 %v508
        %577 = vmatpush.msra.mxu0 %v506
        %578 = vmatpush.msra.mxu0 %v504
        %579 = vmatpush.msra.mxu0 %v502
        %580 = vmatmul.f32.gmra.mxu0 %v535
        %v581 = vpop.f32.mrf.mxu0
        %v582 = vadd.f32 %v530, %v581
        %583 = vdwg.mxu0
        %v584 = vmax.f32 %v562, 0.0
        %v585 = vmax.f32 %v582, 0.0
        %v586 = vld [vmem:[#allocation8] sm:$0xff]
        %v587 = vld [vmem:[#allocation8 + $0x8] sm:$0xff]
        %v588 = vld [vmem:[#allocation8 + $0x10] sm:$0xff]
        %v589 = vld [vmem:[#allocation8 + $0x18] sm:$0xff]
        %v590 = vld [vmem:[#allocation8 + $0x20] sm:$0xff]
        %v591 = vld [vmem:[#allocation8 + $0x28] sm:$0xff]
        %v592 = vld [vmem:[#allocation8 + $0x30] sm:$0xff]
        %v593 = vld [vmem:[#allocation8 + $0x38] sm:$0xff]
        %v594 = vld [vmem:[#allocation8 + $0x40] sm:$0xff]
        %v595 = vld [vmem:[#allocation8 + $0x48] sm:$0xff]
        %v596 = vld [vmem:[#allocation8 + $0x50] sm:$0xff]
        %v597 = vld [vmem:[#allocation8 + $0x58] sm:$0xff]
        %v598 = vld [vmem:[#allocation8 + $0x60] sm:$0xff]
        %v599 = vld [vmem:[#allocation8 + $0x68] sm:$0xff]
        %v600 = vld [vmem:[#allocation8 + $0x70] sm:$0xff]
        %v601 = vld [vmem:[#allocation8 + $0x78] sm:$0xff]
        %v602 = vld [vmem:[#allocation8 + $0x80] sm:$0xff]
        %v603 = vld [vmem:[#allocation8 + $0x88] sm:$0xff]
        %v604 = vld [vmem:[#allocation8 + $0x90] sm:$0xff]
        %v605 = vld [vmem:[#allocation8 + $0x98] sm:$0xff]
        %v606 = vld [vmem:[#allocation8 + $0xa0] sm:$0xff]
        %v607 = vld [vmem:[#allocation8 + $0xa8] sm:$0xff]
        %v608 = vld [vmem:[#allocation8 + $0xb0] sm:$0xff]
        %v609 = vld [vmem:[#allocation8 + $0xb8] sm:$0xff]
        %v610 = vld [vmem:[#allocation8 + $0xc0] sm:$0xff]
        %v611 = vld [vmem:[#allocation8 + $0xc8] sm:$0xff]
        %v612 = vld [vmem:[#allocation8 + $0xd0] sm:$0xff]
        %v613 = vld [vmem:[#allocation8 + $0xd8] sm:$0xff]
        %v614 = vld [vmem:[#allocation8 + $0xe0] sm:$0xff]
        %v615 = vld [vmem:[#allocation8 + $0xe8] sm:$0xff]
        %v616 = vld [vmem:[#allocation8 + $0xf0] sm:$0xff]
        %v617 = vld [vmem:[#allocation8 + $0xf8] sm:$0xff]
        %v618 = vld [vmem:[#allocation8 + $0x100] sm:$0xff]
        %v619 = vld [vmem:[#allocation8 + $0x108] sm:$0xff]
        %v620 = vld [vmem:[#allocation8 + $0x110] sm:$0xff]
        %v621 = vld [vmem:[#allocation8 + $0x118] sm:$0xff]
        %v622 = vld [vmem:[#allocation8 + $0x120] sm:$0xff]
        %v623 = vld [vmem:[#allocation8 + $0x128] sm:$0xff]
        %v624 = vld [vmem:[#allocation8 + $0x130] sm:$0xff]
        %v625 = vld [vmem:[#allocation8 + $0x138] sm:$0xff]
        %v626 = vld [vmem:[#allocation8 + $0x140] sm:$0xff]
        %v627 = vld [vmem:[#allocation8 + $0x148] sm:$0xff]
        %v628 = vld [vmem:[#allocation8 + $0x150] sm:$0xff]
        %v629 = vld [vmem:[#allocation8 + $0x158] sm:$0xff]
        %v630 = vld [vmem:[#allocation8 + $0x160] sm:$0xff]
        %v631 = vld [vmem:[#allocation8 + $0x168] sm:$0xff]
        %v632 = vld [vmem:[#allocation8 + $0x170] sm:$0xff]
        %v633 = vld [vmem:[#allocation8 + $0x178] sm:$0xff]
        %v634 = vld [vmem:[#allocation8 + $0x180] sm:$0xff]
        %v635 = vld [vmem:[#allocation8 + $0x188] sm:$0xff]
        %v636 = vld [vmem:[#allocation8 + $0x190] sm:$0xff]
        %v637 = vld [vmem:[#allocation8 + $0x198] sm:$0xff]
        %v638 = vld [vmem:[#allocation8 + $0x1a0] sm:$0xff]
        %v639 = vld [vmem:[#allocation8 + $0x1a8] sm:$0xff]
        %v640 = vld [vmem:[#allocation8 + $0x1b0] sm:$0xff]
        %v641 = vld [vmem:[#allocation8 + $0x1b8] sm:$0xff]
        %v642 = vld [vmem:[#allocation8 + $0x1c0] sm:$0xff]
        %v643 = vld [vmem:[#allocation8 + $0x1c8] sm:$0xff]
        %v644 = vld [vmem:[#allocation8 + $0x1d0] sm:$0xff]
        %v645 = vld [vmem:[#allocation8 + $0x1d8] sm:$0xff]
        %v646 = vld [vmem:[#allocation8 + $0x1e0] sm:$0xff]
        %v647 = vld [vmem:[#allocation8 + $0x1e8] sm:$0xff]
        %v648 = vld [vmem:[#allocation8 + $0x1f0] sm:$0xff]
        %v649 = vld [vmem:[#allocation8 + $0x1f8] sm:$0xff]
        %v650 = vld [vmem:[#allocation8 + $0x200] sm:$0xff]
        %v651 = vld [vmem:[#allocation8 + $0x208] sm:$0xff]
        %v652 = vld [vmem:[#allocation8 + $0x210] sm:$0xff]
        %v653 = vld [vmem:[#allocation8 + $0x218] sm:$0xff]
        %v654 = vld [vmem:[#allocation8 + $0x220] sm:$0xff]
        %v655 = vld [vmem:[#allocation8 + $0x228] sm:$0xff]
        %v656 = vld [vmem:[#allocation8 + $0x230] sm:$0xff]
        %v657 = vld [vmem:[#allocation8 + $0x238] sm:$0xff]
        %v658 = vld [vmem:[#allocation8 + $0x240] sm:$0xff]
        %v659 = vld [vmem:[#allocation8 + $0x248] sm:$0xff]
        %v660 = vld [vmem:[#allocation8 + $0x250] sm:$0xff]
        %v661 = vld [vmem:[#allocation8 + $0x258] sm:$0xff]
        %v662 = vld [vmem:[#allocation8 + $0x260] sm:$0xff]
        %v663 = vld [vmem:[#allocation8 + $0x268] sm:$0xff]
        %v664 = vld [vmem:[#allocation8 + $0x270] sm:$0xff]
        %v665 = vld [vmem:[#allocation8 + $0x278] sm:$0xff]
        %v666 = vld [vmem:[#allocation8 + $0x280] sm:$0xff]
        %v667 = vld [vmem:[#allocation8 + $0x288] sm:$0xff]
        %v668 = vld [vmem:[#allocation8 + $0x290] sm:$0xff]
        %v669 = vld [vmem:[#allocation8 + $0x298] sm:$0xff]
        %v670 = vld [vmem:[#allocation8 + $0x2a0] sm:$0xff]
        %v671 = vld [vmem:[#allocation8 + $0x2a8] sm:$0xff]
        %v672 = vld [vmem:[#allocation8 + $0x2b0] sm:$0xff]
        %v673 = vld [vmem:[#allocation8 + $0x2b8] sm:$0xff]
        %v674 = vld [vmem:[#allocation8 + $0x2c0] sm:$0xff]
        %v675 = vld [vmem:[#allocation8 + $0x2c8] sm:$0xff]
        %v676 = vld [vmem:[#allocation8 + $0x2d0] sm:$0xff]
        %v677 = vld [vmem:[#allocation8 + $0x2d8] sm:$0xff]
        %v678 = vld [vmem:[#allocation8 + $0x2e0] sm:$0xff]
        %v679 = vld [vmem:[#allocation8 + $0x2e8] sm:$0xff]
        %v680 = vld [vmem:[#allocation8 + $0x2f0] sm:$0xff]
        %v681 = vld [vmem:[#allocation8 + $0x2f8] sm:$0xff]
        %v682 = vld [vmem:[#allocation8 + $0x300] sm:$0xff]
        %v683 = vld [vmem:[#allocation8 + $0x308] sm:$0xff]
        %v684 = vld [vmem:[#allocation8 + $0x310] sm:$0xff]
        %v685 = vld [vmem:[#allocation8 + $0x318] sm:$0xff]
        %v686 = vld [vmem:[#allocation8 + $0x320] sm:$0xff]
        %v687 = vld [vmem:[#allocation8 + $0x328] sm:$0xff]
        %v688 = vld [vmem:[#allocation8 + $0x330] sm:$0xff]
        %v689 = vld [vmem:[#allocation8 + $0x338] sm:$0xff]
        %v690 = vld [vmem:[#allocation8 + $0x340] sm:$0xff]
        %v691 = vld [vmem:[#allocation8 + $0x348] sm:$0xff]
        %v692 = vld [vmem:[#allocation8 + $0x350] sm:$0xff]
        %v693 = vld [vmem:[#allocation8 + $0x358] sm:$0xff]
        %v694 = vld [vmem:[#allocation8 + $0x360] sm:$0xff]
        %v695 = vld [vmem:[#allocation8 + $0x368] sm:$0xff]
        %v696 = vld [vmem:[#allocation8 + $0x370] sm:$0xff]
        %v697 = vld [vmem:[#allocation8 + $0x378] sm:$0xff]
        %v698 = vld [vmem:[#allocation8 + $0x380] sm:$0xff]
        %v699 = vld [vmem:[#allocation8 + $0x388] sm:$0xff]
        %v700 = vld [vmem:[#allocation8 + $0x390] sm:$0xff]
        %v701 = vld [vmem:[#allocation8 + $0x398] sm:$0xff]
        %v702 = vld [vmem:[#allocation8 + $0x3a0] sm:$0xff]
        %v703 = vld [vmem:[#allocation8 + $0x3a8] sm:$0xff]
        %v704 = vld [vmem:[#allocation8 + $0x3b0] sm:$0xff]
        %v705 = vld [vmem:[#allocation8 + $0x3b8] sm:$0xff]
        %v706 = vld [vmem:[#allocation8 + $0x3c0] sm:$0xff]
        %v707 = vld [vmem:[#allocation8 + $0x3c8] sm:$0xff]
        %v708 = vld [vmem:[#allocation8 + $0x3d0] sm:$0xff]
        %v709 = vld [vmem:[#allocation8 + $0x3d8] sm:$0xff]
        %v710 = vld [vmem:[#allocation8 + $0x3e0] sm:$0xff]
        %v711 = vld [vmem:[#allocation8 + $0x3e8] sm:$0xff]
        %v712 = vld [vmem:[#allocation8 + $0x3f0] sm:$0xff]
        %v713 = vld [vmem:[#allocation8 + $0x3f8] sm:$0xff]
        %v714 = vld [vmem:[#allocation10] sm:$0xf]
        %v716 = vperm.slane %v714, 0
        %v717 = vperm.slane %v714, 1
        %v718 = vperm.slane %v714, 2
        %v719 = vperm.slane %v714, 3
        %724 = vmatpush.msra.mxu0 %v646
        %725 = vmatpush.msra.mxu0 %v642
        %726 = vmatpush.msra.mxu0 %v638
        %727 = vmatpush.msra.mxu0 %v634
        %728 = vmatpush.msra.mxu0 %v630
        %729 = vmatpush.msra.mxu0 %v626
        %730 = vmatpush.msra.mxu0 %v622
        %731 = vmatpush.msra.mxu0 %v618
        %732 = vmatpush.msra.mxu0 %v614
        %733 = vmatpush.msra.mxu0 %v610
        %734 = vmatpush.msra.mxu0 %v606
        %735 = vmatpush.msra.mxu0 %v602
        %736 = vmatpush.msra.mxu0 %v598
        %737 = vmatpush.msra.mxu0 %v594
        %738 = vmatpush.msra.mxu0 %v590
        %739 = vmatpush.msra.mxu0 %v586
        %740 = vmatmul.f32.gmra.mxu0 %v584
        %v741 = vpop.f32.mrf.mxu0
        %v742 = vadd.f32 %v716, %v741
        %743 = vdwg.mxu0
        %744 = vmatpush.msra.mxu0 %v710
        %745 = vmatpush.msra.mxu0 %v706
        %746 = vmatpush.msra.mxu0 %v702
        %747 = vmatpush.msra.mxu0 %v698
        %748 = vmatpush.msra.mxu0 %v694
        %749 = vmatpush.msra.mxu0 %v690
        %750 = vmatpush.msra.mxu0 %v686
        %751 = vmatpush.msra.mxu0 %v682
        %752 = vmatpush.msra.mxu0 %v678
        %753 = vmatpush.msra.mxu0 %v674
        %754 = vmatpush.msra.mxu0 %v670
        %755 = vmatpush.msra.mxu0 %v666
        %756 = vmatpush.msra.mxu0 %v662
        %757 = vmatpush.msra.mxu0 %v658
        %758 = vmatpush.msra.mxu0 %v654
        %759 = vmatpush.msra.mxu0 %v650
        %760 = vmatmul.f32.gmra.mxu0 %v585
        %v761 = vpop.f32.mrf.mxu0
        %v762 = vadd.f32 %v742, %v761
        %763 = vdwg.mxu0
        %764 = vmatpush.msra.mxu0 %v647
        %765 = vmatpush.msra.mxu0 %v643
        %766 = vmatpush.msra.mxu0 %v639
        %767 = vmatpush.msra.mxu0 %v635
        %768 = vmatpush.msra.mxu0 %v631
        %769 = vmatpush.msra.mxu0 %v627
        %770 = vmatpush.msra.mxu0 %v623
        %771 = vmatpush.msra.mxu0 %v619
        %772 = vmatpush.msra.mxu0 %v615
        %773 = vmatpush.msra.mxu0 %v611
        %774 = vmatpush.msra.mxu0 %v607
        %775 = vmatpush.msra.mxu0 %v603
        %776 = vmatpush.msra.mxu0 %v599
        %777 = vmatpush.msra.mxu0 %v595
        %778 = vmatpush.msra.mxu0 %v591
        %779 = vmatpush.msra.mxu0 %v587
        %780 = vmatmul.f32.gmra.mxu0 %v584
        %v781 = vpop.f32.mrf.mxu0
        %v782 = vadd.f32 %v717, %v781
        %783 = vdwg.mxu0
        %784 = vmatpush.msra.mxu0 %v711
        %785 = vmatpush.msra.mxu0 %v707
        %786 = vmatpush.msra.mxu0 %v703
        %787 = vmatpush.msra.mxu0 %v699
        %788 = vmatpush.msra.mxu0 %v695
        %789 = vmatpush.msra.mxu0 %v691
        %790 = vmatpush.msra.mxu0 %v687
        %791 = vmatpush.msra.mxu0 %v683
        %792 = vmatpush.msra.mxu0 %v679
        %793 = vmatpush.msra.mxu0 %v675
        %794 = vmatpush.msra.mxu0 %v671
        %795 = vmatpush.msra.mxu0 %v667
        %796 = vmatpush.msra.mxu0 %v663
        %797 = vmatpush.msra.mxu0 %v659
        %798 = vmatpush.msra.mxu0 %v655
        %799 = vmatpush.msra.mxu0 %v651
        %800 = vmatmul.f32.gmra.mxu0 %v585
        %v801 = vpop.f32.mrf.mxu0
        %v802 = vadd.f32 %v782, %v801
        %803 = vdwg.mxu0
        %804 = vmatpush.msra.mxu0 %v648
        %805 = vmatpush.msra.mxu0 %v644
        %806 = vmatpush.msra.mxu0 %v640
        %807 = vmatpush.msra.mxu0 %v636
        %808 = vmatpush.msra.mxu0 %v632
        %809 = vmatpush.msra.mxu0 %v628
        %810 = vmatpush.msra.mxu0 %v624
        %811 = vmatpush.msra.mxu0 %v620
        %812 = vmatpush.msra.mxu0 %v616
        %813 = vmatpush.msra.mxu0 %v612
        %814 = vmatpush.msra.mxu0 %v608
        %815 = vmatpush.msra.mxu0 %v604
        %816 = vmatpush.msra.mxu0 %v600
        %817 = vmatpush.msra.mxu0 %v596
        %818 = vmatpush.msra.mxu0 %v592
        %819 = vmatpush.msra.mxu0 %v588
        %820 = vmatmul.f32.gmra.mxu0 %v584
        %v821 = vpop.f32.mrf.mxu0
        %v822 = vadd.f32 %v718, %v821
        %823 = vdwg.mxu0
        %824 = vmatpush.msra.mxu0 %v712
        %825 = vmatpush.msra.mxu0 %v708
        %826 = vmatpush.msra.mxu0 %v704
        %827 = vmatpush.msra.mxu0 %v700
        %828 = vmatpush.msra.mxu0 %v696
        %829 = vmatpush.msra.mxu0 %v692
        %830 = vmatpush.msra.mxu0 %v688
        %831 = vmatpush.msra.mxu0 %v684
        %832 = vmatpush.msra.mxu0 %v680
        %833 = vmatpush.msra.mxu0 %v676
        %834 = vmatpush.msra.mxu0 %v672
        %835 = vmatpush.msra.mxu0 %v668
        %836 = vmatpush.msra.mxu0 %v664
        %837 = vmatpush.msra.mxu0 %v660
        %838 = vmatpush.msra.mxu0 %v656
        %839 = vmatpush.msra.mxu0 %v652
        %840 = vmatmul.f32.gmra.mxu0 %v585
        %v841 = vpop.f32.mrf.mxu0
        %v842 = vadd.f32 %v822, %v841
        %843 = vdwg.mxu0
        %844 = vmatpush.msra.mxu0 %v649
        %845 = vmatpush.msra.mxu0 %v645
        %846 = vmatpush.msra.mxu0 %v641
        %847 = vmatpush.msra.mxu0 %v637
        %848 = vmatpush.msra.mxu0 %v633
        %849 = vmatpush.msra.mxu0 %v629
        %850 = vmatpush.msra.mxu0 %v625
        %851 = vmatpush.msra.mxu0 %v621
        %852 = vmatpush.msra.mxu0 %v617
        %853 = vmatpush.msra.mxu0 %v613
        %854 = vmatpush.msra.mxu0 %v609
        %855 = vmatpush.msra.mxu0 %v605
        %856 = vmatpush.msra.mxu0 %v601
        %857 = vmatpush.msra.mxu0 %v597
        %858 = vmatpush.msra.mxu0 %v593
        %859 = vmatpush.msra.mxu0 %v589
        %860 = vmatmul.f32.gmra.mxu0 %v584
        %v861 = vpop.f32.mrf.mxu0
        %v862 = vadd.f32 %v719, %v861
        %863 = vdwg.mxu0
        %864 = vmatpush.msra.mxu0 %v713
        %865 = vmatpush.msra.mxu0 %v709
        %866 = vmatpush.msra.mxu0 %v705
        %867 = vmatpush.msra.mxu0 %v701
        %868 = vmatpush.msra.mxu0 %v697
        %869 = vmatpush.msra.mxu0 %v693
        %870 = vmatpush.msra.mxu0 %v689
        %871 = vmatpush.msra.mxu0 %v685
        %872 = vmatpush.msra.mxu0 %v681
        %873 = vmatpush.msra.mxu0 %v677
        %874 = vmatpush.msra.mxu0 %v673
        %875 = vmatpush.msra.mxu0 %v669
        %876 = vmatpush.msra.mxu0 %v665
        %877 = vmatpush.msra.mxu0 %v661
        %878 = vmatpush.msra.mxu0 %v657
        %879 = vmatpush.msra.mxu0 %v653
        %880 = vmatmul.f32.gmra.mxu0 %v585
        %v881 = vpop.f32.mrf.mxu0
        %v882 = vadd.f32 %v862, %v881
        %883 = vdwg.mxu0
        %v884 = vmax.f32 %v762, 0.0
        %v885 = vmax.f32 %v802, 0.0
        %v886 = vmax.f32 %v842, 0.0
        %v887 = vmax.f32 %v882, 0.0
        %v888 = vld [vmem:[#allocation11] sm:$0xff]
        %v889 = vld [vmem:[#allocation11 + $0x8] sm:$0xff]
        %v890 = vld [vmem:[#allocation11 + $0x10] sm:$0xff]
        %v891 = vld [vmem:[#allocation11 + $0x18] sm:$0xff]
        %v892 = vld [vmem:[#allocation11 + $0x20] sm:$0xff]
        %v893 = vld [vmem:[#allocation11 + $0x28] sm:$0xff]
        %v894 = vld [vmem:[#allocation11 + $0x30] sm:$0xff]
        %v895 = vld [vmem:[#allocation11 + $0x38] sm:$0xff]
        %v896 = vld [vmem:[#allocation11 + $0x40] sm:$0xff]
        %v897 = vld [vmem:[#allocation11 + $0x48] sm:$0xff]
        %v898 = vld [vmem:[#allocation11 + $0x50] sm:$0xff]
        %v899 = vld [vmem:[#allocation11 + $0x58] sm:$0xff]
        %v900 = vld [vmem:[#allocation11 + $0x60] sm:$0xff]
        %v901 = vld [vmem:[#allocation11 + $0x68] sm:$0xff]
        %v902 = vld [vmem:[#allocation11 + $0x70] sm:$0xff]
        %v903 = vld [vmem:[#allocation11 + $0x78] sm:$0xff]
        %v904 = vld [vmem:[#allocation11 + $0x80] sm:$0xff]
        %v905 = vld [vmem:[#allocation11 + $0x88] sm:$0xff]
        %v906 = vld [vmem:[#allocation11 + $0x90] sm:$0xff]
        %v907 = vld [vmem:[#allocation11 + $0x98] sm:$0xff]
        %v908 = vld [vmem:[#allocation11 + $0xa0] sm:$0xff]
        %v909 = vld [vmem:[#allocation11 + $0xa8] sm:$0xff]
        %v910 = vld [vmem:[#allocation11 + $0xb0] sm:$0xff]
        %v911 = vld [vmem:[#allocation11 + $0xb8] sm:$0xff]
        %v912 = vld [vmem:[#allocation11 + $0xc0] sm:$0xff]
        %v913 = vld [vmem:[#allocation11 + $0xc8] sm:$0xff]
        %v914 = vld [vmem:[#allocation11 + $0xd0] sm:$0xff]
        %v915 = vld [vmem:[#allocation11 + $0xd8] sm:$0xff]
        %v916 = vld [vmem:[#allocation11 + $0xe0] sm:$0xff]
        %v917 = vld [vmem:[#allocation11 + $0xe8] sm:$0xff]
        %v918 = vld [vmem:[#allocation11 + $0xf0] sm:$0xff]
        %v919 = vld [vmem:[#allocation11 + $0xf8] sm:$0xff]
        %v920 = vld [vmem:[#allocation11 + $0x100] sm:$0xff]
        %v921 = vld [vmem:[#allocation11 + $0x108] sm:$0xff]
        %v922 = vld [vmem:[#allocation11 + $0x110] sm:$0xff]
        %v923 = vld [vmem:[#allocation11 + $0x118] sm:$0xff]
        %v924 = vld [vmem:[#allocation11 + $0x120] sm:$0xff]
        %v925 = vld [vmem:[#allocation11 + $0x128] sm:$0xff]
        %v926 = vld [vmem:[#allocation11 + $0x130] sm:$0xff]
        %v927 = vld [vmem:[#allocation11 + $0x138] sm:$0xff]
        %v928 = vld [vmem:[#allocation11 + $0x140] sm:$0xff]
        %v929 = vld [vmem:[#allocation11 + $0x148] sm:$0xff]
        %v930 = vld [vmem:[#allocation11 + $0x150] sm:$0xff]
        %v931 = vld [vmem:[#allocation11 + $0x158] sm:$0xff]
        %v932 = vld [vmem:[#allocation11 + $0x160] sm:$0xff]
        %v933 = vld [vmem:[#allocation11 + $0x168] sm:$0xff]
        %v934 = vld [vmem:[#allocation11 + $0x170] sm:$0xff]
        %v935 = vld [vmem:[#allocation11 + $0x178] sm:$0xff]
        %v936 = vld [vmem:[#allocation11 + $0x180] sm:$0xff]
        %v937 = vld [vmem:[#allocation11 + $0x188] sm:$0xff]
        %v938 = vld [vmem:[#allocation11 + $0x190] sm:$0xff]
        %v939 = vld [vmem:[#allocation11 + $0x198] sm:$0xff]
        %v940 = vld [vmem:[#allocation11 + $0x1a0] sm:$0xff]
        %v941 = vld [vmem:[#allocation11 + $0x1a8] sm:$0xff]
        %v942 = vld [vmem:[#allocation11 + $0x1b0] sm:$0xff]
        %v943 = vld [vmem:[#allocation11 + $0x1b8] sm:$0xff]
        %v944 = vld [vmem:[#allocation11 + $0x1c0] sm:$0xff]
        %v945 = vld [vmem:[#allocation11 + $0x1c8] sm:$0xff]
        %v946 = vld [vmem:[#allocation11 + $0x1d0] sm:$0xff]
        %v947 = vld [vmem:[#allocation11 + $0x1d8] sm:$0xff]
        %v948 = vld [vmem:[#allocation11 + $0x1e0] sm:$0xff]
        %v949 = vld [vmem:[#allocation11 + $0x1e8] sm:$0xff]
        %v950 = vld [vmem:[#allocation11 + $0x1f0] sm:$0xff]
        %v951 = vld [vmem:[#allocation11 + $0x1f8] sm:$0xff]
        %v952 = vld [vmem:[#allocation11 + $0x200] sm:$0xff]
        %v953 = vld [vmem:[#allocation11 + $0x208] sm:$0xff]
        %v954 = vld [vmem:[#allocation11 + $0x210] sm:$0xff]
        %v955 = vld [vmem:[#allocation11 + $0x218] sm:$0xff]
        %v956 = vld [vmem:[#allocation11 + $0x220] sm:$0xff]
        %v957 = vld [vmem:[#allocation11 + $0x228] sm:$0xff]
        %v958 = vld [vmem:[#allocation11 + $0x230] sm:$0xff]
        %v959 = vld [vmem:[#allocation11 + $0x238] sm:$0xff]
        %v960 = vld [vmem:[#allocation11 + $0x240] sm:$0xff]
        %v961 = vld [vmem:[#allocation11 + $0x248] sm:$0xff]
        %v962 = vld [vmem:[#allocation11 + $0x250] sm:$0xff]
        %v963 = vld [vmem:[#allocation11 + $0x258] sm:$0xff]
        %v964 = vld [vmem:[#allocation11 + $0x260] sm:$0xff]
        %v965 = vld [vmem:[#allocation11 + $0x268] sm:$0xff]
        %v966 = vld [vmem:[#allocation11 + $0x270] sm:$0xff]
        %v967 = vld [vmem:[#allocation11 + $0x278] sm:$0xff]
        %v968 = vld [vmem:[#allocation11 + $0x280] sm:$0xff]
        %v969 = vld [vmem:[#allocation11 + $0x288] sm:$0xff]
        %v970 = vld [vmem:[#allocation11 + $0x290] sm:$0xff]
        %v971 = vld [vmem:[#allocation11 + $0x298] sm:$0xff]
        %v972 = vld [vmem:[#allocation11 + $0x2a0] sm:$0xff]
        %v973 = vld [vmem:[#allocation11 + $0x2a8] sm:$0xff]
        %v974 = vld [vmem:[#allocation11 + $0x2b0] sm:$0xff]
        %v975 = vld [vmem:[#allocation11 + $0x2b8] sm:$0xff]
        %v976 = vld [vmem:[#allocation11 + $0x2c0] sm:$0xff]
        %v977 = vld [vmem:[#allocation11 + $0x2c8] sm:$0xff]
        %v978 = vld [vmem:[#allocation11 + $0x2d0] sm:$0xff]
        %v979 = vld [vmem:[#allocation11 + $0x2d8] sm:$0xff]
        %v980 = vld [vmem:[#allocation11 + $0x2e0] sm:$0xff]
        %v981 = vld [vmem:[#allocation11 + $0x2e8] sm:$0xff]
        %v982 = vld [vmem:[#allocation11 + $0x2f0] sm:$0xff]
        %v983 = vld [vmem:[#allocation11 + $0x2f8] sm:$0xff]
        %v984 = vld [vmem:[#allocation11 + $0x300] sm:$0xff]
        %v985 = vld [vmem:[#allocation11 + $0x308] sm:$0xff]
        %v986 = vld [vmem:[#allocation11 + $0x310] sm:$0xff]
        %v987 = vld [vmem:[#allocation11 + $0x318] sm:$0xff]
        %v988 = vld [vmem:[#allocation11 + $0x320] sm:$0xff]
        %v989 = vld [vmem:[#allocation11 + $0x328] sm:$0xff]
        %v990 = vld [vmem:[#allocation11 + $0x330] sm:$0xff]
        %v991 = vld [vmem:[#allocation11 + $0x338] sm:$0xff]
        %v992 = vld [vmem:[#allocation11 + $0x340] sm:$0xff]
        %v993 = vld [vmem:[#allocation11 + $0x348] sm:$0xff]
        %v994 = vld [vmem:[#allocation11 + $0x350] sm:$0xff]
        %v995 = vld [vmem:[#allocation11 + $0x358] sm:$0xff]
        %v996 = vld [vmem:[#allocation11 + $0x360] sm:$0xff]
        %v997 = vld [vmem:[#allocation11 + $0x368] sm:$0xff]
        %v998 = vld [vmem:[#allocation11 + $0x370] sm:$0xff]
        %v999 = vld [vmem:[#allocation11 + $0x378] sm:$0xff]
        %v1000 = vld [vmem:[#allocation11 + $0x380] sm:$0xff]
        %v1001 = vld [vmem:[#allocation11 + $0x388] sm:$0xff]
        %v1002 = vld [vmem:[#allocation11 + $0x390] sm:$0xff]
        %v1003 = vld [vmem:[#allocation11 + $0x398] sm:$0xff]
        %v1004 = vld [vmem:[#allocation11 + $0x3a0] sm:$0xff]
        %v1005 = vld [vmem:[#allocation11 + $0x3a8] sm:$0xff]
        %v1006 = vld [vmem:[#allocation11 + $0x3b0] sm:$0xff]
        %v1007 = vld [vmem:[#allocation11 + $0x3b8] sm:$0xff]
        %v1008 = vld [vmem:[#allocation11 + $0x3c0] sm:$0xff]
        %v1009 = vld [vmem:[#allocation11 + $0x3c8] sm:$0xff]
        %v1010 = vld [vmem:[#allocation11 + $0x3d0] sm:$0xff]
        %v1011 = vld [vmem:[#allocation11 + $0x3d8] sm:$0xff]
        %v1012 = vld [vmem:[#allocation11 + $0x3e0] sm:$0xff]
        %v1013 = vld [vmem:[#allocation11 + $0x3e8] sm:$0xff]
        %v1014 = vld [vmem:[#allocation11 + $0x3f0] sm:$0xff]
        %v1015 = vld [vmem:[#allocation11 + $0x3f8] sm:$0xff]
        %v1016 = vld [vmem:[#allocation11 + $0x400] sm:$0xff]
        %v1017 = vld [vmem:[#allocation11 + $0x408] sm:$0xff]
        %v1018 = vld [vmem:[#allocation11 + $0x410] sm:$0xff]
        %v1019 = vld [vmem:[#allocation11 + $0x418] sm:$0xff]
        %v1020 = vld [vmem:[#allocation11 + $0x420] sm:$0xff]
        %v1021 = vld [vmem:[#allocation11 + $0x428] sm:$0xff]
        %v1022 = vld [vmem:[#allocation11 + $0x430] sm:$0xff]
        %v1023 = vld [vmem:[#allocation11 + $0x438] sm:$0xff]
        %v1024 = vld [vmem:[#allocation11 + $0x440] sm:$0xff]
        %v1025 = vld [vmem:[#allocation11 + $0x448] sm:$0xff]
        %v1026 = vld [vmem:[#allocation11 + $0x450] sm:$0xff]
        %v1027 = vld [vmem:[#allocation11 + $0x458] sm:$0xff]
        %v1028 = vld [vmem:[#allocation11 + $0x460] sm:$0xff]
        %v1029 = vld [vmem:[#allocation11 + $0x468] sm:$0xff]
        %v1030 = vld [vmem:[#allocation11 + $0x470] sm:$0xff]
        %v1031 = vld [vmem:[#allocation11 + $0x478] sm:$0xff]
        %v1032 = vld [vmem:[#allocation11 + $0x480] sm:$0xff]
        %v1033 = vld [vmem:[#allocation11 + $0x488] sm:$0xff]
        %v1034 = vld [vmem:[#allocation11 + $0x490] sm:$0xff]
        %v1035 = vld [vmem:[#allocation11 + $0x498] sm:$0xff]
        %v1036 = vld [vmem:[#allocation11 + $0x4a0] sm:$0xff]
        %v1037 = vld [vmem:[#allocation11 + $0x4a8] sm:$0xff]
        %v1038 = vld [vmem:[#allocation11 + $0x4b0] sm:$0xff]
        %v1039 = vld [vmem:[#allocation11 + $0x4b8] sm:$0xff]
        %v1040 = vld [vmem:[#allocation11 + $0x4c0] sm:$0xff]
        %v1041 = vld [vmem:[#allocation11 + $0x4c8] sm:$0xff]
        %v1042 = vld [vmem:[#allocation11 + $0x4d0] sm:$0xff]
        %v1043 = vld [vmem:[#allocation11 + $0x4d8] sm:$0xff]
        %v1044 = vld [vmem:[#allocation11 + $0x4e0] sm:$0xff]
        %v1045 = vld [vmem:[#allocation11 + $0x4e8] sm:$0xff]
        %v1046 = vld [vmem:[#allocation11 + $0x4f0] sm:$0xff]
        %v1047 = vld [vmem:[#allocation11 + $0x4f8] sm:$0xff]
        %v1048 = vld [vmem:[#allocation11 + $0x500] sm:$0xff]
        %v1049 = vld [vmem:[#allocation11 + $0x508] sm:$0xff]
        %v1050 = vld [vmem:[#allocation11 + $0x510] sm:$0xff]
        %v1051 = vld [vmem:[#allocation11 + $0x518] sm:$0xff]
        %v1052 = vld [vmem:[#allocation11 + $0x520] sm:$0xff]
        %v1053 = vld [vmem:[#allocation11 + $0x528] sm:$0xff]
        %v1054 = vld [vmem:[#allocation11 + $0x530] sm:$0xff]
        %v1055 = vld [vmem:[#allocation11 + $0x538] sm:$0xff]
        %v1056 = vld [vmem:[#allocation11 + $0x540] sm:$0xff]
        %v1057 = vld [vmem:[#allocation11 + $0x548] sm:$0xff]
        %v1058 = vld [vmem:[#allocation11 + $0x550] sm:$0xff]
        %v1059 = vld [vmem:[#allocation11 + $0x558] sm:$0xff]
        %v1060 = vld [vmem:[#allocation11 + $0x560] sm:$0xff]
        %v1061 = vld [vmem:[#allocation11 + $0x568] sm:$0xff]
        %v1062 = vld [vmem:[#allocation11 + $0x570] sm:$0xff]
        %v1063 = vld [vmem:[#allocation11 + $0x578] sm:$0xff]
        %v1064 = vld [vmem:[#allocation11 + $0x580] sm:$0xff]
        %v1065 = vld [vmem:[#allocation11 + $0x588] sm:$0xff]
        %v1066 = vld [vmem:[#allocation11 + $0x590] sm:$0xff]
        %v1067 = vld [vmem:[#allocation11 + $0x598] sm:$0xff]
        %v1068 = vld [vmem:[#allocation11 + $0x5a0] sm:$0xff]
        %v1069 = vld [vmem:[#allocation11 + $0x5a8] sm:$0xff]
        %v1070 = vld [vmem:[#allocation11 + $0x5b0] sm:$0xff]
        %v1071 = vld [vmem:[#allocation11 + $0x5b8] sm:$0xff]
        %v1072 = vld [vmem:[#allocation11 + $0x5c0] sm:$0xff]
        %v1073 = vld [vmem:[#allocation11 + $0x5c8] sm:$0xff]
        %v1074 = vld [vmem:[#allocation11 + $0x5d0] sm:$0xff]
        %v1075 = vld [vmem:[#allocation11 + $0x5d8] sm:$0xff]
        %v1076 = vld [vmem:[#allocation11 + $0x5e0] sm:$0xff]
        %v1077 = vld [vmem:[#allocation11 + $0x5e8] sm:$0xff]
        %v1078 = vld [vmem:[#allocation11 + $0x5f0] sm:$0xff]
        %v1079 = vld [vmem:[#allocation11 + $0x5f8] sm:$0xff]
        %v1080 = vld [vmem:[#allocation11 + $0x600] sm:$0xff]
        %v1081 = vld [vmem:[#allocation11 + $0x608] sm:$0xff]
        %v1082 = vld [vmem:[#allocation11 + $0x610] sm:$0xff]
        %v1083 = vld [vmem:[#allocation11 + $0x618] sm:$0xff]
        %v1084 = vld [vmem:[#allocation11 + $0x620] sm:$0xff]
        %v1085 = vld [vmem:[#allocation11 + $0x628] sm:$0xff]
        %v1086 = vld [vmem:[#allocation11 + $0x630] sm:$0xff]
        %v1087 = vld [vmem:[#allocation11 + $0x638] sm:$0xff]
        %v1088 = vld [vmem:[#allocation11 + $0x640] sm:$0xff]
        %v1089 = vld [vmem:[#allocation11 + $0x648] sm:$0xff]
        %v1090 = vld [vmem:[#allocation11 + $0x650] sm:$0xff]
        %v1091 = vld [vmem:[#allocation11 + $0x658] sm:$0xff]
        %v1092 = vld [vmem:[#allocation11 + $0x660] sm:$0xff]
        %v1093 = vld [vmem:[#allocation11 + $0x668] sm:$0xff]
        %v1094 = vld [vmem:[#allocation11 + $0x670] sm:$0xff]
        %v1095 = vld [vmem:[#allocation11 + $0x678] sm:$0xff]
        %v1096 = vld [vmem:[#allocation11 + $0x680] sm:$0xff]
        %v1097 = vld [vmem:[#allocation11 + $0x688] sm:$0xff]
        %v1098 = vld [vmem:[#allocation11 + $0x690] sm:$0xff]
        %v1099 = vld [vmem:[#allocation11 + $0x698] sm:$0xff]
        %v1100 = vld [vmem:[#allocation11 + $0x6a0] sm:$0xff]
        %v1101 = vld [vmem:[#allocation11 + $0x6a8] sm:$0xff]
        %v1102 = vld [vmem:[#allocation11 + $0x6b0] sm:$0xff]
        %v1103 = vld [vmem:[#allocation11 + $0x6b8] sm:$0xff]
        %v1104 = vld [vmem:[#allocation11 + $0x6c0] sm:$0xff]
        %v1105 = vld [vmem:[#allocation11 + $0x6c8] sm:$0xff]
        %v1106 = vld [vmem:[#allocation11 + $0x6d0] sm:$0xff]
        %v1107 = vld [vmem:[#allocation11 + $0x6d8] sm:$0xff]
        %v1108 = vld [vmem:[#allocation11 + $0x6e0] sm:$0xff]
        %v1109 = vld [vmem:[#allocation11 + $0x6e8] sm:$0xff]
        %v1110 = vld [vmem:[#allocation11 + $0x6f0] sm:$0xff]
        %v1111 = vld [vmem:[#allocation11 + $0x6f8] sm:$0xff]
        %v1112 = vld [vmem:[#allocation11 + $0x700] sm:$0xff]
        %v1113 = vld [vmem:[#allocation11 + $0x708] sm:$0xff]
        %v1114 = vld [vmem:[#allocation11 + $0x710] sm:$0xff]
        %v1115 = vld [vmem:[#allocation11 + $0x718] sm:$0xff]
        %v1116 = vld [vmem:[#allocation11 + $0x720] sm:$0xff]
        %v1117 = vld [vmem:[#allocation11 + $0x728] sm:$0xff]
        %v1118 = vld [vmem:[#allocation11 + $0x730] sm:$0xff]
        %v1119 = vld [vmem:[#allocation11 + $0x738] sm:$0xff]
        %v1120 = vld [vmem:[#allocation11 + $0x740] sm:$0xff]
        %v1121 = vld [vmem:[#allocation11 + $0x748] sm:$0xff]
        %v1122 = vld [vmem:[#allocation11 + $0x750] sm:$0xff]
        %v1123 = vld [vmem:[#allocation11 + $0x758] sm:$0xff]
        %v1124 = vld [vmem:[#allocation11 + $0x760] sm:$0xff]
        %v1125 = vld [vmem:[#allocation11 + $0x768] sm:$0xff]
        %v1126 = vld [vmem:[#allocation11 + $0x770] sm:$0xff]
        %v1127 = vld [vmem:[#allocation11 + $0x778] sm:$0xff]
        %v1128 = vld [vmem:[#allocation11 + $0x780] sm:$0xff]
        %v1129 = vld [vmem:[#allocation11 + $0x788] sm:$0xff]
        %v1130 = vld [vmem:[#allocation11 + $0x790] sm:$0xff]
        %v1131 = vld [vmem:[#allocation11 + $0x798] sm:$0xff]
        %v1132 = vld [vmem:[#allocation11 + $0x7a0] sm:$0xff]
        %v1133 = vld [vmem:[#allocation11 + $0x7a8] sm:$0xff]
        %v1134 = vld [vmem:[#allocation11 + $0x7b0] sm:$0xff]
        %v1135 = vld [vmem:[#allocation11 + $0x7b8] sm:$0xff]
        %v1136 = vld [vmem:[#allocation11 + $0x7c0] sm:$0xff]
        %v1137 = vld [vmem:[#allocation11 + $0x7c8] sm:$0xff]
        %v1138 = vld [vmem:[#allocation11 + $0x7d0] sm:$0xff]
        %v1139 = vld [vmem:[#allocation11 + $0x7d8] sm:$0xff]
        %v1140 = vld [vmem:[#allocation11 + $0x7e0] sm:$0xff]
        %v1141 = vld [vmem:[#allocation11 + $0x7e8] sm:$0xff]
        %v1142 = vld [vmem:[#allocation11 + $0x7f0] sm:$0xff]
        %v1143 = vld [vmem:[#allocation11 + $0x7f8] sm:$0xff]
        %v1144 = vld [vmem:[#allocation11 + $0x800] sm:$0xff]
        %v1145 = vld [vmem:[#allocation11 + $0x808] sm:$0xff]
        %v1146 = vld [vmem:[#allocation11 + $0x810] sm:$0xff]
        %v1147 = vld [vmem:[#allocation11 + $0x818] sm:$0xff]
        %v1148 = vld [vmem:[#allocation11 + $0x820] sm:$0xff]
        %v1149 = vld [vmem:[#allocation11 + $0x828] sm:$0xff]
        %v1150 = vld [vmem:[#allocation11 + $0x830] sm:$0xff]
        %v1151 = vld [vmem:[#allocation11 + $0x838] sm:$0xff]
        %v1152 = vld [vmem:[#allocation11 + $0x840] sm:$0xff]
        %v1153 = vld [vmem:[#allocation11 + $0x848] sm:$0xff]
        %v1154 = vld [vmem:[#allocation11 + $0x850] sm:$0xff]
        %v1155 = vld [vmem:[#allocation11 + $0x858] sm:$0xff]
        %v1156 = vld [vmem:[#allocation11 + $0x860] sm:$0xff]
        %v1157 = vld [vmem:[#allocation11 + $0x868] sm:$0xff]
        %v1158 = vld [vmem:[#allocation11 + $0x870] sm:$0xff]
        %v1159 = vld [vmem:[#allocation11 + $0x878] sm:$0xff]
        %v1160 = vld [vmem:[#allocation11 + $0x880] sm:$0xff]
        %v1161 = vld [vmem:[#allocation11 + $0x888] sm:$0xff]
        %v1162 = vld [vmem:[#allocation11 + $0x890] sm:$0xff]
        %v1163 = vld [vmem:[#allocation11 + $0x898] sm:$0xff]
        %v1164 = vld [vmem:[#allocation11 + $0x8a0] sm:$0xff]
        %v1165 = vld [vmem:[#allocation11 + $0x8a8] sm:$0xff]
        %v1166 = vld [vmem:[#allocation11 + $0x8b0] sm:$0xff]
        %v1167 = vld [vmem:[#allocation11 + $0x8b8] sm:$0xff]
        %v1168 = vld [vmem:[#allocation11 + $0x8c0] sm:$0xff]
        %v1169 = vld [vmem:[#allocation11 + $0x8c8] sm:$0xff]
        %v1170 = vld [vmem:[#allocation11 + $0x8d0] sm:$0xff]
        %v1171 = vld [vmem:[#allocation11 + $0x8d8] sm:$0xff]
        %v1172 = vld [vmem:[#allocation11 + $0x8e0] sm:$0xff]
        %v1173 = vld [vmem:[#allocation11 + $0x8e8] sm:$0xff]
        %v1174 = vld [vmem:[#allocation11 + $0x8f0] sm:$0xff]
        %v1175 = vld [vmem:[#allocation11 + $0x8f8] sm:$0xff]
        %v1176 = vld [vmem:[#allocation11 + $0x900] sm:$0xff]
        %v1177 = vld [vmem:[#allocation11 + $0x908] sm:$0xff]
        %v1178 = vld [vmem:[#allocation11 + $0x910] sm:$0xff]
        %v1179 = vld [vmem:[#allocation11 + $0x918] sm:$0xff]
        %v1180 = vld [vmem:[#allocation11 + $0x920] sm:$0xff]
        %v1181 = vld [vmem:[#allocation11 + $0x928] sm:$0xff]
        %v1182 = vld [vmem:[#allocation11 + $0x930] sm:$0xff]
        %v1183 = vld [vmem:[#allocation11 + $0x938] sm:$0xff]
        %v1184 = vld [vmem:[#allocation11 + $0x940] sm:$0xff]
        %v1185 = vld [vmem:[#allocation11 + $0x948] sm:$0xff]
        %v1186 = vld [vmem:[#allocation11 + $0x950] sm:$0xff]
        %v1187 = vld [vmem:[#allocation11 + $0x958] sm:$0xff]
        %v1188 = vld [vmem:[#allocation11 + $0x960] sm:$0xff]
        %v1189 = vld [vmem:[#allocation11 + $0x968] sm:$0xff]
        %v1190 = vld [vmem:[#allocation11 + $0x970] sm:$0xff]
        %v1191 = vld [vmem:[#allocation11 + $0x978] sm:$0xff]
        %v1192 = vld [vmem:[#allocation11 + $0x980] sm:$0xff]
        %v1193 = vld [vmem:[#allocation11 + $0x988] sm:$0xff]
        %v1194 = vld [vmem:[#allocation11 + $0x990] sm:$0xff]
        %v1195 = vld [vmem:[#allocation11 + $0x998] sm:$0xff]
        %v1196 = vld [vmem:[#allocation11 + $0x9a0] sm:$0xff]
        %v1197 = vld [vmem:[#allocation11 + $0x9a8] sm:$0xff]
        %v1198 = vld [vmem:[#allocation11 + $0x9b0] sm:$0xff]
        %v1199 = vld [vmem:[#allocation11 + $0x9b8] sm:$0xff]
        %v1200 = vld [vmem:[#allocation11 + $0x9c0] sm:$0xff]
        %v1201 = vld [vmem:[#allocation11 + $0x9c8] sm:$0xff]
        %v1202 = vld [vmem:[#allocation11 + $0x9d0] sm:$0xff]
        %v1203 = vld [vmem:[#allocation11 + $0x9d8] sm:$0xff]
        %v1204 = vld [vmem:[#allocation11 + $0x9e0] sm:$0xff]
        %v1205 = vld [vmem:[#allocation11 + $0x9e8] sm:$0xff]
        %v1206 = vld [vmem:[#allocation11 + $0x9f0] sm:$0xff]
        %v1207 = vld [vmem:[#allocation11 + $0x9f8] sm:$0xff]
        %v1208 = vld [vmem:[#allocation11 + $0xa00] sm:$0xff]
        %v1209 = vld [vmem:[#allocation11 + $0xa08] sm:$0xff]
        %v1210 = vld [vmem:[#allocation11 + $0xa10] sm:$0xff]
        %v1211 = vld [vmem:[#allocation11 + $0xa18] sm:$0xff]
        %v1212 = vld [vmem:[#allocation11 + $0xa20] sm:$0xff]
        %v1213 = vld [vmem:[#allocation11 + $0xa28] sm:$0xff]
        %v1214 = vld [vmem:[#allocation11 + $0xa30] sm:$0xff]
        %v1215 = vld [vmem:[#allocation11 + $0xa38] sm:$0xff]
        %v1216 = vld [vmem:[#allocation11 + $0xa40] sm:$0xff]
        %v1217 = vld [vmem:[#allocation11 + $0xa48] sm:$0xff]
        %v1218 = vld [vmem:[#allocation11 + $0xa50] sm:$0xff]
        %v1219 = vld [vmem:[#allocation11 + $0xa58] sm:$0xff]
        %v1220 = vld [vmem:[#allocation11 + $0xa60] sm:$0xff]
        %v1221 = vld [vmem:[#allocation11 + $0xa68] sm:$0xff]
        %v1222 = vld [vmem:[#allocation11 + $0xa70] sm:$0xff]
        %v1223 = vld [vmem:[#allocation11 + $0xa78] sm:$0xff]
        %v1224 = vld [vmem:[#allocation11 + $0xa80] sm:$0xff]
        %v1225 = vld [vmem:[#allocation11 + $0xa88] sm:$0xff]
        %v1226 = vld [vmem:[#allocation11 + $0xa90] sm:$0xff]
        %v1227 = vld [vmem:[#allocation11 + $0xa98] sm:$0xff]
        %v1228 = vld [vmem:[#allocation11 + $0xaa0] sm:$0xff]
        %v1229 = vld [vmem:[#allocation11 + $0xaa8] sm:$0xff]
        %v1230 = vld [vmem:[#allocation11 + $0xab0] sm:$0xff]
        %v1231 = vld [vmem:[#allocation11 + $0xab8] sm:$0xff]
        %v1232 = vld [vmem:[#allocation11 + $0xac0] sm:$0xff]
        %v1233 = vld [vmem:[#allocation11 + $0xac8] sm:$0xff]
        %v1234 = vld [vmem:[#allocation11 + $0xad0] sm:$0xff]
        %v1235 = vld [vmem:[#allocation11 + $0xad8] sm:$0xff]
        %v1236 = vld [vmem:[#allocation11 + $0xae0] sm:$0xff]
        %v1237 = vld [vmem:[#allocation11 + $0xae8] sm:$0xff]
        %v1238 = vld [vmem:[#allocation11 + $0xaf0] sm:$0xff]
        %v1239 = vld [vmem:[#allocation11 + $0xaf8] sm:$0xff]
        %v1240 = vld [vmem:[#allocation11 + $0xb00] sm:$0xff]
        %v1241 = vld [vmem:[#allocation11 + $0xb08] sm:$0xff]
        %v1242 = vld [vmem:[#allocation11 + $0xb10] sm:$0xff]
        %v1243 = vld [vmem:[#allocation11 + $0xb18] sm:$0xff]
        %v1244 = vld [vmem:[#allocation11 + $0xb20] sm:$0xff]
        %v1245 = vld [vmem:[#allocation11 + $0xb28] sm:$0xff]
        %v1246 = vld [vmem:[#allocation11 + $0xb30] sm:$0xff]
        %v1247 = vld [vmem:[#allocation11 + $0xb38] sm:$0xff]
        %v1248 = vld [vmem:[#allocation11 + $0xb40] sm:$0xff]
        %v1249 = vld [vmem:[#allocation11 + $0xb48] sm:$0xff]
        %v1250 = vld [vmem:[#allocation11 + $0xb50] sm:$0xff]
        %v1251 = vld [vmem:[#allocation11 + $0xb58] sm:$0xff]
        %v1252 = vld [vmem:[#allocation11 + $0xb60] sm:$0xff]
        %v1253 = vld [vmem:[#allocation11 + $0xb68] sm:$0xff]
        %v1254 = vld [vmem:[#allocation11 + $0xb70] sm:$0xff]
        %v1255 = vld [vmem:[#allocation11 + $0xb78] sm:$0xff]
        %v1256 = vld [vmem:[#allocation11 + $0xb80] sm:$0xff]
        %v1257 = vld [vmem:[#allocation11 + $0xb88] sm:$0xff]
        %v1258 = vld [vmem:[#allocation11 + $0xb90] sm:$0xff]
        %v1259 = vld [vmem:[#allocation11 + $0xb98] sm:$0xff]
        %v1260 = vld [vmem:[#allocation11 + $0xba0] sm:$0xff]
        %v1261 = vld [vmem:[#allocation11 + $0xba8] sm:$0xff]
        %v1262 = vld [vmem:[#allocation11 + $0xbb0] sm:$0xff]
        %v1263 = vld [vmem:[#allocation11 + $0xbb8] sm:$0xff]
        %v1264 = vld [vmem:[#allocation11 + $0xbc0] sm:$0xff]
        %v1265 = vld [vmem:[#allocation11 + $0xbc8] sm:$0xff]
        %v1266 = vld [vmem:[#allocation11 + $0xbd0] sm:$0xff]
        %v1267 = vld [vmem:[#allocation11 + $0xbd8] sm:$0xff]
        %v1268 = vld [vmem:[#allocation11 + $0xbe0] sm:$0xff]
        %v1269 = vld [vmem:[#allocation11 + $0xbe8] sm:$0xff]
        %v1270 = vld [vmem:[#allocation11 + $0xbf0] sm:$0xff]
        %v1271 = vld [vmem:[#allocation11 + $0xbf8] sm:$0xff]
        %v1272 = vld [vmem:[#allocation11 + $0xc00] sm:$0xff]
        %v1273 = vld [vmem:[#allocation11 + $0xc08] sm:$0xff]
        %v1274 = vld [vmem:[#allocation11 + $0xc10] sm:$0xff]
        %v1275 = vld [vmem:[#allocation11 + $0xc18] sm:$0xff]
        %v1276 = vld [vmem:[#allocation11 + $0xc20] sm:$0xff]
        %v1277 = vld [vmem:[#allocation11 + $0xc28] sm:$0xff]
        %v1278 = vld [vmem:[#allocation11 + $0xc30] sm:$0xff]
        %v1279 = vld [vmem:[#allocation11 + $0xc38] sm:$0xff]
        %v1280 = vld [vmem:[#allocation11 + $0xc40] sm:$0xff]
        %v1281 = vld [vmem:[#allocation11 + $0xc48] sm:$0xff]
        %v1282 = vld [vmem:[#allocation11 + $0xc50] sm:$0xff]
        %v1283 = vld [vmem:[#allocation11 + $0xc58] sm:$0xff]
        %v1284 = vld [vmem:[#allocation11 + $0xc60] sm:$0xff]
        %v1285 = vld [vmem:[#allocation11 + $0xc68] sm:$0xff]
        %v1286 = vld [vmem:[#allocation11 + $0xc70] sm:$0xff]
        %v1287 = vld [vmem:[#allocation11 + $0xc78] sm:$0xff]
        %v1288 = vld [vmem:[#allocation11 + $0xc80] sm:$0xff]
        %v1289 = vld [vmem:[#allocation11 + $0xc88] sm:$0xff]
        %v1290 = vld [vmem:[#allocation11 + $0xc90] sm:$0xff]
        %v1291 = vld [vmem:[#allocation11 + $0xc98] sm:$0xff]
        %v1292 = vld [vmem:[#allocation11 + $0xca0] sm:$0xff]
        %v1293 = vld [vmem:[#allocation11 + $0xca8] sm:$0xff]
        %v1294 = vld [vmem:[#allocation11 + $0xcb0] sm:$0xff]
        %v1295 = vld [vmem:[#allocation11 + $0xcb8] sm:$0xff]
        %v1296 = vld [vmem:[#allocation11 + $0xcc0] sm:$0xff]
        %v1297 = vld [vmem:[#allocation11 + $0xcc8] sm:$0xff]
        %v1298 = vld [vmem:[#allocation11 + $0xcd0] sm:$0xff]
        %v1299 = vld [vmem:[#allocation11 + $0xcd8] sm:$0xff]
        %v1300 = vld [vmem:[#allocation11 + $0xce0] sm:$0xff]
        %v1301 = vld [vmem:[#allocation11 + $0xce8] sm:$0xff]
        %v1302 = vld [vmem:[#allocation11 + $0xcf0] sm:$0xff]
        %v1303 = vld [vmem:[#allocation11 + $0xcf8] sm:$0xff]
        %v1304 = vld [vmem:[#allocation11 + $0xd00] sm:$0xff]
        %v1305 = vld [vmem:[#allocation11 + $0xd08] sm:$0xff]
        %v1306 = vld [vmem:[#allocation11 + $0xd10] sm:$0xff]
        %v1307 = vld [vmem:[#allocation11 + $0xd18] sm:$0xff]
        %v1308 = vld [vmem:[#allocation11 + $0xd20] sm:$0xff]
        %v1309 = vld [vmem:[#allocation11 + $0xd28] sm:$0xff]
        %v1310 = vld [vmem:[#allocation11 + $0xd30] sm:$0xff]
        %v1311 = vld [vmem:[#allocation11 + $0xd38] sm:$0xff]
        %v1312 = vld [vmem:[#allocation11 + $0xd40] sm:$0xff]
        %v1313 = vld [vmem:[#allocation11 + $0xd48] sm:$0xff]
        %v1314 = vld [vmem:[#allocation11 + $0xd50] sm:$0xff]
        %v1315 = vld [vmem:[#allocation11 + $0xd58] sm:$0xff]
        %v1316 = vld [vmem:[#allocation11 + $0xd60] sm:$0xff]
        %v1317 = vld [vmem:[#allocation11 + $0xd68] sm:$0xff]
        %v1318 = vld [vmem:[#allocation11 + $0xd70] sm:$0xff]
        %v1319 = vld [vmem:[#allocation11 + $0xd78] sm:$0xff]
        %v1320 = vld [vmem:[#allocation11 + $0xd80] sm:$0xff]
        %v1321 = vld [vmem:[#allocation11 + $0xd88] sm:$0xff]
        %v1322 = vld [vmem:[#allocation11 + $0xd90] sm:$0xff]
        %v1323 = vld [vmem:[#allocation11 + $0xd98] sm:$0xff]
        %v1324 = vld [vmem:[#allocation11 + $0xda0] sm:$0xff]
        %v1325 = vld [vmem:[#allocation11 + $0xda8] sm:$0xff]
        %v1326 = vld [vmem:[#allocation11 + $0xdb0] sm:$0xff]
        %v1327 = vld [vmem:[#allocation11 + $0xdb8] sm:$0xff]
        %v1328 = vld [vmem:[#allocation11 + $0xdc0] sm:$0xff]
        %v1329 = vld [vmem:[#allocation11 + $0xdc8] sm:$0xff]
        %v1330 = vld [vmem:[#allocation11 + $0xdd0] sm:$0xff]
        %v1331 = vld [vmem:[#allocation11 + $0xdd8] sm:$0xff]
        %v1332 = vld [vmem:[#allocation11 + $0xde0] sm:$0xff]
        %v1333 = vld [vmem:[#allocation11 + $0xde8] sm:$0xff]
        %v1334 = vld [vmem:[#allocation11 + $0xdf0] sm:$0xff]
        %v1335 = vld [vmem:[#allocation11 + $0xdf8] sm:$0xff]
        %v1336 = vld [vmem:[#allocation11 + $0xe00] sm:$0xff]
        %v1337 = vld [vmem:[#allocation11 + $0xe08] sm:$0xff]
        %v1338 = vld [vmem:[#allocation11 + $0xe10] sm:$0xff]
        %v1339 = vld [vmem:[#allocation11 + $0xe18] sm:$0xff]
        %v1340 = vld [vmem:[#allocation11 + $0xe20] sm:$0xff]
        %v1341 = vld [vmem:[#allocation11 + $0xe28] sm:$0xff]
        %v1342 = vld [vmem:[#allocation11 + $0xe30] sm:$0xff]
        %v1343 = vld [vmem:[#allocation11 + $0xe38] sm:$0xff]
        %v1344 = vld [vmem:[#allocation11 + $0xe40] sm:$0xff]
        %v1345 = vld [vmem:[#allocation11 + $0xe48] sm:$0xff]
        %v1346 = vld [vmem:[#allocation11 + $0xe50] sm:$0xff]
        %v1347 = vld [vmem:[#allocation11 + $0xe58] sm:$0xff]
        %v1348 = vld [vmem:[#allocation11 + $0xe60] sm:$0xff]
        %v1349 = vld [vmem:[#allocation11 + $0xe68] sm:$0xff]
        %v1350 = vld [vmem:[#allocation11 + $0xe70] sm:$0xff]
        %v1351 = vld [vmem:[#allocation11 + $0xe78] sm:$0xff]
        %v1352 = vld [vmem:[#allocation11 + $0xe80] sm:$0xff]
        %v1353 = vld [vmem:[#allocation11 + $0xe88] sm:$0xff]
        %v1354 = vld [vmem:[#allocation11 + $0xe90] sm:$0xff]
        %v1355 = vld [vmem:[#allocation11 + $0xe98] sm:$0xff]
        %v1356 = vld [vmem:[#allocation11 + $0xea0] sm:$0xff]
        %v1357 = vld [vmem:[#allocation11 + $0xea8] sm:$0xff]
        %v1358 = vld [vmem:[#allocation11 + $0xeb0] sm:$0xff]
        %v1359 = vld [vmem:[#allocation11 + $0xeb8] sm:$0xff]
        %v1360 = vld [vmem:[#allocation11 + $0xec0] sm:$0xff]
        %v1361 = vld [vmem:[#allocation11 + $0xec8] sm:$0xff]
        %v1362 = vld [vmem:[#allocation11 + $0xed0] sm:$0xff]
        %v1363 = vld [vmem:[#allocation11 + $0xed8] sm:$0xff]
        %v1364 = vld [vmem:[#allocation11 + $0xee0] sm:$0xff]
        %v1365 = vld [vmem:[#allocation11 + $0xee8] sm:$0xff]
        %v1366 = vld [vmem:[#allocation11 + $0xef0] sm:$0xff]
        %v1367 = vld [vmem:[#allocation11 + $0xef8] sm:$0xff]
        %v1368 = vld [vmem:[#allocation11 + $0xf00] sm:$0xff]
        %v1369 = vld [vmem:[#allocation11 + $0xf08] sm:$0xff]
        %v1370 = vld [vmem:[#allocation11 + $0xf10] sm:$0xff]
        %v1371 = vld [vmem:[#allocation11 + $0xf18] sm:$0xff]
        %v1372 = vld [vmem:[#allocation11 + $0xf20] sm:$0xff]
        %v1373 = vld [vmem:[#allocation11 + $0xf28] sm:$0xff]
        %v1374 = vld [vmem:[#allocation11 + $0xf30] sm:$0xff]
        %v1375 = vld [vmem:[#allocation11 + $0xf38] sm:$0xff]
        %v1376 = vld [vmem:[#allocation11 + $0xf40] sm:$0xff]
        %v1377 = vld [vmem:[#allocation11 + $0xf48] sm:$0xff]
        %v1378 = vld [vmem:[#allocation11 + $0xf50] sm:$0xff]
        %v1379 = vld [vmem:[#allocation11 + $0xf58] sm:$0xff]
        %v1380 = vld [vmem:[#allocation11 + $0xf60] sm:$0xff]
        %v1381 = vld [vmem:[#allocation11 + $0xf68] sm:$0xff]
        %v1382 = vld [vmem:[#allocation11 + $0xf70] sm:$0xff]
        %v1383 = vld [vmem:[#allocation11 + $0xf78] sm:$0xff]
        %v1384 = vld [vmem:[#allocation11 + $0xf80] sm:$0xff]
        %v1385 = vld [vmem:[#allocation11 + $0xf88] sm:$0xff]
        %v1386 = vld [vmem:[#allocation11 + $0xf90] sm:$0xff]
        %v1387 = vld [vmem:[#allocation11 + $0xf98] sm:$0xff]
        %v1388 = vld [vmem:[#allocation11 + $0xfa0] sm:$0xff]
        %v1389 = vld [vmem:[#allocation11 + $0xfa8] sm:$0xff]
        %v1390 = vld [vmem:[#allocation11 + $0xfb0] sm:$0xff]
        %v1391 = vld [vmem:[#allocation11 + $0xfb8] sm:$0xff]
        %v1392 = vld [vmem:[#allocation11 + $0xfc0] sm:$0xff]
        %v1393 = vld [vmem:[#allocation11 + $0xfc8] sm:$0xff]
        %v1394 = vld [vmem:[#allocation11 + $0xfd0] sm:$0xff]
        %v1395 = vld [vmem:[#allocation11 + $0xfd8] sm:$0xff]
        %v1396 = vld [vmem:[#allocation11 + $0xfe0] sm:$0xff]
        %v1397 = vld [vmem:[#allocation11 + $0xfe8] sm:$0xff]
        %v1398 = vld [vmem:[#allocation11 + $0xff0] sm:$0xff]
        %v1399 = vld [vmem:[#allocation11 + $0xff8] sm:$0xff]
        %v1400 = vld [vmem:[#allocation13] sm:$0xff]
        %v1402 = vperm.slane %v1400, 0
        %v1403 = vperm.slane %v1400, 1
        %v1404 = vperm.slane %v1400, 2
        %v1405 = vperm.slane %v1400, 3
        %v1406 = vperm.slane %v1400, 4
        %v1407 = vperm.slane %v1400, 5
        %v1408 = vperm.slane %v1400, 6
        %v1409 = vperm.slane %v1400, 7
        %1418 = vmatpush.msra.mxu0 %v1008
        %1419 = vmatpush.msra.mxu0 %v1000
        %1420 = vmatpush.msra.mxu0 %v992
        %1421 = vmatpush.msra.mxu0 %v984
        %1422 = vmatpush.msra.mxu0 %v976
        %1423 = vmatpush.msra.mxu0 %v968
        %1424 = vmatpush.msra.mxu0 %v960
        %1425 = vmatpush.msra.mxu0 %v952
        %1426 = vmatpush.msra.mxu0 %v944
        %1427 = vmatpush.msra.mxu0 %v936
        %1428 = vmatpush.msra.mxu0 %v928
        %1429 = vmatpush.msra.mxu0 %v920
        %1430 = vmatpush.msra.mxu0 %v912
        %1431 = vmatpush.msra.mxu0 %v904
        %1432 = vmatpush.msra.mxu0 %v896
        %1433 = vmatpush.msra.mxu0 %v888
        %1434 = vmatmul.f32.gmra.mxu0 %v884
        %v1435 = vpop.f32.mrf.mxu0
        %v1436 = vadd.f32 %v1402, %v1435
        %1437 = vdwg.mxu0
        %1438 = vmatpush.msra.mxu0 %v1136
        %1439 = vmatpush.msra.mxu0 %v1128
        %1440 = vmatpush.msra.mxu0 %v1120
        %1441 = vmatpush.msra.mxu0 %v1112
        %1442 = vmatpush.msra.mxu0 %v1104
        %1443 = vmatpush.msra.mxu0 %v1096
        %1444 = vmatpush.msra.mxu0 %v1088
        %1445 = vmatpush.msra.mxu0 %v1080
        %1446 = vmatpush.msra.mxu0 %v1072
        %1447 = vmatpush.msra.mxu0 %v1064
        %1448 = vmatpush.msra.mxu0 %v1056
        %1449 = vmatpush.msra.mxu0 %v1048
        %1450 = vmatpush.msra.mxu0 %v1040
        %1451 = vmatpush.msra.mxu0 %v1032
        %1452 = vmatpush.msra.mxu0 %v1024
        %1453 = vmatpush.msra.mxu0 %v1016
        %1454 = vmatmul.f32.gmra.mxu0 %v885
        %v1455 = vpop.f32.mrf.mxu0
        %v1456 = vadd.f32 %v1436, %v1455
        %1457 = vdwg.mxu0
        %1458 = vmatpush.msra.mxu0 %v1264
        %1459 = vmatpush.msra.mxu0 %v1256
        %1460 = vmatpush.msra.mxu0 %v1248
        %1461 = vmatpush.msra.mxu0 %v1240
        %1462 = vmatpush.msra.mxu0 %v1232
        %1463 = vmatpush.msra.mxu0 %v1224
        %1464 = vmatpush.msra.mxu0 %v1216
        %1465 = vmatpush.msra.mxu0 %v1208
        %1466 = vmatpush.msra.mxu0 %v1200
        %1467 = vmatpush.msra.mxu0 %v1192
        %1468 = vmatpush.msra.mxu0 %v1184
        %1469 = vmatpush.msra.mxu0 %v1176
        %1470 = vmatpush.msra.mxu0 %v1168
        %1471 = vmatpush.msra.mxu0 %v1160
        %1472 = vmatpush.msra.mxu0 %v1152
        %1473 = vmatpush.msra.mxu0 %v1144
        %1474 = vmatmul.f32.gmra.mxu0 %v886
        %v1475 = vpop.f32.mrf.mxu0
        %v1476 = vadd.f32 %v1456, %v1475
        %1477 = vdwg.mxu0
        %1478 = vmatpush.msra.mxu0 %v1392
        %1479 = vmatpush.msra.mxu0 %v1384
        %1480 = vmatpush.msra.mxu0 %v1376
        %1481 = vmatpush.msra.mxu0 %v1368
        %1482 = vmatpush.msra.mxu0 %v1360
        %1483 = vmatpush.msra.mxu0 %v1352
        %1484 = vmatpush.msra.mxu0 %v1344
        %1485 = vmatpush.msra.mxu0 %v1336
        %1486 = vmatpush.msra.mxu0 %v1328
        %1487 = vmatpush.msra.mxu0 %v1320
        %1488 = vmatpush.msra.mxu0 %v1312
        %1489 = vmatpush.msra.mxu0 %v1304
        %1490 = vmatpush.msra.mxu0 %v1296
        %1491 = vmatpush.msra.mxu0 %v1288
        %1492 = vmatpush.msra.mxu0 %v1280
        %1493 = vmatpush.msra.mxu0 %v1272
        %1494 = vmatmul.f32.gmra.mxu0 %v887
        %v1495 = vpop.f32.mrf.mxu0
        %v1496 = vadd.f32 %v1476, %v1495
        %1497 = vdwg.mxu0
        %1498 = vmatpush.msra.mxu0 %v1009
        %1499 = vmatpush.msra.mxu0 %v1001
        %1500 = vmatpush.msra.mxu0 %v993
        %1501 = vmatpush.msra.mxu0 %v985
        %1502 = vmatpush.msra.mxu0 %v977
        %1503 = vmatpush.msra.mxu0 %v969
        %1504 = vmatpush.msra.mxu0 %v961
        %1505 = vmatpush.msra.mxu0 %v953
        %1506 = vmatpush.msra.mxu0 %v945
        %1507 = vmatpush.msra.mxu0 %v937
        %1508 = vmatpush.msra.mxu0 %v929
        %1509 = vmatpush.msra.mxu0 %v921
        %1510 = vmatpush.msra.mxu0 %v913
        %1511 = vmatpush.msra.mxu0 %v905
        %1512 = vmatpush.msra.mxu0 %v897
        %1513 = vmatpush.msra.mxu0 %v889
        %1514 = vmatmul.f32.gmra.mxu0 %v884
        %v1515 = vpop.f32.mrf.mxu0
        %v1516 = vadd.f32 %v1403, %v1515
        %1517 = vdwg.mxu0
        %1518 = vmatpush.msra.mxu0 %v1137
        %1519 = vmatpush.msra.mxu0 %v1129
        %1520 = vmatpush.msra.mxu0 %v1121
        %1521 = vmatpush.msra.mxu0 %v1113
        %1522 = vmatpush.msra.mxu0 %v1105
        %1523 = vmatpush.msra.mxu0 %v1097
        %1524 = vmatpush.msra.mxu0 %v1089
        %1525 = vmatpush.msra.mxu0 %v1081
        %1526 = vmatpush.msra.mxu0 %v1073
        %1527 = vmatpush.msra.mxu0 %v1065
        %1528 = vmatpush.msra.mxu0 %v1057
        %1529 = vmatpush.msra.mxu0 %v1049
        %1530 = vmatpush.msra.mxu0 %v1041
        %1531 = vmatpush.msra.mxu0 %v1033
        %1532 = vmatpush.msra.mxu0 %v1025
        %1533 = vmatpush.msra.mxu0 %v1017
        %1534 = vmatmul.f32.gmra.mxu0 %v885
        %v1535 = vpop.f32.mrf.mxu0
        %v1536 = vadd.f32 %v1516, %v1535
        %1537 = vdwg.mxu0
        %1538 = vmatpush.msra.mxu0 %v1265
        %1539 = vmatpush.msra.mxu0 %v1257
        %1540 = vmatpush.msra.mxu0 %v1249
        %1541 = vmatpush.msra.mxu0 %v1241
        %1542 = vmatpush.msra.mxu0 %v1233
        %1543 = vmatpush.msra.mxu0 %v1225
        %1544 = vmatpush.msra.mxu0 %v1217
        %1545 = vmatpush.msra.mxu0 %v1209
        %1546 = vmatpush.msra.mxu0 %v1201
        %1547 = vmatpush.msra.mxu0 %v1193
        %1548 = vmatpush.msra.mxu0 %v1185
        %1549 = vmatpush.msra.mxu0 %v1177
        %1550 = vmatpush.msra.mxu0 %v1169
        %1551 = vmatpush.msra.mxu0 %v1161
        %1552 = vmatpush.msra.mxu0 %v1153
        %1553 = vmatpush.msra.mxu0 %v1145
        %1554 = vmatmul.f32.gmra.mxu0 %v886
        %v1555 = vpop.f32.mrf.mxu0
        %v1556 = vadd.f32 %v1536, %v1555
        %1557 = vdwg.mxu0
        %1558 = vmatpush.msra.mxu0 %v1393
        %1559 = vmatpush.msra.mxu0 %v1385
        %1560 = vmatpush.msra.mxu0 %v1377
        %1561 = vmatpush.msra.mxu0 %v1369
        %1562 = vmatpush.msra.mxu0 %v1361
        %1563 = vmatpush.msra.mxu0 %v1353
        %1564 = vmatpush.msra.mxu0 %v1345
        %1565 = vmatpush.msra.mxu0 %v1337
        %1566 = vmatpush.msra.mxu0 %v1329
        %1567 = vmatpush.msra.mxu0 %v1321
        %1568 = vmatpush.msra.mxu0 %v1313
        %1569 = vmatpush.msra.mxu0 %v1305
        %1570 = vmatpush.msra.mxu0 %v1297
        %1571 = vmatpush.msra.mxu0 %v1289
        %1572 = vmatpush.msra.mxu0 %v1281
        %1573 = vmatpush.msra.mxu0 %v1273
        %1574 = vmatmul.f32.gmra.mxu0 %v887
        %v1575 = vpop.f32.mrf.mxu0
        %v1576 = vadd.f32 %v1556, %v1575
        %1577 = vdwg.mxu0
        %1578 = vmatpush.msra.mxu0 %v1010
        %1579 = vmatpush.msra.mxu0 %v1002
        %1580 = vmatpush.msra.mxu0 %v994
        %1581 = vmatpush.msra.mxu0 %v986
        %1582 = vmatpush.msra.mxu0 %v978
        %1583 = vmatpush.msra.mxu0 %v970
        %1584 = vmatpush.msra.mxu0 %v962
        %1585 = vmatpush.msra.mxu0 %v954
        %1586 = vmatpush.msra.mxu0 %v946
        %1587 = vmatpush.msra.mxu0 %v938
        %1588 = vmatpush.msra.mxu0 %v930
        %1589 = vmatpush.msra.mxu0 %v922
        %1590 = vmatpush.msra.mxu0 %v914
        %1591 = vmatpush.msra.mxu0 %v906
        %1592 = vmatpush.msra.mxu0 %v898
        %1593 = vmatpush.msra.mxu0 %v890
        %1594 = vmatmul.f32.gmra.mxu0 %v884
        %v1595 = vpop.f32.mrf.mxu0
        %v1596 = vadd.f32 %v1404, %v1595
        %1597 = vdwg.mxu0
        %1598 = vmatpush.msra.mxu0 %v1138
        %1599 = vmatpush.msra.mxu0 %v1130
        %1600 = vmatpush.msra.mxu0 %v1122
        %1601 = vmatpush.msra.mxu0 %v1114
        %1602 = vmatpush.msra.mxu0 %v1106
        %1603 = vmatpush.msra.mxu0 %v1098
        %1604 = vmatpush.msra.mxu0 %v1090
        %1605 = vmatpush.msra.mxu0 %v1082
        %1606 = vmatpush.msra.mxu0 %v1074
        %1607 = vmatpush.msra.mxu0 %v1066
        %1608 = vmatpush.msra.mxu0 %v1058
        %1609 = vmatpush.msra.mxu0 %v1050
        %1610 = vmatpush.msra.mxu0 %v1042
        %1611 = vmatpush.msra.mxu0 %v1034
        %1612 = vmatpush.msra.mxu0 %v1026
        %1613 = vmatpush.msra.mxu0 %v1018
        %1614 = vmatmul.f32.gmra.mxu0 %v885
        %v1615 = vpop.f32.mrf.mxu0
        %v1616 = vadd.f32 %v1596, %v1615
        %1617 = vdwg.mxu0
        %1618 = vmatpush.msra.mxu0 %v1266
        %1619 = vmatpush.msra.mxu0 %v1258
        %1620 = vmatpush.msra.mxu0 %v1250
        %1621 = vmatpush.msra.mxu0 %v1242
        %1622 = vmatpush.msra.mxu0 %v1234
        %1623 = vmatpush.msra.mxu0 %v1226
        %1624 = vmatpush.msra.mxu0 %v1218
        %1625 = vmatpush.msra.mxu0 %v1210
        %1626 = vmatpush.msra.mxu0 %v1202
        %1627 = vmatpush.msra.mxu0 %v1194
        %1628 = vmatpush.msra.mxu0 %v1186
        %1629 = vmatpush.msra.mxu0 %v1178
        %1630 = vmatpush.msra.mxu0 %v1170
        %1631 = vmatpush.msra.mxu0 %v1162
        %1632 = vmatpush.msra.mxu0 %v1154
        %1633 = vmatpush.msra.mxu0 %v1146
        %1634 = vmatmul.f32.gmra.mxu0 %v886
        %v1635 = vpop.f32.mrf.mxu0
        %v1636 = vadd.f32 %v1616, %v1635
        %1637 = vdwg.mxu0
        %1638 = vmatpush.msra.mxu0 %v1394
        %1639 = vmatpush.msra.mxu0 %v1386
        %1640 = vmatpush.msra.mxu0 %v1378
        %1641 = vmatpush.msra.mxu0 %v1370
        %1642 = vmatpush.msra.mxu0 %v1362
        %1643 = vmatpush.msra.mxu0 %v1354
        %1644 = vmatpush.msra.mxu0 %v1346
        %1645 = vmatpush.msra.mxu0 %v1338
        %1646 = vmatpush.msra.mxu0 %v1330
        %1647 = vmatpush.msra.mxu0 %v1322
        %1648 = vmatpush.msra.mxu0 %v1314
        %1649 = vmatpush.msra.mxu0 %v1306
        %1650 = vmatpush.msra.mxu0 %v1298
        %1651 = vmatpush.msra.mxu0 %v1290
        %1652 = vmatpush.msra.mxu0 %v1282
        %1653 = vmatpush.msra.mxu0 %v1274
        %1654 = vmatmul.f32.gmra.mxu0 %v887
        %v1655 = vpop.f32.mrf.mxu0
        %v1656 = vadd.f32 %v1636, %v1655
        %1657 = vdwg.mxu0
        %1658 = vmatpush.msra.mxu0 %v1011
        %1659 = vmatpush.msra.mxu0 %v1003
        %1660 = vmatpush.msra.mxu0 %v995
        %1661 = vmatpush.msra.mxu0 %v987
        %1662 = vmatpush.msra.mxu0 %v979
        %1663 = vmatpush.msra.mxu0 %v971
        %1664 = vmatpush.msra.mxu0 %v963
        %1665 = vmatpush.msra.mxu0 %v955
        %1666 = vmatpush.msra.mxu0 %v947
        %1667 = vmatpush.msra.mxu0 %v939
        %1668 = vmatpush.msra.mxu0 %v931
        %1669 = vmatpush.msra.mxu0 %v923
        %1670 = vmatpush.msra.mxu0 %v915
        %1671 = vmatpush.msra.mxu0 %v907
        %1672 = vmatpush.msra.mxu0 %v899
        %1673 = vmatpush.msra.mxu0 %v891
        %1674 = vmatmul.f32.gmra.mxu0 %v884
        %v1675 = vpop.f32.mrf.mxu0
        %v1676 = vadd.f32 %v1405, %v1675
        %1677 = vdwg.mxu0
        %1678 = vmatpush.msra.mxu0 %v1139
        %1679 = vmatpush.msra.mxu0 %v1131
        %1680 = vmatpush.msra.mxu0 %v1123
        %1681 = vmatpush.msra.mxu0 %v1115
        %1682 = vmatpush.msra.mxu0 %v1107
        %1683 = vmatpush.msra.mxu0 %v1099
        %1684 = vmatpush.msra.mxu0 %v1091
        %1685 = vmatpush.msra.mxu0 %v1083
        %1686 = vmatpush.msra.mxu0 %v1075
        %1687 = vmatpush.msra.mxu0 %v1067
        %1688 = vmatpush.msra.mxu0 %v1059
        %1689 = vmatpush.msra.mxu0 %v1051
        %1690 = vmatpush.msra.mxu0 %v1043
        %1691 = vmatpush.msra.mxu0 %v1035
        %1692 = vmatpush.msra.mxu0 %v1027
        %1693 = vmatpush.msra.mxu0 %v1019
        %1694 = vmatmul.f32.gmra.mxu0 %v885
        %v1695 = vpop.f32.mrf.mxu0
        %v1696 = vadd.f32 %v1676, %v1695
        %1697 = vdwg.mxu0
        %1698 = vmatpush.msra.mxu0 %v1267
        %1699 = vmatpush.msra.mxu0 %v1259
        %1700 = vmatpush.msra.mxu0 %v1251
        %1701 = vmatpush.msra.mxu0 %v1243
        %1702 = vmatpush.msra.mxu0 %v1235
        %1703 = vmatpush.msra.mxu0 %v1227
        %1704 = vmatpush.msra.mxu0 %v1219
        %1705 = vmatpush.msra.mxu0 %v1211
        %1706 = vmatpush.msra.mxu0 %v1203
        %1707 = vmatpush.msra.mxu0 %v1195
        %1708 = vmatpush.msra.mxu0 %v1187
        %1709 = vmatpush.msra.mxu0 %v1179
        %1710 = vmatpush.msra.mxu0 %v1171
        %1711 = vmatpush.msra.mxu0 %v1163
        %1712 = vmatpush.msra.mxu0 %v1155
        %1713 = vmatpush.msra.mxu0 %v1147
        %1714 = vmatmul.f32.gmra.mxu0 %v886
        %v1715 = vpop.f32.mrf.mxu0
        %v1716 = vadd.f32 %v1696, %v1715
        %1717 = vdwg.mxu0
        %1718 = vmatpush.msra.mxu0 %v1395
        %1719 = vmatpush.msra.mxu0 %v1387
        %1720 = vmatpush.msra.mxu0 %v1379
        %1721 = vmatpush.msra.mxu0 %v1371
        %1722 = vmatpush.msra.mxu0 %v1363
        %1723 = vmatpush.msra.mxu0 %v1355
        %1724 = vmatpush.msra.mxu0 %v1347
        %1725 = vmatpush.msra.mxu0 %v1339
        %1726 = vmatpush.msra.mxu0 %v1331
        %1727 = vmatpush.msra.mxu0 %v1323
        %1728 = vmatpush.msra.mxu0 %v1315
        %1729 = vmatpush.msra.mxu0 %v1307
        %1730 = vmatpush.msra.mxu0 %v1299
        %1731 = vmatpush.msra.mxu0 %v1291
        %1732 = vmatpush.msra.mxu0 %v1283
        %1733 = vmatpush.msra.mxu0 %v1275
        %1734 = vmatmul.f32.gmra.mxu0 %v887
        %v1735 = vpop.f32.mrf.mxu0
        %v1736 = vadd.f32 %v1716, %v1735
        %1737 = vdwg.mxu0
        %1738 = vmatpush.msra.mxu0 %v1012
        %1739 = vmatpush.msra.mxu0 %v1004
        %1740 = vmatpush.msra.mxu0 %v996
        %1741 = vmatpush.msra.mxu0 %v988
        %1742 = vmatpush.msra.mxu0 %v980
        %1743 = vmatpush.msra.mxu0 %v972
        %1744 = vmatpush.msra.mxu0 %v964
        %1745 = vmatpush.msra.mxu0 %v956
        %1746 = vmatpush.msra.mxu0 %v948
        %1747 = vmatpush.msra.mxu0 %v940
        %1748 = vmatpush.msra.mxu0 %v932
        %1749 = vmatpush.msra.mxu0 %v924
        %1750 = vmatpush.msra.mxu0 %v916
        %1751 = vmatpush.msra.mxu0 %v908
        %1752 = vmatpush.msra.mxu0 %v900
        %1753 = vmatpush.msra.mxu0 %v892
        %1754 = vmatmul.f32.gmra.mxu0 %v884
        %v1755 = vpop.f32.mrf.mxu0
        %v1756 = vadd.f32 %v1406, %v1755
        %1757 = vdwg.mxu0
        %1758 = vmatpush.msra.mxu0 %v1140
        %1759 = vmatpush.msra.mxu0 %v1132
        %1760 = vmatpush.msra.mxu0 %v1124
        %1761 = vmatpush.msra.mxu0 %v1116
        %1762 = vmatpush.msra.mxu0 %v1108
        %1763 = vmatpush.msra.mxu0 %v1100
        %1764 = vmatpush.msra.mxu0 %v1092
        %1765 = vmatpush.msra.mxu0 %v1084
        %1766 = vmatpush.msra.mxu0 %v1076
        %1767 = vmatpush.msra.mxu0 %v1068
        %1768 = vmatpush.msra.mxu0 %v1060
        %1769 = vmatpush.msra.mxu0 %v1052
        %1770 = vmatpush.msra.mxu0 %v1044
        %1771 = vmatpush.msra.mxu0 %v1036
        %1772 = vmatpush.msra.mxu0 %v1028
        %1773 = vmatpush.msra.mxu0 %v1020
        %1774 = vmatmul.f32.gmra.mxu0 %v885
        %v1775 = vpop.f32.mrf.mxu0
        %v1776 = vadd.f32 %v1756, %v1775
        %1777 = vdwg.mxu0
        %1778 = vmatpush.msra.mxu0 %v1268
        %1779 = vmatpush.msra.mxu0 %v1260
        %1780 = vmatpush.msra.mxu0 %v1252
        %1781 = vmatpush.msra.mxu0 %v1244
        %1782 = vmatpush.msra.mxu0 %v1236
        %1783 = vmatpush.msra.mxu0 %v1228
        %1784 = vmatpush.msra.mxu0 %v1220
        %1785 = vmatpush.msra.mxu0 %v1212
        %1786 = vmatpush.msra.mxu0 %v1204
        %1787 = vmatpush.msra.mxu0 %v1196
        %1788 = vmatpush.msra.mxu0 %v1188
        %1789 = vmatpush.msra.mxu0 %v1180
        %1790 = vmatpush.msra.mxu0 %v1172
        %1791 = vmatpush.msra.mxu0 %v1164
        %1792 = vmatpush.msra.mxu0 %v1156
        %1793 = vmatpush.msra.mxu0 %v1148
        %1794 = vmatmul.f32.gmra.mxu0 %v886
        %v1795 = vpop.f32.mrf.mxu0
        %v1796 = vadd.f32 %v1776, %v1795
        %1797 = vdwg.mxu0
        %1798 = vmatpush.msra.mxu0 %v1396
        %1799 = vmatpush.msra.mxu0 %v1388
        %1800 = vmatpush.msra.mxu0 %v1380
        %1801 = vmatpush.msra.mxu0 %v1372
        %1802 = vmatpush.msra.mxu0 %v1364
        %1803 = vmatpush.msra.mxu0 %v1356
        %1804 = vmatpush.msra.mxu0 %v1348
        %1805 = vmatpush.msra.mxu0 %v1340
        %1806 = vmatpush.msra.mxu0 %v1332
        %1807 = vmatpush.msra.mxu0 %v1324
        %1808 = vmatpush.msra.mxu0 %v1316
        %1809 = vmatpush.msra.mxu0 %v1308
        %1810 = vmatpush.msra.mxu0 %v1300
        %1811 = vmatpush.msra.mxu0 %v1292
        %1812 = vmatpush.msra.mxu0 %v1284
        %1813 = vmatpush.msra.mxu0 %v1276
        %1814 = vmatmul.f32.gmra.mxu0 %v887
        %v1815 = vpop.f32.mrf.mxu0
        %v1816 = vadd.f32 %v1796, %v1815
        %1817 = vdwg.mxu0
        %1818 = vmatpush.msra.mxu0 %v1013
        %1819 = vmatpush.msra.mxu0 %v1005
        %1820 = vmatpush.msra.mxu0 %v997
        %1821 = vmatpush.msra.mxu0 %v989
        %1822 = vmatpush.msra.mxu0 %v981
        %1823 = vmatpush.msra.mxu0 %v973
        %1824 = vmatpush.msra.mxu0 %v965
        %1825 = vmatpush.msra.mxu0 %v957
        %1826 = vmatpush.msra.mxu0 %v949
        %1827 = vmatpush.msra.mxu0 %v941
        %1828 = vmatpush.msra.mxu0 %v933
        %1829 = vmatpush.msra.mxu0 %v925
        %1830 = vmatpush.msra.mxu0 %v917
        %1831 = vmatpush.msra.mxu0 %v909
        %1832 = vmatpush.msra.mxu0 %v901
        %1833 = vmatpush.msra.mxu0 %v893
        %1834 = vmatmul.f32.gmra.mxu0 %v884
        %v1835 = vpop.f32.mrf.mxu0
        %v1836 = vadd.f32 %v1407, %v1835
        %1837 = vdwg.mxu0
        %1838 = vmatpush.msra.mxu0 %v1141
        %1839 = vmatpush.msra.mxu0 %v1133
        %1840 = vmatpush.msra.mxu0 %v1125
        %1841 = vmatpush.msra.mxu0 %v1117
        %1842 = vmatpush.msra.mxu0 %v1109
        %1843 = vmatpush.msra.mxu0 %v1101
        %1844 = vmatpush.msra.mxu0 %v1093
        %1845 = vmatpush.msra.mxu0 %v1085
        %1846 = vmatpush.msra.mxu0 %v1077
        %1847 = vmatpush.msra.mxu0 %v1069
        %1848 = vmatpush.msra.mxu0 %v1061
        %1849 = vmatpush.msra.mxu0 %v1053
        %1850 = vmatpush.msra.mxu0 %v1045
        %1851 = vmatpush.msra.mxu0 %v1037
        %1852 = vmatpush.msra.mxu0 %v1029
        %1853 = vmatpush.msra.mxu0 %v1021
        %1854 = vmatmul.f32.gmra.mxu0 %v885
        %v1855 = vpop.f32.mrf.mxu0
        %v1856 = vadd.f32 %v1836, %v1855
        %1857 = vdwg.mxu0
        %1858 = vmatpush.msra.mxu0 %v1269
        %1859 = vmatpush.msra.mxu0 %v1261
        %1860 = vmatpush.msra.mxu0 %v1253
        %1861 = vmatpush.msra.mxu0 %v1245
        %1862 = vmatpush.msra.mxu0 %v1237
        %1863 = vmatpush.msra.mxu0 %v1229
        %1864 = vmatpush.msra.mxu0 %v1221
        %1865 = vmatpush.msra.mxu0 %v1213
        %1866 = vmatpush.msra.mxu0 %v1205
        %1867 = vmatpush.msra.mxu0 %v1197
        %1868 = vmatpush.msra.mxu0 %v1189
        %1869 = vmatpush.msra.mxu0 %v1181
        %1870 = vmatpush.msra.mxu0 %v1173
        %1871 = vmatpush.msra.mxu0 %v1165
        %1872 = vmatpush.msra.mxu0 %v1157
        %1873 = vmatpush.msra.mxu0 %v1149
        %1874 = vmatmul.f32.gmra.mxu0 %v886
        %v1875 = vpop.f32.mrf.mxu0
        %v1876 = vadd.f32 %v1856, %v1875
        %1877 = vdwg.mxu0
        %1878 = vmatpush.msra.mxu0 %v1397
        %1879 = vmatpush.msra.mxu0 %v1389
        %1880 = vmatpush.msra.mxu0 %v1381
        %1881 = vmatpush.msra.mxu0 %v1373
        %1882 = vmatpush.msra.mxu0 %v1365
        %1883 = vmatpush.msra.mxu0 %v1357
        %1884 = vmatpush.msra.mxu0 %v1349
        %1885 = vmatpush.msra.mxu0 %v1341
        %1886 = vmatpush.msra.mxu0 %v1333
        %1887 = vmatpush.msra.mxu0 %v1325
        %1888 = vmatpush.msra.mxu0 %v1317
        %1889 = vmatpush.msra.mxu0 %v1309
        %1890 = vmatpush.msra.mxu0 %v1301
        %1891 = vmatpush.msra.mxu0 %v1293
        %1892 = vmatpush.msra.mxu0 %v1285
        %1893 = vmatpush.msra.mxu0 %v1277
        %1894 = vmatmul.f32.gmra.mxu0 %v887
        %v1895 = vpop.f32.mrf.mxu0
        %v1896 = vadd.f32 %v1876, %v1895
        %1897 = vdwg.mxu0
        %1898 = vmatpush.msra.mxu0 %v1014
        %1899 = vmatpush.msra.mxu0 %v1006
        %1900 = vmatpush.msra.mxu0 %v998
        %1901 = vmatpush.msra.mxu0 %v990
        %1902 = vmatpush.msra.mxu0 %v982
        %1903 = vmatpush.msra.mxu0 %v974
        %1904 = vmatpush.msra.mxu0 %v966
        %1905 = vmatpush.msra.mxu0 %v958
        %1906 = vmatpush.msra.mxu0 %v950
        %1907 = vmatpush.msra.mxu0 %v942
        %1908 = vmatpush.msra.mxu0 %v934
        %1909 = vmatpush.msra.mxu0 %v926
        %1910 = vmatpush.msra.mxu0 %v918
        %1911 = vmatpush.msra.mxu0 %v910
        %1912 = vmatpush.msra.mxu0 %v902
        %1913 = vmatpush.msra.mxu0 %v894
        %1914 = vmatmul.f32.gmra.mxu0 %v884
        %v1915 = vpop.f32.mrf.mxu0
        %v1916 = vadd.f32 %v1408, %v1915
        %1917 = vdwg.mxu0
        %1918 = vmatpush.msra.mxu0 %v1142
        %1919 = vmatpush.msra.mxu0 %v1134
        %1920 = vmatpush.msra.mxu0 %v1126
        %1921 = vmatpush.msra.mxu0 %v1118
        %1922 = vmatpush.msra.mxu0 %v1110
        %1923 = vmatpush.msra.mxu0 %v1102
        %1924 = vmatpush.msra.mxu0 %v1094
        %1925 = vmatpush.msra.mxu0 %v1086
        %1926 = vmatpush.msra.mxu0 %v1078
        %1927 = vmatpush.msra.mxu0 %v1070
        %1928 = vmatpush.msra.mxu0 %v1062
        %1929 = vmatpush.msra.mxu0 %v1054
        %1930 = vmatpush.msra.mxu0 %v1046
        %1931 = vmatpush.msra.mxu0 %v1038
        %1932 = vmatpush.msra.mxu0 %v1030
        %1933 = vmatpush.msra.mxu0 %v1022
        %1934 = vmatmul.f32.gmra.mxu0 %v885
        %v1935 = vpop.f32.mrf.mxu0
        %v1936 = vadd.f32 %v1916, %v1935
        %1937 = vdwg.mxu0
        %1938 = vmatpush.msra.mxu0 %v1270
        %1939 = vmatpush.msra.mxu0 %v1262
        %1940 = vmatpush.msra.mxu0 %v1254
        %1941 = vmatpush.msra.mxu0 %v1246
        %1942 = vmatpush.msra.mxu0 %v1238
        %1943 = vmatpush.msra.mxu0 %v1230
        %1944 = vmatpush.msra.mxu0 %v1222
        %1945 = vmatpush.msra.mxu0 %v1214
        %1946 = vmatpush.msra.mxu0 %v1206
        %1947 = vmatpush.msra.mxu0 %v1198
        %1948 = vmatpush.msra.mxu0 %v1190
        %1949 = vmatpush.msra.mxu0 %v1182
        %1950 = vmatpush.msra.mxu0 %v1174
        %1951 = vmatpush.msra.mxu0 %v1166
        %1952 = vmatpush.msra.mxu0 %v1158
        %1953 = vmatpush.msra.mxu0 %v1150
        %1954 = vmatmul.f32.gmra.mxu0 %v886
        %v1955 = vpop.f32.mrf.mxu0
        %v1956 = vadd.f32 %v1936, %v1955
        %1957 = vdwg.mxu0
        %1958 = vmatpush.msra.mxu0 %v1398
        %1959 = vmatpush.msra.mxu0 %v1390
        %1960 = vmatpush.msra.mxu0 %v1382
        %1961 = vmatpush.msra.mxu0 %v1374
        %1962 = vmatpush.msra.mxu0 %v1366
        %1963 = vmatpush.msra.mxu0 %v1358
        %1964 = vmatpush.msra.mxu0 %v1350
        %1965 = vmatpush.msra.mxu0 %v1342
        %1966 = vmatpush.msra.mxu0 %v1334
        %1967 = vmatpush.msra.mxu0 %v1326
        %1968 = vmatpush.msra.mxu0 %v1318
        %1969 = vmatpush.msra.mxu0 %v1310
        %1970 = vmatpush.msra.mxu0 %v1302
        %1971 = vmatpush.msra.mxu0 %v1294
        %1972 = vmatpush.msra.mxu0 %v1286
        %1973 = vmatpush.msra.mxu0 %v1278
        %1974 = vmatmul.f32.gmra.mxu0 %v887
        %v1975 = vpop.f32.mrf.mxu0
        %v1976 = vadd.f32 %v1956, %v1975
        %1977 = vdwg.mxu0
        %1978 = vmatpush.msra.mxu0 %v1015
        %1979 = vmatpush.msra.mxu0 %v1007
        %1980 = vmatpush.msra.mxu0 %v999
        %1981 = vmatpush.msra.mxu0 %v991
        %1982 = vmatpush.msra.mxu0 %v983
        %1983 = vmatpush.msra.mxu0 %v975
        %1984 = vmatpush.msra.mxu0 %v967
        %1985 = vmatpush.msra.mxu0 %v959
        %1986 = vmatpush.msra.mxu0 %v951
        %1987 = vmatpush.msra.mxu0 %v943
        %1988 = vmatpush.msra.mxu0 %v935
        %1989 = vmatpush.msra.mxu0 %v927
        %1990 = vmatpush.msra.mxu0 %v919
        %1991 = vmatpush.msra.mxu0 %v911
        %1992 = vmatpush.msra.mxu0 %v903
        %1993 = vmatpush.msra.mxu0 %v895
        %1994 = vmatmul.f32.gmra.mxu0 %v884
        %v1995 = vpop.f32.mrf.mxu0
        %v1996 = vadd.f32 %v1409, %v1995
        %1997 = vdwg.mxu0
        %1998 = vmatpush.msra.mxu0 %v1143
        %1999 = vmatpush.msra.mxu0 %v1135
        %2000 = vmatpush.msra.mxu0 %v1127
        %2001 = vmatpush.msra.mxu0 %v1119
        %2002 = vmatpush.msra.mxu0 %v1111
        %2003 = vmatpush.msra.mxu0 %v1103
        %2004 = vmatpush.msra.mxu0 %v1095
        %2005 = vmatpush.msra.mxu0 %v1087
        %2006 = vmatpush.msra.mxu0 %v1079
        %2007 = vmatpush.msra.mxu0 %v1071
        %2008 = vmatpush.msra.mxu0 %v1063
        %2009 = vmatpush.msra.mxu0 %v1055
        %2010 = vmatpush.msra.mxu0 %v1047
        %2011 = vmatpush.msra.mxu0 %v1039
        %2012 = vmatpush.msra.mxu0 %v1031
        %2013 = vmatpush.msra.mxu0 %v1023
        %2014 = vmatmul.f32.gmra.mxu0 %v885
        %v2015 = vpop.f32.mrf.mxu0
        %v2016 = vadd.f32 %v1996, %v2015
        %2017 = vdwg.mxu0
        %2018 = vmatpush.msra.mxu0 %v1271
        %2019 = vmatpush.msra.mxu0 %v1263
        %2020 = vmatpush.msra.mxu0 %v1255
        %2021 = vmatpush.msra.mxu0 %v1247
        %2022 = vmatpush.msra.mxu0 %v1239
        %2023 = vmatpush.msra.mxu0 %v1231
        %2024 = vmatpush.msra.mxu0 %v1223
        %2025 = vmatpush.msra.mxu0 %v1215
        %2026 = vmatpush.msra.mxu0 %v1207
        %2027 = vmatpush.msra.mxu0 %v1199
        %2028 = vmatpush.msra.mxu0 %v1191
        %2029 = vmatpush.msra.mxu0 %v1183
        %2030 = vmatpush.msra.mxu0 %v1175
        %2031 = vmatpush.msra.mxu0 %v1167
        %2032 = vmatpush.msra.mxu0 %v1159
        %2033 = vmatpush.msra.mxu0 %v1151
        %2034 = vmatmul.f32.gmra.mxu0 %v886
        %v2035 = vpop.f32.mrf.mxu0
        %v2036 = vadd.f32 %v2016, %v2035
        %2037 = vdwg.mxu0
        %2038 = vmatpush.msra.mxu0 %v1399
        %2039 = vmatpush.msra.mxu0 %v1391
        %2040 = vmatpush.msra.mxu0 %v1383
        %2041 = vmatpush.msra.mxu0 %v1375
        %2042 = vmatpush.msra.mxu0 %v1367
        %2043 = vmatpush.msra.mxu0 %v1359
        %2044 = vmatpush.msra.mxu0 %v1351
        %2045 = vmatpush.msra.mxu0 %v1343
        %2046 = vmatpush.msra.mxu0 %v1335
        %2047 = vmatpush.msra.mxu0 %v1327
        %2048 = vmatpush.msra.mxu0 %v1319
        %2049 = vmatpush.msra.mxu0 %v1311
        %2050 = vmatpush.msra.mxu0 %v1303
        %2051 = vmatpush.msra.mxu0 %v1295
        %2052 = vmatpush.msra.mxu0 %v1287
        %2053 = vmatpush.msra.mxu0 %v1279
        %2054 = vmatmul.f32.gmra.mxu0 %v887
        %v2055 = vpop.f32.mrf.mxu0
        %v2056 = vadd.f32 %v2036, %v2055
        %2057 = vdwg.mxu0
        %v2058 = vmax.f32 %v1496, 0.0
        %v2059 = vmax.f32 %v1576, 0.0
        %v2060 = vmax.f32 %v1656, 0.0
        %v2061 = vmax.f32 %v1736, 0.0
        %v2062 = vmax.f32 %v1816, 0.0
        %v2063 = vmax.f32 %v1896, 0.0
        %v2064 = vmax.f32 %v1976, 0.0
        %v2065 = vmax.f32 %v2056, 0.0
        %v2066 = vld [vmem:[%s446] sm:$0xff]
        %v2067 = vld [vmem:[%s446 + $0x8] sm:$0xff]
        %v2068 = vld [vmem:[%s446 + $0x10] sm:$0xff]
        %v2069 = vld [vmem:[%s446 + $0x18] sm:$0xff]
        %v2070 = vld [vmem:[%s446 + $0x20] sm:$0xff]
        %v2071 = vld [vmem:[%s446 + $0x28] sm:$0xff]
        %v2072 = vld [vmem:[%s446 + $0x30] sm:$0xff]
        %v2073 = vld [vmem:[%s446 + $0x38] sm:$0xff]
        %v2074 = vld [vmem:[%s446 + $0x40] sm:$0xff]
        %v2075 = vld [vmem:[%s446 + $0x48] sm:$0xff]
        %v2076 = vld [vmem:[%s446 + $0x50] sm:$0xff]
        %v2077 = vld [vmem:[%s446 + $0x58] sm:$0xff]
        %v2078 = vld [vmem:[%s446 + $0x60] sm:$0xff]
        %v2079 = vld [vmem:[%s446 + $0x68] sm:$0xff]
        %v2080 = vld [vmem:[%s446 + $0x70] sm:$0xff]
        %v2081 = vld [vmem:[%s446 + $0x78] sm:$0xff]
        %v2082 = vld [vmem:[%s446 + $0x80] sm:$0xff]
        %v2083 = vld [vmem:[%s446 + $0x88] sm:$0xff]
        %v2084 = vld [vmem:[%s446 + $0x90] sm:$0xff]
        %v2085 = vld [vmem:[%s446 + $0x98] sm:$0xff]
        %v2086 = vld [vmem:[%s446 + $0xa0] sm:$0xff]
        %v2087 = vld [vmem:[%s446 + $0xa8] sm:$0xff]
        %v2088 = vld [vmem:[%s446 + $0xb0] sm:$0xff]
        %v2089 = vld [vmem:[%s446 + $0xb8] sm:$0xff]
        %v2090 = vld [vmem:[%s446 + $0xc0] sm:$0xff]
        %v2091 = vld [vmem:[%s446 + $0xc8] sm:$0xff]
        %v2092 = vld [vmem:[%s446 + $0xd0] sm:$0xff]
        %v2093 = vld [vmem:[%s446 + $0xd8] sm:$0xff]
        %v2094 = vld [vmem:[%s446 + $0xe0] sm:$0xff]
        %v2095 = vld [vmem:[%s446 + $0xe8] sm:$0xff]
        %v2096 = vld [vmem:[%s446 + $0xf0] sm:$0xff]
        %v2097 = vld [vmem:[%s446 + $0xf8] sm:$0xff]
        %v2098 = vld [vmem:[%s446 + $0x100] sm:$0xff]
        %v2099 = vld [vmem:[%s446 + $0x108] sm:$0xff]
        %v2100 = vld [vmem:[%s446 + $0x110] sm:$0xff]
        %v2101 = vld [vmem:[%s446 + $0x118] sm:$0xff]
        %v2102 = vld [vmem:[%s446 + $0x120] sm:$0xff]
        %v2103 = vld [vmem:[%s446 + $0x128] sm:$0xff]
        %v2104 = vld [vmem:[%s446 + $0x130] sm:$0xff]
        %v2105 = vld [vmem:[%s446 + $0x138] sm:$0xff]
        %v2106 = vld [vmem:[%s446 + $0x140] sm:$0xff]
        %v2107 = vld [vmem:[%s446 + $0x148] sm:$0xff]
        %v2108 = vld [vmem:[%s446 + $0x150] sm:$0xff]
        %v2109 = vld [vmem:[%s446 + $0x158] sm:$0xff]
        %v2110 = vld [vmem:[%s446 + $0x160] sm:$0xff]
        %v2111 = vld [vmem:[%s446 + $0x168] sm:$0xff]
        %v2112 = vld [vmem:[%s446 + $0x170] sm:$0xff]
        %v2113 = vld [vmem:[%s446 + $0x178] sm:$0xff]
        %v2114 = vld [vmem:[%s446 + $0x180] sm:$0xff]
        %v2115 = vld [vmem:[%s446 + $0x188] sm:$0xff]
        %v2116 = vld [vmem:[%s446 + $0x190] sm:$0xff]
        %v2117 = vld [vmem:[%s446 + $0x198] sm:$0xff]
        %v2118 = vld [vmem:[%s446 + $0x1a0] sm:$0xff]
        %v2119 = vld [vmem:[%s446 + $0x1a8] sm:$0xff]
        %v2120 = vld [vmem:[%s446 + $0x1b0] sm:$0xff]
        %v2121 = vld [vmem:[%s446 + $0x1b8] sm:$0xff]
        %v2122 = vld [vmem:[%s446 + $0x1c0] sm:$0xff]
        %v2123 = vld [vmem:[%s446 + $0x1c8] sm:$0xff]
        %v2124 = vld [vmem:[%s446 + $0x1d0] sm:$0xff]
        %v2125 = vld [vmem:[%s446 + $0x1d8] sm:$0xff]
        %v2126 = vld [vmem:[%s446 + $0x1e0] sm:$0xff]
        %v2127 = vld [vmem:[%s446 + $0x1e8] sm:$0xff]
        %v2128 = vld [vmem:[%s446 + $0x1f0] sm:$0xff]
        %v2129 = vld [vmem:[%s446 + $0x1f8] sm:$0xff]
        %v2130 = vld [vmem:[%s446 + $0x200] sm:$0xff]
        %v2131 = vld [vmem:[%s446 + $0x208] sm:$0xff]
        %v2132 = vld [vmem:[%s446 + $0x210] sm:$0xff]
        %v2133 = vld [vmem:[%s446 + $0x218] sm:$0xff]
        %v2134 = vld [vmem:[%s446 + $0x220] sm:$0xff]
        %v2135 = vld [vmem:[%s446 + $0x228] sm:$0xff]
        %v2136 = vld [vmem:[%s446 + $0x230] sm:$0xff]
        %v2137 = vld [vmem:[%s446 + $0x238] sm:$0xff]
        %v2138 = vld [vmem:[%s446 + $0x240] sm:$0xff]
        %v2139 = vld [vmem:[%s446 + $0x248] sm:$0xff]
        %v2140 = vld [vmem:[%s446 + $0x250] sm:$0xff]
        %v2141 = vld [vmem:[%s446 + $0x258] sm:$0xff]
        %v2142 = vld [vmem:[%s446 + $0x260] sm:$0xff]
        %v2143 = vld [vmem:[%s446 + $0x268] sm:$0xff]
        %v2144 = vld [vmem:[%s446 + $0x270] sm:$0xff]
        %v2145 = vld [vmem:[%s446 + $0x278] sm:$0xff]
        %v2146 = vld [vmem:[%s446 + $0x280] sm:$0xff]
        %v2147 = vld [vmem:[%s446 + $0x288] sm:$0xff]
        %v2148 = vld [vmem:[%s446 + $0x290] sm:$0xff]
        %v2149 = vld [vmem:[%s446 + $0x298] sm:$0xff]
        %v2150 = vld [vmem:[%s446 + $0x2a0] sm:$0xff]
        %v2151 = vld [vmem:[%s446 + $0x2a8] sm:$0xff]
        %v2152 = vld [vmem:[%s446 + $0x2b0] sm:$0xff]
        %v2153 = vld [vmem:[%s446 + $0x2b8] sm:$0xff]
        %v2154 = vld [vmem:[%s446 + $0x2c0] sm:$0xff]
        %v2155 = vld [vmem:[%s446 + $0x2c8] sm:$0xff]
        %v2156 = vld [vmem:[%s446 + $0x2d0] sm:$0xff]
        %v2157 = vld [vmem:[%s446 + $0x2d8] sm:$0xff]
        %v2158 = vld [vmem:[%s446 + $0x2e0] sm:$0xff]
        %v2159 = vld [vmem:[%s446 + $0x2e8] sm:$0xff]
        %v2160 = vld [vmem:[%s446 + $0x2f0] sm:$0xff]
        %v2161 = vld [vmem:[%s446 + $0x2f8] sm:$0xff]
        %v2162 = vld [vmem:[%s446 + $0x300] sm:$0xff]
        %v2163 = vld [vmem:[%s446 + $0x308] sm:$0xff]
        %v2164 = vld [vmem:[%s446 + $0x310] sm:$0xff]
        %v2165 = vld [vmem:[%s446 + $0x318] sm:$0xff]
        %v2166 = vld [vmem:[%s446 + $0x320] sm:$0xff]
        %v2167 = vld [vmem:[%s446 + $0x328] sm:$0xff]
        %v2168 = vld [vmem:[%s446 + $0x330] sm:$0xff]
        %v2169 = vld [vmem:[%s446 + $0x338] sm:$0xff]
        %v2170 = vld [vmem:[%s446 + $0x340] sm:$0xff]
        %v2171 = vld [vmem:[%s446 + $0x348] sm:$0xff]
        %v2172 = vld [vmem:[%s446 + $0x350] sm:$0xff]
        %v2173 = vld [vmem:[%s446 + $0x358] sm:$0xff]
        %v2174 = vld [vmem:[%s446 + $0x360] sm:$0xff]
        %v2175 = vld [vmem:[%s446 + $0x368] sm:$0xff]
        %v2176 = vld [vmem:[%s446 + $0x370] sm:$0xff]
        %v2177 = vld [vmem:[%s446 + $0x378] sm:$0xff]
        %v2178 = vld [vmem:[%s446 + $0x380] sm:$0xff]
        %v2179 = vld [vmem:[%s446 + $0x388] sm:$0xff]
        %v2180 = vld [vmem:[%s446 + $0x390] sm:$0xff]
        %v2181 = vld [vmem:[%s446 + $0x398] sm:$0xff]
        %v2182 = vld [vmem:[%s446 + $0x3a0] sm:$0xff]
        %v2183 = vld [vmem:[%s446 + $0x3a8] sm:$0xff]
        %v2184 = vld [vmem:[%s446 + $0x3b0] sm:$0xff]
        %v2185 = vld [vmem:[%s446 + $0x3b8] sm:$0xff]
        %v2186 = vld [vmem:[%s446 + $0x3c0] sm:$0xff]
        %v2187 = vld [vmem:[%s446 + $0x3c8] sm:$0xff]
        %v2188 = vld [vmem:[%s446 + $0x3d0] sm:$0xff]
        %v2189 = vld [vmem:[%s446 + $0x3d8] sm:$0xff]
        %v2190 = vld [vmem:[%s446 + $0x3e0] sm:$0xff]
        %v2191 = vld [vmem:[%s446 + $0x3e8] sm:$0xff]
        %v2192 = vld [vmem:[%s446 + $0x3f0] sm:$0xff]
        %v2193 = vld [vmem:[%s446 + $0x3f8] sm:$0xff]
        %v2194 = vld [vmem:[%s446 + $0x400] sm:$0xff]
        %v2195 = vld [vmem:[%s446 + $0x408] sm:$0xff]
        %v2196 = vld [vmem:[%s446 + $0x410] sm:$0xff]
        %v2197 = vld [vmem:[%s446 + $0x418] sm:$0xff]
        %v2198 = vld [vmem:[%s446 + $0x420] sm:$0xff]
        %v2199 = vld [vmem:[%s446 + $0x428] sm:$0xff]
        %v2200 = vld [vmem:[%s446 + $0x430] sm:$0xff]
        %v2201 = vld [vmem:[%s446 + $0x438] sm:$0xff]
        %v2202 = vld [vmem:[%s446 + $0x440] sm:$0xff]
        %v2203 = vld [vmem:[%s446 + $0x448] sm:$0xff]
        %v2204 = vld [vmem:[%s446 + $0x450] sm:$0xff]
        %v2205 = vld [vmem:[%s446 + $0x458] sm:$0xff]
        %v2206 = vld [vmem:[%s446 + $0x460] sm:$0xff]
        %v2207 = vld [vmem:[%s446 + $0x468] sm:$0xff]
        %v2208 = vld [vmem:[%s446 + $0x470] sm:$0xff]
        %v2209 = vld [vmem:[%s446 + $0x478] sm:$0xff]
        %v2210 = vld [vmem:[%s446 + $0x480] sm:$0xff]
        %v2211 = vld [vmem:[%s446 + $0x488] sm:$0xff]
        %v2212 = vld [vmem:[%s446 + $0x490] sm:$0xff]
        %v2213 = vld [vmem:[%s446 + $0x498] sm:$0xff]
        %v2214 = vld [vmem:[%s446 + $0x4a0] sm:$0xff]
        %v2215 = vld [vmem:[%s446 + $0x4a8] sm:$0xff]
        %v2216 = vld [vmem:[%s446 + $0x4b0] sm:$0xff]
        %v2217 = vld [vmem:[%s446 + $0x4b8] sm:$0xff]
        %v2218 = vld [vmem:[%s446 + $0x4c0] sm:$0xff]
        %v2219 = vld [vmem:[%s446 + $0x4c8] sm:$0xff]
        %v2220 = vld [vmem:[%s446 + $0x4d0] sm:$0xff]
        %v2221 = vld [vmem:[%s446 + $0x4d8] sm:$0xff]
        %v2222 = vld [vmem:[%s446 + $0x4e0] sm:$0xff]
        %v2223 = vld [vmem:[%s446 + $0x4e8] sm:$0xff]
        %v2224 = vld [vmem:[%s446 + $0x4f0] sm:$0xff]
        %v2225 = vld [vmem:[%s446 + $0x4f8] sm:$0xff]
        %v2226 = vld [vmem:[%s446 + $0x500] sm:$0xff]
        %v2227 = vld [vmem:[%s446 + $0x508] sm:$0xff]
        %v2228 = vld [vmem:[%s446 + $0x510] sm:$0xff]
        %v2229 = vld [vmem:[%s446 + $0x518] sm:$0xff]
        %v2230 = vld [vmem:[%s446 + $0x520] sm:$0xff]
        %v2231 = vld [vmem:[%s446 + $0x528] sm:$0xff]
        %v2232 = vld [vmem:[%s446 + $0x530] sm:$0xff]
        %v2233 = vld [vmem:[%s446 + $0x538] sm:$0xff]
        %v2234 = vld [vmem:[%s446 + $0x540] sm:$0xff]
        %v2235 = vld [vmem:[%s446 + $0x548] sm:$0xff]
        %v2236 = vld [vmem:[%s446 + $0x550] sm:$0xff]
        %v2237 = vld [vmem:[%s446 + $0x558] sm:$0xff]
        %v2238 = vld [vmem:[%s446 + $0x560] sm:$0xff]
        %v2239 = vld [vmem:[%s446 + $0x568] sm:$0xff]
        %v2240 = vld [vmem:[%s446 + $0x570] sm:$0xff]
        %v2241 = vld [vmem:[%s446 + $0x578] sm:$0xff]
        %v2242 = vld [vmem:[%s446 + $0x580] sm:$0xff]
        %v2243 = vld [vmem:[%s446 + $0x588] sm:$0xff]
        %v2244 = vld [vmem:[%s446 + $0x590] sm:$0xff]
        %v2245 = vld [vmem:[%s446 + $0x598] sm:$0xff]
        %v2246 = vld [vmem:[%s446 + $0x5a0] sm:$0xff]
        %v2247 = vld [vmem:[%s446 + $0x5a8] sm:$0xff]
        %v2248 = vld [vmem:[%s446 + $0x5b0] sm:$0xff]
        %v2249 = vld [vmem:[%s446 + $0x5b8] sm:$0xff]
        %v2250 = vld [vmem:[%s446 + $0x5c0] sm:$0xff]
        %v2251 = vld [vmem:[%s446 + $0x5c8] sm:$0xff]
        %v2252 = vld [vmem:[%s446 + $0x5d0] sm:$0xff]
        %v2253 = vld [vmem:[%s446 + $0x5d8] sm:$0xff]
        %v2254 = vld [vmem:[%s446 + $0x5e0] sm:$0xff]
        %v2255 = vld [vmem:[%s446 + $0x5e8] sm:$0xff]
        %v2256 = vld [vmem:[%s446 + $0x5f0] sm:$0xff]
        %v2257 = vld [vmem:[%s446 + $0x5f8] sm:$0xff]
        %v2258 = vld [vmem:[%s446 + $0x600] sm:$0xff]
        %v2259 = vld [vmem:[%s446 + $0x608] sm:$0xff]
        %v2260 = vld [vmem:[%s446 + $0x610] sm:$0xff]
        %v2261 = vld [vmem:[%s446 + $0x618] sm:$0xff]
        %v2262 = vld [vmem:[%s446 + $0x620] sm:$0xff]
        %v2263 = vld [vmem:[%s446 + $0x628] sm:$0xff]
        %v2264 = vld [vmem:[%s446 + $0x630] sm:$0xff]
        %v2265 = vld [vmem:[%s446 + $0x638] sm:$0xff]
        %v2266 = vld [vmem:[%s446 + $0x640] sm:$0xff]
        %v2267 = vld [vmem:[%s446 + $0x648] sm:$0xff]
        %v2268 = vld [vmem:[%s446 + $0x650] sm:$0xff]
        %v2269 = vld [vmem:[%s446 + $0x658] sm:$0xff]
        %v2270 = vld [vmem:[%s446 + $0x660] sm:$0xff]
        %v2271 = vld [vmem:[%s446 + $0x668] sm:$0xff]
        %v2272 = vld [vmem:[%s446 + $0x670] sm:$0xff]
        %v2273 = vld [vmem:[%s446 + $0x678] sm:$0xff]
        %v2274 = vld [vmem:[%s446 + $0x680] sm:$0xff]
        %v2275 = vld [vmem:[%s446 + $0x688] sm:$0xff]
        %v2276 = vld [vmem:[%s446 + $0x690] sm:$0xff]
        %v2277 = vld [vmem:[%s446 + $0x698] sm:$0xff]
        %v2278 = vld [vmem:[%s446 + $0x6a0] sm:$0xff]
        %v2279 = vld [vmem:[%s446 + $0x6a8] sm:$0xff]
        %v2280 = vld [vmem:[%s446 + $0x6b0] sm:$0xff]
        %v2281 = vld [vmem:[%s446 + $0x6b8] sm:$0xff]
        %v2282 = vld [vmem:[%s446 + $0x6c0] sm:$0xff]
        %v2283 = vld [vmem:[%s446 + $0x6c8] sm:$0xff]
        %v2284 = vld [vmem:[%s446 + $0x6d0] sm:$0xff]
        %v2285 = vld [vmem:[%s446 + $0x6d8] sm:$0xff]
        %v2286 = vld [vmem:[%s446 + $0x6e0] sm:$0xff]
        %v2287 = vld [vmem:[%s446 + $0x6e8] sm:$0xff]
        %v2288 = vld [vmem:[%s446 + $0x6f0] sm:$0xff]
        %v2289 = vld [vmem:[%s446 + $0x6f8] sm:$0xff]
        %v2290 = vld [vmem:[%s446 + $0x700] sm:$0xff]
        %v2291 = vld [vmem:[%s446 + $0x708] sm:$0xff]
        %v2292 = vld [vmem:[%s446 + $0x710] sm:$0xff]
        %v2293 = vld [vmem:[%s446 + $0x718] sm:$0xff]
        %v2294 = vld [vmem:[%s446 + $0x720] sm:$0xff]
        %v2295 = vld [vmem:[%s446 + $0x728] sm:$0xff]
        %v2296 = vld [vmem:[%s446 + $0x730] sm:$0xff]
        %v2297 = vld [vmem:[%s446 + $0x738] sm:$0xff]
        %v2298 = vld [vmem:[%s446 + $0x740] sm:$0xff]
        %v2299 = vld [vmem:[%s446 + $0x748] sm:$0xff]
        %v2300 = vld [vmem:[%s446 + $0x750] sm:$0xff]
        %v2301 = vld [vmem:[%s446 + $0x758] sm:$0xff]
        %v2302 = vld [vmem:[%s446 + $0x760] sm:$0xff]
        %v2303 = vld [vmem:[%s446 + $0x768] sm:$0xff]
        %v2304 = vld [vmem:[%s446 + $0x770] sm:$0xff]
        %v2305 = vld [vmem:[%s446 + $0x778] sm:$0xff]
        %v2306 = vld [vmem:[%s446 + $0x780] sm:$0xff]
        %v2307 = vld [vmem:[%s446 + $0x788] sm:$0xff]
        %v2308 = vld [vmem:[%s446 + $0x790] sm:$0xff]
        %v2309 = vld [vmem:[%s446 + $0x798] sm:$0xff]
        %v2310 = vld [vmem:[%s446 + $0x7a0] sm:$0xff]
        %v2311 = vld [vmem:[%s446 + $0x7a8] sm:$0xff]
        %v2312 = vld [vmem:[%s446 + $0x7b0] sm:$0xff]
        %v2313 = vld [vmem:[%s446 + $0x7b8] sm:$0xff]
        %v2314 = vld [vmem:[%s446 + $0x7c0] sm:$0xff]
        %v2315 = vld [vmem:[%s446 + $0x7c8] sm:$0xff]
        %v2316 = vld [vmem:[%s446 + $0x7d0] sm:$0xff]
        %v2317 = vld [vmem:[%s446 + $0x7d8] sm:$0xff]
        %v2318 = vld [vmem:[%s446 + $0x7e0] sm:$0xff]
        %v2319 = vld [vmem:[%s446 + $0x7e8] sm:$0xff]
        %v2320 = vld [vmem:[%s446 + $0x7f0] sm:$0xff]
        %v2321 = vld [vmem:[%s446 + $0x7f8] sm:$0xff]
        %v2322 = vld [vmem:[%s446 + $0x800] sm:$0xff]
        %v2323 = vld [vmem:[%s446 + $0x808] sm:$0xff]
        %v2324 = vld [vmem:[%s446 + $0x810] sm:$0xff]
        %v2325 = vld [vmem:[%s446 + $0x818] sm:$0xff]
        %v2326 = vld [vmem:[%s446 + $0x820] sm:$0xff]
        %v2327 = vld [vmem:[%s446 + $0x828] sm:$0xff]
        %v2328 = vld [vmem:[%s446 + $0x830] sm:$0xff]
        %v2329 = vld [vmem:[%s446 + $0x838] sm:$0xff]
        %v2330 = vld [vmem:[%s446 + $0x840] sm:$0xff]
        %v2331 = vld [vmem:[%s446 + $0x848] sm:$0xff]
        %v2332 = vld [vmem:[%s446 + $0x850] sm:$0xff]
        %v2333 = vld [vmem:[%s446 + $0x858] sm:$0xff]
        %v2334 = vld [vmem:[%s446 + $0x860] sm:$0xff]
        %v2335 = vld [vmem:[%s446 + $0x868] sm:$0xff]
        %v2336 = vld [vmem:[%s446 + $0x870] sm:$0xff]
        %v2337 = vld [vmem:[%s446 + $0x878] sm:$0xff]
        %v2338 = vld [vmem:[%s446 + $0x880] sm:$0xff]
        %v2339 = vld [vmem:[%s446 + $0x888] sm:$0xff]
        %v2340 = vld [vmem:[%s446 + $0x890] sm:$0xff]
        %v2341 = vld [vmem:[%s446 + $0x898] sm:$0xff]
        %v2342 = vld [vmem:[%s446 + $0x8a0] sm:$0xff]
        %v2343 = vld [vmem:[%s446 + $0x8a8] sm:$0xff]
        %v2344 = vld [vmem:[%s446 + $0x8b0] sm:$0xff]
        %v2345 = vld [vmem:[%s446 + $0x8b8] sm:$0xff]
        %v2346 = vld [vmem:[%s446 + $0x8c0] sm:$0xff]
        %v2347 = vld [vmem:[%s446 + $0x8c8] sm:$0xff]
        %v2348 = vld [vmem:[%s446 + $0x8d0] sm:$0xff]
        %v2349 = vld [vmem:[%s446 + $0x8d8] sm:$0xff]
        %v2350 = vld [vmem:[%s446 + $0x8e0] sm:$0xff]
        %v2351 = vld [vmem:[%s446 + $0x8e8] sm:$0xff]
        %v2352 = vld [vmem:[%s446 + $0x8f0] sm:$0xff]
        %v2353 = vld [vmem:[%s446 + $0x8f8] sm:$0xff]
        %v2354 = vld [vmem:[%s446 + $0x900] sm:$0xff]
        %v2355 = vld [vmem:[%s446 + $0x908] sm:$0xff]
        %v2356 = vld [vmem:[%s446 + $0x910] sm:$0xff]
        %v2357 = vld [vmem:[%s446 + $0x918] sm:$0xff]
        %v2358 = vld [vmem:[%s446 + $0x920] sm:$0xff]
        %v2359 = vld [vmem:[%s446 + $0x928] sm:$0xff]
        %v2360 = vld [vmem:[%s446 + $0x930] sm:$0xff]
        %v2361 = vld [vmem:[%s446 + $0x938] sm:$0xff]
        %v2362 = vld [vmem:[%s446 + $0x940] sm:$0xff]
        %v2363 = vld [vmem:[%s446 + $0x948] sm:$0xff]
        %v2364 = vld [vmem:[%s446 + $0x950] sm:$0xff]
        %v2365 = vld [vmem:[%s446 + $0x958] sm:$0xff]
        %v2366 = vld [vmem:[%s446 + $0x960] sm:$0xff]
        %v2367 = vld [vmem:[%s446 + $0x968] sm:$0xff]
        %v2368 = vld [vmem:[%s446 + $0x970] sm:$0xff]
        %v2369 = vld [vmem:[%s446 + $0x978] sm:$0xff]
        %v2370 = vld [vmem:[%s446 + $0x980] sm:$0xff]
        %v2371 = vld [vmem:[%s446 + $0x988] sm:$0xff]
        %v2372 = vld [vmem:[%s446 + $0x990] sm:$0xff]
        %v2373 = vld [vmem:[%s446 + $0x998] sm:$0xff]
        %v2374 = vld [vmem:[%s446 + $0x9a0] sm:$0xff]
        %v2375 = vld [vmem:[%s446 + $0x9a8] sm:$0xff]
        %v2376 = vld [vmem:[%s446 + $0x9b0] sm:$0xff]
        %v2377 = vld [vmem:[%s446 + $0x9b8] sm:$0xff]
        %v2378 = vld [vmem:[%s446 + $0x9c0] sm:$0xff]
        %v2379 = vld [vmem:[%s446 + $0x9c8] sm:$0xff]
        %v2380 = vld [vmem:[%s446 + $0x9d0] sm:$0xff]
        %v2381 = vld [vmem:[%s446 + $0x9d8] sm:$0xff]
        %v2382 = vld [vmem:[%s446 + $0x9e0] sm:$0xff]
        %v2383 = vld [vmem:[%s446 + $0x9e8] sm:$0xff]
        %v2384 = vld [vmem:[%s446 + $0x9f0] sm:$0xff]
        %v2385 = vld [vmem:[%s446 + $0x9f8] sm:$0xff]
        %v2386 = vld [vmem:[%s446 + $0xa00] sm:$0xff]
        %v2387 = vld [vmem:[%s446 + $0xa08] sm:$0xff]
        %v2388 = vld [vmem:[%s446 + $0xa10] sm:$0xff]
        %v2389 = vld [vmem:[%s446 + $0xa18] sm:$0xff]
        %v2390 = vld [vmem:[%s446 + $0xa20] sm:$0xff]
        %v2391 = vld [vmem:[%s446 + $0xa28] sm:$0xff]
        %v2392 = vld [vmem:[%s446 + $0xa30] sm:$0xff]
        %v2393 = vld [vmem:[%s446 + $0xa38] sm:$0xff]
        %v2394 = vld [vmem:[%s446 + $0xa40] sm:$0xff]
        %v2395 = vld [vmem:[%s446 + $0xa48] sm:$0xff]
        %v2396 = vld [vmem:[%s446 + $0xa50] sm:$0xff]
        %v2397 = vld [vmem:[%s446 + $0xa58] sm:$0xff]
        %v2398 = vld [vmem:[%s446 + $0xa60] sm:$0xff]
        %v2399 = vld [vmem:[%s446 + $0xa68] sm:$0xff]
        %v2400 = vld [vmem:[%s446 + $0xa70] sm:$0xff]
        %v2401 = vld [vmem:[%s446 + $0xa78] sm:$0xff]
        %v2402 = vld [vmem:[%s446 + $0xa80] sm:$0xff]
        %v2403 = vld [vmem:[%s446 + $0xa88] sm:$0xff]
        %v2404 = vld [vmem:[%s446 + $0xa90] sm:$0xff]
        %v2405 = vld [vmem:[%s446 + $0xa98] sm:$0xff]
        %v2406 = vld [vmem:[%s446 + $0xaa0] sm:$0xff]
        %v2407 = vld [vmem:[%s446 + $0xaa8] sm:$0xff]
        %v2408 = vld [vmem:[%s446 + $0xab0] sm:$0xff]
        %v2409 = vld [vmem:[%s446 + $0xab8] sm:$0xff]
        %v2410 = vld [vmem:[%s446 + $0xac0] sm:$0xff]
        %v2411 = vld [vmem:[%s446 + $0xac8] sm:$0xff]
        %v2412 = vld [vmem:[%s446 + $0xad0] sm:$0xff]
        %v2413 = vld [vmem:[%s446 + $0xad8] sm:$0xff]
        %v2414 = vld [vmem:[%s446 + $0xae0] sm:$0xff]
        %v2415 = vld [vmem:[%s446 + $0xae8] sm:$0xff]
        %v2416 = vld [vmem:[%s446 + $0xaf0] sm:$0xff]
        %v2417 = vld [vmem:[%s446 + $0xaf8] sm:$0xff]
        %v2418 = vld [vmem:[%s446 + $0xb00] sm:$0xff]
        %v2419 = vld [vmem:[%s446 + $0xb08] sm:$0xff]
        %v2420 = vld [vmem:[%s446 + $0xb10] sm:$0xff]
        %v2421 = vld [vmem:[%s446 + $0xb18] sm:$0xff]
        %v2422 = vld [vmem:[%s446 + $0xb20] sm:$0xff]
        %v2423 = vld [vmem:[%s446 + $0xb28] sm:$0xff]
        %v2424 = vld [vmem:[%s446 + $0xb30] sm:$0xff]
        %v2425 = vld [vmem:[%s446 + $0xb38] sm:$0xff]
        %v2426 = vld [vmem:[%s446 + $0xb40] sm:$0xff]
        %v2427 = vld [vmem:[%s446 + $0xb48] sm:$0xff]
        %v2428 = vld [vmem:[%s446 + $0xb50] sm:$0xff]
        %v2429 = vld [vmem:[%s446 + $0xb58] sm:$0xff]
        %v2430 = vld [vmem:[%s446 + $0xb60] sm:$0xff]
        %v2431 = vld [vmem:[%s446 + $0xb68] sm:$0xff]
        %v2432 = vld [vmem:[%s446 + $0xb70] sm:$0xff]
        %v2433 = vld [vmem:[%s446 + $0xb78] sm:$0xff]
        %v2434 = vld [vmem:[%s446 + $0xb80] sm:$0xff]
        %v2435 = vld [vmem:[%s446 + $0xb88] sm:$0xff]
        %v2436 = vld [vmem:[%s446 + $0xb90] sm:$0xff]
        %v2437 = vld [vmem:[%s446 + $0xb98] sm:$0xff]
        %v2438 = vld [vmem:[%s446 + $0xba0] sm:$0xff]
        %v2439 = vld [vmem:[%s446 + $0xba8] sm:$0xff]
        %v2440 = vld [vmem:[%s446 + $0xbb0] sm:$0xff]
        %v2441 = vld [vmem:[%s446 + $0xbb8] sm:$0xff]
        %v2442 = vld [vmem:[%s446 + $0xbc0] sm:$0xff]
        %v2443 = vld [vmem:[%s446 + $0xbc8] sm:$0xff]
        %v2444 = vld [vmem:[%s446 + $0xbd0] sm:$0xff]
        %v2445 = vld [vmem:[%s446 + $0xbd8] sm:$0xff]
        %v2446 = vld [vmem:[%s446 + $0xbe0] sm:$0xff]
        %v2447 = vld [vmem:[%s446 + $0xbe8] sm:$0xff]
        %v2448 = vld [vmem:[%s446 + $0xbf0] sm:$0xff]
        %v2449 = vld [vmem:[%s446 + $0xbf8] sm:$0xff]
        %v2450 = vld [vmem:[%s446 + $0xc00] sm:$0xff]
        %v2451 = vld [vmem:[%s446 + $0xc08] sm:$0xff]
        %v2452 = vld [vmem:[%s446 + $0xc10] sm:$0xff]
        %v2453 = vld [vmem:[%s446 + $0xc18] sm:$0xff]
        %v2454 = vld [vmem:[%s446 + $0xc20] sm:$0xff]
        %v2455 = vld [vmem:[%s446 + $0xc28] sm:$0xff]
        %v2456 = vld [vmem:[%s446 + $0xc30] sm:$0xff]
        %v2457 = vld [vmem:[%s446 + $0xc38] sm:$0xff]
        %v2458 = vld [vmem:[%s446 + $0xc40] sm:$0xff]
        %v2459 = vld [vmem:[%s446 + $0xc48] sm:$0xff]
        %v2460 = vld [vmem:[%s446 + $0xc50] sm:$0xff]
        %v2461 = vld [vmem:[%s446 + $0xc58] sm:$0xff]
        %v2462 = vld [vmem:[%s446 + $0xc60] sm:$0xff]
        %v2463 = vld [vmem:[%s446 + $0xc68] sm:$0xff]
        %v2464 = vld [vmem:[%s446 + $0xc70] sm:$0xff]
        %v2465 = vld [vmem:[%s446 + $0xc78] sm:$0xff]
        %v2466 = vld [vmem:[%s446 + $0xc80] sm:$0xff]
        %v2467 = vld [vmem:[%s446 + $0xc88] sm:$0xff]
        %v2468 = vld [vmem:[%s446 + $0xc90] sm:$0xff]
        %v2469 = vld [vmem:[%s446 + $0xc98] sm:$0xff]
        %v2470 = vld [vmem:[%s446 + $0xca0] sm:$0xff]
        %v2471 = vld [vmem:[%s446 + $0xca8] sm:$0xff]
        %v2472 = vld [vmem:[%s446 + $0xcb0] sm:$0xff]
        %v2473 = vld [vmem:[%s446 + $0xcb8] sm:$0xff]
        %v2474 = vld [vmem:[%s446 + $0xcc0] sm:$0xff]
        %v2475 = vld [vmem:[%s446 + $0xcc8] sm:$0xff]
        %v2476 = vld [vmem:[%s446 + $0xcd0] sm:$0xff]
        %v2477 = vld [vmem:[%s446 + $0xcd8] sm:$0xff]
        %v2478 = vld [vmem:[%s446 + $0xce0] sm:$0xff]
        %v2479 = vld [vmem:[%s446 + $0xce8] sm:$0xff]
        %v2480 = vld [vmem:[%s446 + $0xcf0] sm:$0xff]
        %v2481 = vld [vmem:[%s446 + $0xcf8] sm:$0xff]
        %v2482 = vld [vmem:[%s446 + $0xd00] sm:$0xff]
        %v2483 = vld [vmem:[%s446 + $0xd08] sm:$0xff]
        %v2484 = vld [vmem:[%s446 + $0xd10] sm:$0xff]
        %v2485 = vld [vmem:[%s446 + $0xd18] sm:$0xff]
        %v2486 = vld [vmem:[%s446 + $0xd20] sm:$0xff]
        %v2487 = vld [vmem:[%s446 + $0xd28] sm:$0xff]
        %v2488 = vld [vmem:[%s446 + $0xd30] sm:$0xff]
        %v2489 = vld [vmem:[%s446 + $0xd38] sm:$0xff]
        %v2490 = vld [vmem:[%s446 + $0xd40] sm:$0xff]
        %v2491 = vld [vmem:[%s446 + $0xd48] sm:$0xff]
        %v2492 = vld [vmem:[%s446 + $0xd50] sm:$0xff]
        %v2493 = vld [vmem:[%s446 + $0xd58] sm:$0xff]
        %v2494 = vld [vmem:[%s446 + $0xd60] sm:$0xff]
        %v2495 = vld [vmem:[%s446 + $0xd68] sm:$0xff]
        %v2496 = vld [vmem:[%s446 + $0xd70] sm:$0xff]
        %v2497 = vld [vmem:[%s446 + $0xd78] sm:$0xff]
        %v2498 = vld [vmem:[%s446 + $0xd80] sm:$0xff]
        %v2499 = vld [vmem:[%s446 + $0xd88] sm:$0xff]
        %v2500 = vld [vmem:[%s446 + $0xd90] sm:$0xff]
        %v2501 = vld [vmem:[%s446 + $0xd98] sm:$0xff]
        %v2502 = vld [vmem:[%s446 + $0xda0] sm:$0xff]
        %v2503 = vld [vmem:[%s446 + $0xda8] sm:$0xff]
        %v2504 = vld [vmem:[%s446 + $0xdb0] sm:$0xff]
        %v2505 = vld [vmem:[%s446 + $0xdb8] sm:$0xff]
        %v2506 = vld [vmem:[%s446 + $0xdc0] sm:$0xff]
        %v2507 = vld [vmem:[%s446 + $0xdc8] sm:$0xff]
        %v2508 = vld [vmem:[%s446 + $0xdd0] sm:$0xff]
        %v2509 = vld [vmem:[%s446 + $0xdd8] sm:$0xff]
        %v2510 = vld [vmem:[%s446 + $0xde0] sm:$0xff]
        %v2511 = vld [vmem:[%s446 + $0xde8] sm:$0xff]
        %v2512 = vld [vmem:[%s446 + $0xdf0] sm:$0xff]
        %v2513 = vld [vmem:[%s446 + $0xdf8] sm:$0xff]
        %v2514 = vld [vmem:[%s446 + $0xe00] sm:$0xff]
        %v2515 = vld [vmem:[%s446 + $0xe08] sm:$0xff]
        %v2516 = vld [vmem:[%s446 + $0xe10] sm:$0xff]
        %v2517 = vld [vmem:[%s446 + $0xe18] sm:$0xff]
        %v2518 = vld [vmem:[%s446 + $0xe20] sm:$0xff]
        %v2519 = vld [vmem:[%s446 + $0xe28] sm:$0xff]
        %v2520 = vld [vmem:[%s446 + $0xe30] sm:$0xff]
        %v2521 = vld [vmem:[%s446 + $0xe38] sm:$0xff]
        %v2522 = vld [vmem:[%s446 + $0xe40] sm:$0xff]
        %v2523 = vld [vmem:[%s446 + $0xe48] sm:$0xff]
        %v2524 = vld [vmem:[%s446 + $0xe50] sm:$0xff]
        %v2525 = vld [vmem:[%s446 + $0xe58] sm:$0xff]
        %v2526 = vld [vmem:[%s446 + $0xe60] sm:$0xff]
        %v2527 = vld [vmem:[%s446 + $0xe68] sm:$0xff]
        %v2528 = vld [vmem:[%s446 + $0xe70] sm:$0xff]
        %v2529 = vld [vmem:[%s446 + $0xe78] sm:$0xff]
        %v2530 = vld [vmem:[%s446 + $0xe80] sm:$0xff]
        %v2531 = vld [vmem:[%s446 + $0xe88] sm:$0xff]
        %v2532 = vld [vmem:[%s446 + $0xe90] sm:$0xff]
        %v2533 = vld [vmem:[%s446 + $0xe98] sm:$0xff]
        %v2534 = vld [vmem:[%s446 + $0xea0] sm:$0xff]
        %v2535 = vld [vmem:[%s446 + $0xea8] sm:$0xff]
        %v2536 = vld [vmem:[%s446 + $0xeb0] sm:$0xff]
        %v2537 = vld [vmem:[%s446 + $0xeb8] sm:$0xff]
        %v2538 = vld [vmem:[%s446 + $0xec0] sm:$0xff]
        %v2539 = vld [vmem:[%s446 + $0xec8] sm:$0xff]
        %v2540 = vld [vmem:[%s446 + $0xed0] sm:$0xff]
        %v2541 = vld [vmem:[%s446 + $0xed8] sm:$0xff]
        %v2542 = vld [vmem:[%s446 + $0xee0] sm:$0xff]
        %v2543 = vld [vmem:[%s446 + $0xee8] sm:$0xff]
        %v2544 = vld [vmem:[%s446 + $0xef0] sm:$0xff]
        %v2545 = vld [vmem:[%s446 + $0xef8] sm:$0xff]
        %v2546 = vld [vmem:[%s446 + $0xf00] sm:$0xff]
        %v2547 = vld [vmem:[%s446 + $0xf08] sm:$0xff]
        %v2548 = vld [vmem:[%s446 + $0xf10] sm:$0xff]
        %v2549 = vld [vmem:[%s446 + $0xf18] sm:$0xff]
        %v2550 = vld [vmem:[%s446 + $0xf20] sm:$0xff]
        %v2551 = vld [vmem:[%s446 + $0xf28] sm:$0xff]
        %v2552 = vld [vmem:[%s446 + $0xf30] sm:$0xff]
        %v2553 = vld [vmem:[%s446 + $0xf38] sm:$0xff]
        %v2554 = vld [vmem:[%s446 + $0xf40] sm:$0xff]
        %v2555 = vld [vmem:[%s446 + $0xf48] sm:$0xff]
        %v2556 = vld [vmem:[%s446 + $0xf50] sm:$0xff]
        %v2557 = vld [vmem:[%s446 + $0xf58] sm:$0xff]
        %v2558 = vld [vmem:[%s446 + $0xf60] sm:$0xff]
        %v2559 = vld [vmem:[%s446 + $0xf68] sm:$0xff]
        %v2560 = vld [vmem:[%s446 + $0xf70] sm:$0xff]
        %v2561 = vld [vmem:[%s446 + $0xf78] sm:$0xff]
        %v2562 = vld [vmem:[%s446 + $0xf80] sm:$0xff]
        %v2563 = vld [vmem:[%s446 + $0xf88] sm:$0xff]
        %v2564 = vld [vmem:[%s446 + $0xf90] sm:$0xff]
        %v2565 = vld [vmem:[%s446 + $0xf98] sm:$0xff]
        %v2566 = vld [vmem:[%s446 + $0xfa0] sm:$0xff]
        %v2567 = vld [vmem:[%s446 + $0xfa8] sm:$0xff]
        %v2568 = vld [vmem:[%s446 + $0xfb0] sm:$0xff]
        %v2569 = vld [vmem:[%s446 + $0xfb8] sm:$0xff]
        %v2570 = vld [vmem:[%s446 + $0xfc0] sm:$0xff]
        %v2571 = vld [vmem:[%s446 + $0xfc8] sm:$0xff]
        %v2572 = vld [vmem:[%s446 + $0xfd0] sm:$0xff]
        %v2573 = vld [vmem:[%s446 + $0xfd8] sm:$0xff]
        %v2574 = vld [vmem:[%s446 + $0xfe0] sm:$0xff]
        %v2575 = vld [vmem:[%s446 + $0xfe8] sm:$0xff]
        %v2576 = vld [vmem:[%s446 + $0xff0] sm:$0xff]
        %v2577 = vld [vmem:[%s446 + $0xff8] sm:$0xff]
        %v2578 = vld [vmem:[%s456] sm:$0xf]
        %v2580 = vperm.slane %v2578, 0
        %v2581 = vperm.slane %v2578, 1
        %v2582 = vperm.slane %v2578, 2
        %v2583 = vperm.slane %v2578, 3
        %2588 = vmatpush.msra.mxu0 %v2126
        %2589 = vmatpush.msra.mxu0 %v2122
        %2590 = vmatpush.msra.mxu0 %v2118
        %2591 = vmatpush.msra.mxu0 %v2114
        %2592 = vmatpush.msra.mxu0 %v2110
        %2593 = vmatpush.msra.mxu0 %v2106
        %2594 = vmatpush.msra.mxu0 %v2102
        %2595 = vmatpush.msra.mxu0 %v2098
        %2596 = vmatpush.msra.mxu0 %v2094
        %2597 = vmatpush.msra.mxu0 %v2090
        %2598 = vmatpush.msra.mxu0 %v2086
        %2599 = vmatpush.msra.mxu0 %v2082
        %2600 = vmatpush.msra.mxu0 %v2078
        %2601 = vmatpush.msra.mxu0 %v2074
        %2602 = vmatpush.msra.mxu0 %v2070
        %2603 = vmatpush.msra.mxu0 %v2066
        %2604 = vmatmul.f32.gmra.mxu0 %v2058
        %v2605 = vpop.f32.mrf.mxu0
        %v2606 = vadd.f32 %v2580, %v2605
        %2607 = vdwg.mxu0
        %2608 = vmatpush.msra.mxu0 %v2190
        %2609 = vmatpush.msra.mxu0 %v2186
        %2610 = vmatpush.msra.mxu0 %v2182
        %2611 = vmatpush.msra.mxu0 %v2178
        %2612 = vmatpush.msra.mxu0 %v2174
        %2613 = vmatpush.msra.mxu0 %v2170
        %2614 = vmatpush.msra.mxu0 %v2166
        %2615 = vmatpush.msra.mxu0 %v2162
        %2616 = vmatpush.msra.mxu0 %v2158
        %2617 = vmatpush.msra.mxu0 %v2154
        %2618 = vmatpush.msra.mxu0 %v2150
        %2619 = vmatpush.msra.mxu0 %v2146
        %2620 = vmatpush.msra.mxu0 %v2142
        %2621 = vmatpush.msra.mxu0 %v2138
        %2622 = vmatpush.msra.mxu0 %v2134
        %2623 = vmatpush.msra.mxu0 %v2130
        %2624 = vmatmul.f32.gmra.mxu0 %v2059
        %v2625 = vpop.f32.mrf.mxu0
        %v2626 = vadd.f32 %v2606, %v2625
        %2627 = vdwg.mxu0
        %2628 = vmatpush.msra.mxu0 %v2254
        %2629 = vmatpush.msra.mxu0 %v2250
        %2630 = vmatpush.msra.mxu0 %v2246
        %2631 = vmatpush.msra.mxu0 %v2242
        %2632 = vmatpush.msra.mxu0 %v2238
        %2633 = vmatpush.msra.mxu0 %v2234
        %2634 = vmatpush.msra.mxu0 %v2230
        %2635 = vmatpush.msra.mxu0 %v2226
        %2636 = vmatpush.msra.mxu0 %v2222
        %2637 = vmatpush.msra.mxu0 %v2218
        %2638 = vmatpush.msra.mxu0 %v2214
        %2639 = vmatpush.msra.mxu0 %v2210
        %2640 = vmatpush.msra.mxu0 %v2206
        %2641 = vmatpush.msra.mxu0 %v2202
        %2642 = vmatpush.msra.mxu0 %v2198
        %2643 = vmatpush.msra.mxu0 %v2194
        %2644 = vmatmul.f32.gmra.mxu0 %v2060
        %v2645 = vpop.f32.mrf.mxu0
        %v2646 = vadd.f32 %v2626, %v2645
        %2647 = vdwg.mxu0
        %2648 = vmatpush.msra.mxu0 %v2318
        %2649 = vmatpush.msra.mxu0 %v2314
        %2650 = vmatpush.msra.mxu0 %v2310
        %2651 = vmatpush.msra.mxu0 %v2306
        %2652 = vmatpush.msra.mxu0 %v2302
        %2653 = vmatpush.msra.mxu0 %v2298
        %2654 = vmatpush.msra.mxu0 %v2294
        %2655 = vmatpush.msra.mxu0 %v2290
        %2656 = vmatpush.msra.mxu0 %v2286
        %2657 = vmatpush.msra.mxu0 %v2282
        %2658 = vmatpush.msra.mxu0 %v2278
        %2659 = vmatpush.msra.mxu0 %v2274
        %2660 = vmatpush.msra.mxu0 %v2270
        %2661 = vmatpush.msra.mxu0 %v2266
        %2662 = vmatpush.msra.mxu0 %v2262
        %2663 = vmatpush.msra.mxu0 %v2258
        %2664 = vmatmul.f32.gmra.mxu0 %v2061
        %v2665 = vpop.f32.mrf.mxu0
        %v2666 = vadd.f32 %v2646, %v2665
        %2667 = vdwg.mxu0
        %2668 = vmatpush.msra.mxu0 %v2382
        %2669 = vmatpush.msra.mxu0 %v2378
        %2670 = vmatpush.msra.mxu0 %v2374
        %2671 = vmatpush.msra.mxu0 %v2370
        %2672 = vmatpush.msra.mxu0 %v2366
        %2673 = vmatpush.msra.mxu0 %v2362
        %2674 = vmatpush.msra.mxu0 %v2358
        %2675 = vmatpush.msra.mxu0 %v2354
        %2676 = vmatpush.msra.mxu0 %v2350
        %2677 = vmatpush.msra.mxu0 %v2346
        %2678 = vmatpush.msra.mxu0 %v2342
        %2679 = vmatpush.msra.mxu0 %v2338
        %2680 = vmatpush.msra.mxu0 %v2334
        %2681 = vmatpush.msra.mxu0 %v2330
        %2682 = vmatpush.msra.mxu0 %v2326
        %2683 = vmatpush.msra.mxu0 %v2322
        %2684 = vmatmul.f32.gmra.mxu0 %v2062
        %v2685 = vpop.f32.mrf.mxu0
        %v2686 = vadd.f32 %v2666, %v2685
        %2687 = vdwg.mxu0
        %2688 = vmatpush.msra.mxu0 %v2446
        %2689 = vmatpush.msra.mxu0 %v2442
        %2690 = vmatpush.msra.mxu0 %v2438
        %2691 = vmatpush.msra.mxu0 %v2434
        %2692 = vmatpush.msra.mxu0 %v2430
        %2693 = vmatpush.msra.mxu0 %v2426
        %2694 = vmatpush.msra.mxu0 %v2422
        %2695 = vmatpush.msra.mxu0 %v2418
        %2696 = vmatpush.msra.mxu0 %v2414
        %2697 = vmatpush.msra.mxu0 %v2410
        %2698 = vmatpush.msra.mxu0 %v2406
        %2699 = vmatpush.msra.mxu0 %v2402
        %2700 = vmatpush.msra.mxu0 %v2398
        %2701 = vmatpush.msra.mxu0 %v2394
        %2702 = vmatpush.msra.mxu0 %v2390
        %2703 = vmatpush.msra.mxu0 %v2386
        %2704 = vmatmul.f32.gmra.mxu0 %v2063
        %v2705 = vpop.f32.mrf.mxu0
        %v2706 = vadd.f32 %v2686, %v2705
        %2707 = vdwg.mxu0
        %2708 = vmatpush.msra.mxu0 %v2510
        %2709 = vmatpush.msra.mxu0 %v2506
        %2710 = vmatpush.msra.mxu0 %v2502
        %2711 = vmatpush.msra.mxu0 %v2498
        %2712 = vmatpush.msra.mxu0 %v2494
        %2713 = vmatpush.msra.mxu0 %v2490
        %2714 = vmatpush.msra.mxu0 %v2486
        %2715 = vmatpush.msra.mxu0 %v2482
        %2716 = vmatpush.msra.mxu0 %v2478
        %2717 = vmatpush.msra.mxu0 %v2474
        %2718 = vmatpush.msra.mxu0 %v2470
        %2719 = vmatpush.msra.mxu0 %v2466
        %2720 = vmatpush.msra.mxu0 %v2462
        %2721 = vmatpush.msra.mxu0 %v2458
        %2722 = vmatpush.msra.mxu0 %v2454
        %2723 = vmatpush.msra.mxu0 %v2450
        %2724 = vmatmul.f32.gmra.mxu0 %v2064
        %v2725 = vpop.f32.mrf.mxu0
        %v2726 = vadd.f32 %v2706, %v2725
        %2727 = vdwg.mxu0
        %2728 = vmatpush.msra.mxu0 %v2574
        %2729 = vmatpush.msra.mxu0 %v2570
        %2730 = vmatpush.msra.mxu0 %v2566
        %2731 = vmatpush.msra.mxu0 %v2562
        %2732 = vmatpush.msra.mxu0 %v2558
        %2733 = vmatpush.msra.mxu0 %v2554
        %2734 = vmatpush.msra.mxu0 %v2550
        %2735 = vmatpush.msra.mxu0 %v2546
        %2736 = vmatpush.msra.mxu0 %v2542
        %2737 = vmatpush.msra.mxu0 %v2538
        %2738 = vmatpush.msra.mxu0 %v2534
        %2739 = vmatpush.msra.mxu0 %v2530
        %2740 = vmatpush.msra.mxu0 %v2526
        %2741 = vmatpush.msra.mxu0 %v2522
        %2742 = vmatpush.msra.mxu0 %v2518
        %2743 = vmatpush.msra.mxu0 %v2514
        %2744 = vmatmul.f32.gmra.mxu0 %v2065
        %v2745 = vpop.f32.mrf.mxu0
        %v2746 = vadd.f32 %v2726, %v2745
        %2747 = vdwg.mxu0
        %2748 = vmatpush.msra.mxu0 %v2127
        %2749 = vmatpush.msra.mxu0 %v2123
        %2750 = vmatpush.msra.mxu0 %v2119
        %2751 = vmatpush.msra.mxu0 %v2115
        %2752 = vmatpush.msra.mxu0 %v2111
        %2753 = vmatpush.msra.mxu0 %v2107
        %2754 = vmatpush.msra.mxu0 %v2103
        %2755 = vmatpush.msra.mxu0 %v2099
        %2756 = vmatpush.msra.mxu0 %v2095
        %2757 = vmatpush.msra.mxu0 %v2091
        %2758 = vmatpush.msra.mxu0 %v2087
        %2759 = vmatpush.msra.mxu0 %v2083
        %2760 = vmatpush.msra.mxu0 %v2079
        %2761 = vmatpush.msra.mxu0 %v2075
        %2762 = vmatpush.msra.mxu0 %v2071
        %2763 = vmatpush.msra.mxu0 %v2067
        %2764 = vmatmul.f32.gmra.mxu0 %v2058
        %v2765 = vpop.f32.mrf.mxu0
        %v2766 = vadd.f32 %v2581, %v2765
        %2767 = vdwg.mxu0
        %2768 = vmatpush.msra.mxu0 %v2191
        %2769 = vmatpush.msra.mxu0 %v2187
        %2770 = vmatpush.msra.mxu0 %v2183
        %2771 = vmatpush.msra.mxu0 %v2179
        %2772 = vmatpush.msra.mxu0 %v2175
        %2773 = vmatpush.msra.mxu0 %v2171
        %2774 = vmatpush.msra.mxu0 %v2167
        %2775 = vmatpush.msra.mxu0 %v2163
        %2776 = vmatpush.msra.mxu0 %v2159
        %2777 = vmatpush.msra.mxu0 %v2155
        %2778 = vmatpush.msra.mxu0 %v2151
        %2779 = vmatpush.msra.mxu0 %v2147
        %2780 = vmatpush.msra.mxu0 %v2143
        %2781 = vmatpush.msra.mxu0 %v2139
        %2782 = vmatpush.msra.mxu0 %v2135
        %2783 = vmatpush.msra.mxu0 %v2131
        %2784 = vmatmul.f32.gmra.mxu0 %v2059
        %v2785 = vpop.f32.mrf.mxu0
        %v2786 = vadd.f32 %v2766, %v2785
        %2787 = vdwg.mxu0
        %2788 = vmatpush.msra.mxu0 %v2255
        %2789 = vmatpush.msra.mxu0 %v2251
        %2790 = vmatpush.msra.mxu0 %v2247
        %2791 = vmatpush.msra.mxu0 %v2243
        %2792 = vmatpush.msra.mxu0 %v2239
        %2793 = vmatpush.msra.mxu0 %v2235
        %2794 = vmatpush.msra.mxu0 %v2231
        %2795 = vmatpush.msra.mxu0 %v2227
        %2796 = vmatpush.msra.mxu0 %v2223
        %2797 = vmatpush.msra.mxu0 %v2219
        %2798 = vmatpush.msra.mxu0 %v2215
        %2799 = vmatpush.msra.mxu0 %v2211
        %2800 = vmatpush.msra.mxu0 %v2207
        %2801 = vmatpush.msra.mxu0 %v2203
        %2802 = vmatpush.msra.mxu0 %v2199
        %2803 = vmatpush.msra.mxu0 %v2195
        %2804 = vmatmul.f32.gmra.mxu0 %v2060
        %v2805 = vpop.f32.mrf.mxu0
        %v2806 = vadd.f32 %v2786, %v2805
        %2807 = vdwg.mxu0
        %2808 = vmatpush.msra.mxu0 %v2319
        %2809 = vmatpush.msra.mxu0 %v2315
        %2810 = vmatpush.msra.mxu0 %v2311
        %2811 = vmatpush.msra.mxu0 %v2307
        %2812 = vmatpush.msra.mxu0 %v2303
        %2813 = vmatpush.msra.mxu0 %v2299
        %2814 = vmatpush.msra.mxu0 %v2295
        %2815 = vmatpush.msra.mxu0 %v2291
        %2816 = vmatpush.msra.mxu0 %v2287
        %2817 = vmatpush.msra.mxu0 %v2283
        %2818 = vmatpush.msra.mxu0 %v2279
        %2819 = vmatpush.msra.mxu0 %v2275
        %2820 = vmatpush.msra.mxu0 %v2271
        %2821 = vmatpush.msra.mxu0 %v2267
        %2822 = vmatpush.msra.mxu0 %v2263
        %2823 = vmatpush.msra.mxu0 %v2259
        %2824 = vmatmul.f32.gmra.mxu0 %v2061
        %v2825 = vpop.f32.mrf.mxu0
        %v2826 = vadd.f32 %v2806, %v2825
        %2827 = vdwg.mxu0
        %2828 = vmatpush.msra.mxu0 %v2383
        %2829 = vmatpush.msra.mxu0 %v2379
        %2830 = vmatpush.msra.mxu0 %v2375
        %2831 = vmatpush.msra.mxu0 %v2371
        %2832 = vmatpush.msra.mxu0 %v2367
        %2833 = vmatpush.msra.mxu0 %v2363
        %2834 = vmatpush.msra.mxu0 %v2359
        %2835 = vmatpush.msra.mxu0 %v2355
        %2836 = vmatpush.msra.mxu0 %v2351
        %2837 = vmatpush.msra.mxu0 %v2347
        %2838 = vmatpush.msra.mxu0 %v2343
        %2839 = vmatpush.msra.mxu0 %v2339
        %2840 = vmatpush.msra.mxu0 %v2335
        %2841 = vmatpush.msra.mxu0 %v2331
        %2842 = vmatpush.msra.mxu0 %v2327
        %2843 = vmatpush.msra.mxu0 %v2323
        %2844 = vmatmul.f32.gmra.mxu0 %v2062
        %v2845 = vpop.f32.mrf.mxu0
        %v2846 = vadd.f32 %v2826, %v2845
        %2847 = vdwg.mxu0
        %2848 = vmatpush.msra.mxu0 %v2447
        %2849 = vmatpush.msra.mxu0 %v2443
        %2850 = vmatpush.msra.mxu0 %v2439
        %2851 = vmatpush.msra.mxu0 %v2435
        %2852 = vmatpush.msra.mxu0 %v2431
        %2853 = vmatpush.msra.mxu0 %v2427
        %2854 = vmatpush.msra.mxu0 %v2423
        %2855 = vmatpush.msra.mxu0 %v2419
        %2856 = vmatpush.msra.mxu0 %v2415
        %2857 = vmatpush.msra.mxu0 %v2411
        %2858 = vmatpush.msra.mxu0 %v2407
        %2859 = vmatpush.msra.mxu0 %v2403
        %2860 = vmatpush.msra.mxu0 %v2399
        %2861 = vmatpush.msra.mxu0 %v2395
        %2862 = vmatpush.msra.mxu0 %v2391
        %2863 = vmatpush.msra.mxu0 %v2387
        %2864 = vmatmul.f32.gmra.mxu0 %v2063
        %v2865 = vpop.f32.mrf.mxu0
        %v2866 = vadd.f32 %v2846, %v2865
        %2867 = vdwg.mxu0
        %2868 = vmatpush.msra.mxu0 %v2511
        %2869 = vmatpush.msra.mxu0 %v2507
        %2870 = vmatpush.msra.mxu0 %v2503
        %2871 = vmatpush.msra.mxu0 %v2499
        %2872 = vmatpush.msra.mxu0 %v2495
        %2873 = vmatpush.msra.mxu0 %v2491
        %2874 = vmatpush.msra.mxu0 %v2487
        %2875 = vmatpush.msra.mxu0 %v2483
        %2876 = vmatpush.msra.mxu0 %v2479
        %2877 = vmatpush.msra.mxu0 %v2475
        %2878 = vmatpush.msra.mxu0 %v2471
        %2879 = vmatpush.msra.mxu0 %v2467
        %2880 = vmatpush.msra.mxu0 %v2463
        %2881 = vmatpush.msra.mxu0 %v2459
        %2882 = vmatpush.msra.mxu0 %v2455
        %2883 = vmatpush.msra.mxu0 %v2451
        %2884 = vmatmul.f32.gmra.mxu0 %v2064
        %v2885 = vpop.f32.mrf.mxu0
        %v2886 = vadd.f32 %v2866, %v2885
        %2887 = vdwg.mxu0
        %2888 = vmatpush.msra.mxu0 %v2575
        %2889 = vmatpush.msra.mxu0 %v2571
        %2890 = vmatpush.msra.mxu0 %v2567
        %2891 = vmatpush.msra.mxu0 %v2563
        %2892 = vmatpush.msra.mxu0 %v2559
        %2893 = vmatpush.msra.mxu0 %v2555
        %2894 = vmatpush.msra.mxu0 %v2551
        %2895 = vmatpush.msra.mxu0 %v2547
        %2896 = vmatpush.msra.mxu0 %v2543
        %2897 = vmatpush.msra.mxu0 %v2539
        %2898 = vmatpush.msra.mxu0 %v2535
        %2899 = vmatpush.msra.mxu0 %v2531
        %2900 = vmatpush.msra.mxu0 %v2527
        %2901 = vmatpush.msra.mxu0 %v2523
        %2902 = vmatpush.msra.mxu0 %v2519
        %2903 = vmatpush.msra.mxu0 %v2515
        %2904 = vmatmul.f32.gmra.mxu0 %v2065
        %v2905 = vpop.f32.mrf.mxu0
        %v2906 = vadd.f32 %v2886, %v2905
        %2907 = vdwg.mxu0
        %2908 = vmatpush.msra.mxu0 %v2128
        %2909 = vmatpush.msra.mxu0 %v2124
        %2910 = vmatpush.msra.mxu0 %v2120
        %2911 = vmatpush.msra.mxu0 %v2116
        %2912 = vmatpush.msra.mxu0 %v2112
        %2913 = vmatpush.msra.mxu0 %v2108
        %2914 = vmatpush.msra.mxu0 %v2104
        %2915 = vmatpush.msra.mxu0 %v2100
        %2916 = vmatpush.msra.mxu0 %v2096
        %2917 = vmatpush.msra.mxu0 %v2092
        %2918 = vmatpush.msra.mxu0 %v2088
        %2919 = vmatpush.msra.mxu0 %v2084
        %2920 = vmatpush.msra.mxu0 %v2080
        %2921 = vmatpush.msra.mxu0 %v2076
        %2922 = vmatpush.msra.mxu0 %v2072
        %2923 = vmatpush.msra.mxu0 %v2068
        %2924 = vmatmul.f32.gmra.mxu0 %v2058
        %v2925 = vpop.f32.mrf.mxu0
        %v2926 = vadd.f32 %v2582, %v2925
        %2927 = vdwg.mxu0
        %2928 = vmatpush.msra.mxu0 %v2192
        %2929 = vmatpush.msra.mxu0 %v2188
        %2930 = vmatpush.msra.mxu0 %v2184
        %2931 = vmatpush.msra.mxu0 %v2180
        %2932 = vmatpush.msra.mxu0 %v2176
        %2933 = vmatpush.msra.mxu0 %v2172
        %2934 = vmatpush.msra.mxu0 %v2168
        %2935 = vmatpush.msra.mxu0 %v2164
        %2936 = vmatpush.msra.mxu0 %v2160
        %2937 = vmatpush.msra.mxu0 %v2156
        %2938 = vmatpush.msra.mxu0 %v2152
        %2939 = vmatpush.msra.mxu0 %v2148
        %2940 = vmatpush.msra.mxu0 %v2144
        %2941 = vmatpush.msra.mxu0 %v2140
        %2942 = vmatpush.msra.mxu0 %v2136
        %2943 = vmatpush.msra.mxu0 %v2132
        %2944 = vmatmul.f32.gmra.mxu0 %v2059
        %v2945 = vpop.f32.mrf.mxu0
        %v2946 = vadd.f32 %v2926, %v2945
        %2947 = vdwg.mxu0
        %2948 = vmatpush.msra.mxu0 %v2256
        %2949 = vmatpush.msra.mxu0 %v2252
        %2950 = vmatpush.msra.mxu0 %v2248
        %2951 = vmatpush.msra.mxu0 %v2244
        %2952 = vmatpush.msra.mxu0 %v2240
        %2953 = vmatpush.msra.mxu0 %v2236
        %2954 = vmatpush.msra.mxu0 %v2232
        %2955 = vmatpush.msra.mxu0 %v2228
        %2956 = vmatpush.msra.mxu0 %v2224
        %2957 = vmatpush.msra.mxu0 %v2220
        %2958 = vmatpush.msra.mxu0 %v2216
        %2959 = vmatpush.msra.mxu0 %v2212
        %2960 = vmatpush.msra.mxu0 %v2208
        %2961 = vmatpush.msra.mxu0 %v2204
        %2962 = vmatpush.msra.mxu0 %v2200
        %2963 = vmatpush.msra.mxu0 %v2196
        %2964 = vmatmul.f32.gmra.mxu0 %v2060
        %v2965 = vpop.f32.mrf.mxu0
        %v2966 = vadd.f32 %v2946, %v2965
        %2967 = vdwg.mxu0
        %2968 = vmatpush.msra.mxu0 %v2320
        %2969 = vmatpush.msra.mxu0 %v2316
        %2970 = vmatpush.msra.mxu0 %v2312
        %2971 = vmatpush.msra.mxu0 %v2308
        %2972 = vmatpush.msra.mxu0 %v2304
        %2973 = vmatpush.msra.mxu0 %v2300
        %2974 = vmatpush.msra.mxu0 %v2296
        %2975 = vmatpush.msra.mxu0 %v2292
        %2976 = vmatpush.msra.mxu0 %v2288
        %2977 = vmatpush.msra.mxu0 %v2284
        %2978 = vmatpush.msra.mxu0 %v2280
        %2979 = vmatpush.msra.mxu0 %v2276
        %2980 = vmatpush.msra.mxu0 %v2272
        %2981 = vmatpush.msra.mxu0 %v2268
        %2982 = vmatpush.msra.mxu0 %v2264
        %2983 = vmatpush.msra.mxu0 %v2260
        %2984 = vmatmul.f32.gmra.mxu0 %v2061
        %v2985 = vpop.f32.mrf.mxu0
        %v2986 = vadd.f32 %v2966, %v2985
        %2987 = vdwg.mxu0
        %2988 = vmatpush.msra.mxu0 %v2384
        %2989 = vmatpush.msra.mxu0 %v2380
        %2990 = vmatpush.msra.mxu0 %v2376
        %2991 = vmatpush.msra.mxu0 %v2372
        %2992 = vmatpush.msra.mxu0 %v2368
        %2993 = vmatpush.msra.mxu0 %v2364
        %2994 = vmatpush.msra.mxu0 %v2360
        %2995 = vmatpush.msra.mxu0 %v2356
        %2996 = vmatpush.msra.mxu0 %v2352
        %2997 = vmatpush.msra.mxu0 %v2348
        %2998 = vmatpush.msra.mxu0 %v2344
        %2999 = vmatpush.msra.mxu0 %v2340
        %3000 = vmatpush.msra.mxu0 %v2336
        %3001 = vmatpush.msra.mxu0 %v2332
        %3002 = vmatpush.msra.mxu0 %v2328
        %3003 = vmatpush.msra.mxu0 %v2324
        %3004 = vmatmul.f32.gmra.mxu0 %v2062
        %v3005 = vpop.f32.mrf.mxu0
        %v3006 = vadd.f32 %v2986, %v3005
        %3007 = vdwg.mxu0
        %3008 = vmatpush.msra.mxu0 %v2448
        %3009 = vmatpush.msra.mxu0 %v2444
        %3010 = vmatpush.msra.mxu0 %v2440
        %3011 = vmatpush.msra.mxu0 %v2436
        %3012 = vmatpush.msra.mxu0 %v2432
        %3013 = vmatpush.msra.mxu0 %v2428
        %3014 = vmatpush.msra.mxu0 %v2424
        %3015 = vmatpush.msra.mxu0 %v2420
        %3016 = vmatpush.msra.mxu0 %v2416
        %3017 = vmatpush.msra.mxu0 %v2412
        %3018 = vmatpush.msra.mxu0 %v2408
        %3019 = vmatpush.msra.mxu0 %v2404
        %3020 = vmatpush.msra.mxu0 %v2400
        %3021 = vmatpush.msra.mxu0 %v2396
        %3022 = vmatpush.msra.mxu0 %v2392
        %3023 = vmatpush.msra.mxu0 %v2388
        %3024 = vmatmul.f32.gmra.mxu0 %v2063
        %v3025 = vpop.f32.mrf.mxu0
        %v3026 = vadd.f32 %v3006, %v3025
        %3027 = vdwg.mxu0
        %3028 = vmatpush.msra.mxu0 %v2512
        %3029 = vmatpush.msra.mxu0 %v2508
        %3030 = vmatpush.msra.mxu0 %v2504
        %3031 = vmatpush.msra.mxu0 %v2500
        %3032 = vmatpush.msra.mxu0 %v2496
        %3033 = vmatpush.msra.mxu0 %v2492
        %3034 = vmatpush.msra.mxu0 %v2488
        %3035 = vmatpush.msra.mxu0 %v2484
        %3036 = vmatpush.msra.mxu0 %v2480
        %3037 = vmatpush.msra.mxu0 %v2476
        %3038 = vmatpush.msra.mxu0 %v2472
        %3039 = vmatpush.msra.mxu0 %v2468
        %3040 = vmatpush.msra.mxu0 %v2464
        %3041 = vmatpush.msra.mxu0 %v2460
        %3042 = vmatpush.msra.mxu0 %v2456
        %3043 = vmatpush.msra.mxu0 %v2452
        %3044 = vmatmul.f32.gmra.mxu0 %v2064
        %v3045 = vpop.f32.mrf.mxu0
        %v3046 = vadd.f32 %v3026, %v3045
        %3047 = vdwg.mxu0
        %3048 = vmatpush.msra.mxu0 %v2576
        %3049 = vmatpush.msra.mxu0 %v2572
        %3050 = vmatpush.msra.mxu0 %v2568
        %3051 = vmatpush.msra.mxu0 %v2564
        %3052 = vmatpush.msra.mxu0 %v2560
        %3053 = vmatpush.msra.mxu0 %v2556
        %3054 = vmatpush.msra.mxu0 %v2552
        %3055 = vmatpush.msra.mxu0 %v2548
        %3056 = vmatpush.msra.mxu0 %v2544
        %3057 = vmatpush.msra.mxu0 %v2540
        %3058 = vmatpush.msra.mxu0 %v2536
        %3059 = vmatpush.msra.mxu0 %v2532
        %3060 = vmatpush.msra.mxu0 %v2528
        %3061 = vmatpush.msra.mxu0 %v2524
        %3062 = vmatpush.msra.mxu0 %v2520
        %3063 = vmatpush.msra.mxu0 %v2516
        %3064 = vmatmul.f32.gmra.mxu0 %v2065
        %v3065 = vpop.f32.mrf.mxu0
        %v3066 = vadd.f32 %v3046, %v3065
        %3067 = vdwg.mxu0
        %3068 = vmatpush.msra.mxu0 %v2129
        %3069 = vmatpush.msra.mxu0 %v2125
        %3070 = vmatpush.msra.mxu0 %v2121
        %3071 = vmatpush.msra.mxu0 %v2117
        %3072 = vmatpush.msra.mxu0 %v2113
        %3073 = vmatpush.msra.mxu0 %v2109
        %3074 = vmatpush.msra.mxu0 %v2105
        %3075 = vmatpush.msra.mxu0 %v2101
        %3076 = vmatpush.msra.mxu0 %v2097
        %3077 = vmatpush.msra.mxu0 %v2093
        %3078 = vmatpush.msra.mxu0 %v2089
        %3079 = vmatpush.msra.mxu0 %v2085
        %3080 = vmatpush.msra.mxu0 %v2081
        %3081 = vmatpush.msra.mxu0 %v2077
        %3082 = vmatpush.msra.mxu0 %v2073
        %3083 = vmatpush.msra.mxu0 %v2069
        %3084 = vmatmul.f32.gmra.mxu0 %v2058
        %v3085 = vpop.f32.mrf.mxu0
        %v3086 = vadd.f32 %v2583, %v3085
        %3087 = vdwg.mxu0
        %3088 = vmatpush.msra.mxu0 %v2193
        %3089 = vmatpush.msra.mxu0 %v2189
        %3090 = vmatpush.msra.mxu0 %v2185
        %3091 = vmatpush.msra.mxu0 %v2181
        %3092 = vmatpush.msra.mxu0 %v2177
        %3093 = vmatpush.msra.mxu0 %v2173
        %3094 = vmatpush.msra.mxu0 %v2169
        %3095 = vmatpush.msra.mxu0 %v2165
        %3096 = vmatpush.msra.mxu0 %v2161
        %3097 = vmatpush.msra.mxu0 %v2157
        %3098 = vmatpush.msra.mxu0 %v2153
        %3099 = vmatpush.msra.mxu0 %v2149
        %3100 = vmatpush.msra.mxu0 %v2145
        %3101 = vmatpush.msra.mxu0 %v2141
        %3102 = vmatpush.msra.mxu0 %v2137
        %3103 = vmatpush.msra.mxu0 %v2133
        %3104 = vmatmul.f32.gmra.mxu0 %v2059
        %v3105 = vpop.f32.mrf.mxu0
        %v3106 = vadd.f32 %v3086, %v3105
        %3107 = vdwg.mxu0
        %3108 = vmatpush.msra.mxu0 %v2257
        %3109 = vmatpush.msra.mxu0 %v2253
        %3110 = vmatpush.msra.mxu0 %v2249
        %3111 = vmatpush.msra.mxu0 %v2245
        %3112 = vmatpush.msra.mxu0 %v2241
        %3113 = vmatpush.msra.mxu0 %v2237
        %3114 = vmatpush.msra.mxu0 %v2233
        %3115 = vmatpush.msra.mxu0 %v2229
        %3116 = vmatpush.msra.mxu0 %v2225
        %3117 = vmatpush.msra.mxu0 %v2221
        %3118 = vmatpush.msra.mxu0 %v2217
        %3119 = vmatpush.msra.mxu0 %v2213
        %3120 = vmatpush.msra.mxu0 %v2209
        %3121 = vmatpush.msra.mxu0 %v2205
        %3122 = vmatpush.msra.mxu0 %v2201
        %3123 = vmatpush.msra.mxu0 %v2197
        %3124 = vmatmul.f32.gmra.mxu0 %v2060
        %v3125 = vpop.f32.mrf.mxu0
        %v3126 = vadd.f32 %v3106, %v3125
        %3127 = vdwg.mxu0
        %3128 = vmatpush.msra.mxu0 %v2321
        %3129 = vmatpush.msra.mxu0 %v2317
        %3130 = vmatpush.msra.mxu0 %v2313
        %3131 = vmatpush.msra.mxu0 %v2309
        %3132 = vmatpush.msra.mxu0 %v2305
        %3133 = vmatpush.msra.mxu0 %v2301
        %3134 = vmatpush.msra.mxu0 %v2297
        %3135 = vmatpush.msra.mxu0 %v2293
        %3136 = vmatpush.msra.mxu0 %v2289
        %3137 = vmatpush.msra.mxu0 %v2285
        %3138 = vmatpush.msra.mxu0 %v2281
        %3139 = vmatpush.msra.mxu0 %v2277
        %3140 = vmatpush.msra.mxu0 %v2273
        %3141 = vmatpush.msra.mxu0 %v2269
        %3142 = vmatpush.msra.mxu0 %v2265
        %3143 = vmatpush.msra.mxu0 %v2261
        %3144 = vmatmul.f32.gmra.mxu0 %v2061
        %v3145 = vpop.f32.mrf.mxu0
        %v3146 = vadd.f32 %v3126, %v3145
        %3147 = vdwg.mxu0
        %3148 = vmatpush.msra.mxu0 %v2385
        %3149 = vmatpush.msra.mxu0 %v2381
        %3150 = vmatpush.msra.mxu0 %v2377
        %3151 = vmatpush.msra.mxu0 %v2373
        %3152 = vmatpush.msra.mxu0 %v2369
        %3153 = vmatpush.msra.mxu0 %v2365
        %3154 = vmatpush.msra.mxu0 %v2361
        %3155 = vmatpush.msra.mxu0 %v2357
        %3156 = vmatpush.msra.mxu0 %v2353
        %3157 = vmatpush.msra.mxu0 %v2349
        %3158 = vmatpush.msra.mxu0 %v2345
        %3159 = vmatpush.msra.mxu0 %v2341
        %3160 = vmatpush.msra.mxu0 %v2337
        %3161 = vmatpush.msra.mxu0 %v2333
        %3162 = vmatpush.msra.mxu0 %v2329
        %3163 = vmatpush.msra.mxu0 %v2325
        %3164 = vmatmul.f32.gmra.mxu0 %v2062
        %v3165 = vpop.f32.mrf.mxu0
        %v3166 = vadd.f32 %v3146, %v3165
        %3167 = vdwg.mxu0
        %3168 = vmatpush.msra.mxu0 %v2449
        %3169 = vmatpush.msra.mxu0 %v2445
        %3170 = vmatpush.msra.mxu0 %v2441
        %3171 = vmatpush.msra.mxu0 %v2437
        %3172 = vmatpush.msra.mxu0 %v2433
        %3173 = vmatpush.msra.mxu0 %v2429
        %3174 = vmatpush.msra.mxu0 %v2425
        %3175 = vmatpush.msra.mxu0 %v2421
        %3176 = vmatpush.msra.mxu0 %v2417
        %3177 = vmatpush.msra.mxu0 %v2413
        %3178 = vmatpush.msra.mxu0 %v2409
        %3179 = vmatpush.msra.mxu0 %v2405
        %3180 = vmatpush.msra.mxu0 %v2401
        %3181 = vmatpush.msra.mxu0 %v2397
        %3182 = vmatpush.msra.mxu0 %v2393
        %3183 = vmatpush.msra.mxu0 %v2389
        %3184 = vmatmul.f32.gmra.mxu0 %v2063
        %v3185 = vpop.f32.mrf.mxu0
        %v3186 = vadd.f32 %v3166, %v3185
        %3187 = vdwg.mxu0
        %3188 = vmatpush.msra.mxu0 %v2513
        %3189 = vmatpush.msra.mxu0 %v2509
        %3190 = vmatpush.msra.mxu0 %v2505
        %3191 = vmatpush.msra.mxu0 %v2501
        %3192 = vmatpush.msra.mxu0 %v2497
        %3193 = vmatpush.msra.mxu0 %v2493
        %3194 = vmatpush.msra.mxu0 %v2489
        %3195 = vmatpush.msra.mxu0 %v2485
        %3196 = vmatpush.msra.mxu0 %v2481
        %3197 = vmatpush.msra.mxu0 %v2477
        %3198 = vmatpush.msra.mxu0 %v2473
        %3199 = vmatpush.msra.mxu0 %v2469
        %3200 = vmatpush.msra.mxu0 %v2465
        %3201 = vmatpush.msra.mxu0 %v2461
        %3202 = vmatpush.msra.mxu0 %v2457
        %3203 = vmatpush.msra.mxu0 %v2453
        %3204 = vmatmul.f32.gmra.mxu0 %v2064
        %v3205 = vpop.f32.mrf.mxu0
        %v3206 = vadd.f32 %v3186, %v3205
        %3207 = vdwg.mxu0
        %3208 = vmatpush.msra.mxu0 %v2577
        %3209 = vmatpush.msra.mxu0 %v2573
        %3210 = vmatpush.msra.mxu0 %v2569
        %3211 = vmatpush.msra.mxu0 %v2565
        %3212 = vmatpush.msra.mxu0 %v2561
        %3213 = vmatpush.msra.mxu0 %v2557
        %3214 = vmatpush.msra.mxu0 %v2553
        %3215 = vmatpush.msra.mxu0 %v2549
        %3216 = vmatpush.msra.mxu0 %v2545
        %3217 = vmatpush.msra.mxu0 %v2541
        %3218 = vmatpush.msra.mxu0 %v2537
        %3219 = vmatpush.msra.mxu0 %v2533
        %3220 = vmatpush.msra.mxu0 %v2529
        %3221 = vmatpush.msra.mxu0 %v2525
        %3222 = vmatpush.msra.mxu0 %v2521
        %3223 = vmatpush.msra.mxu0 %v2517
        %3224 = vmatmul.f32.gmra.mxu0 %v2065
        %v3225 = vpop.f32.mrf.mxu0
        %v3226 = vadd.f32 %v3206, %v3225
        %3227 = vdwg.mxu0
        %v3232 = vrot.slane %v2906, 6
        %v3233 = vrot.slane %v3066, 4
        %v3234 = vrot.slane %v3226, 2
        %vm3235 = vcmask 1041408
        %v3236 = vsel %vm3235, %v2746, %v3232
        %vm3237 = vcmask 1045508
        %v3238 = vsel %vm3237, %v3233, %v3234
        %v3239 = vsel %vm537, %v3236, %v3238
        %3241 = vst [vmem:[%s496] sm:$0xff] %v3239
        %s3242 = sand.u32 %s237, 1
        %s3243 = scalar_lea.sflag [#allocation4], %s3242
        %s3244 = sand.u32 %s237, 1
        %s3245 = smul.addr %s3244, 8
        %s3246 = scalar_lea.vmem [#allocation17], %s3245
        // Predicated region
        $region93: #{tpu_custom_call.1} parent=55 // pred_check
          %p3247 = pneg %p247
        $region94: #{tpu_custom_call.1} parent=55 // pred_check_branch
          %3249 = sbr.rel (%p3247) target = $region96
        $region95: #{tpu_custom_call.1} parent=55 // pred_region
          %s3250 = smul.u32 4, %s30
          %3252 = vsyncadd %s3243, 0
          %s3253 = smul.addr %s3250, 2
          %s3254 = scalar_lea.hbm %s9, %s3253
          %s3256 = sshll.u32 %s3246, 4
          %s3257 = int_to_ptr.vmem [resolvable:$true] %s3256
          %s3258 = sshll.u32 %s3254, 4
          %s3259 = int_to_ptr.hbm [resolvable:$true] %s3258
          %3261 = dma.vmem_to_hbm [thread:$0]  %s3257, 128, %s3259, %s3243
        $region96: #{tpu_custom_call.1} parent=55 // pred_fallthru
          _
      $region56: #{tpu_custom_call.1} parent=5 // pred_fallthru
        _
      %p3262 = scmp.le.s32.totalorder 2, %s25
      // Predicated region
      $region97: #{tpu_custom_call.1} parent=5 // pred_check
        %p3263 = pneg %p3262
      $region98: #{tpu_custom_call.1} parent=5 // pred_check_branch
        %3265 = sbr.rel (%p3263) target = $region100
      $region99: #{tpu_custom_call.1} parent=5 // pred_region
        %s3266 = ssub.s32 %s25, 2
        // Predicated region
        $region101: #{tpu_custom_call.1} parent=99 // pred_check
          %p3267 = pneg %p253
        $region102: #{tpu_custom_call.1} parent=99 // pred_check_branch
          %3269 = sbr.rel (%p3267) target = $region104
        $region103: #{tpu_custom_call.1} parent=99 // pred_region
          %s3270 = sand.u32 %s238, 1
          %s3271 = scalar_lea.sflag [#allocation4], %s3270
          %s3272 = sand.u32 %s238, 1
          %s3273 = smul.addr %s3272, 8
          %s3274 = scalar_lea.vmem [#allocation17], %s3273
          %3276 = dma.done %s3271, 128
        $region104: #{tpu_custom_call.1} parent=99 // pred_fallthru
          _
      $region100: #{tpu_custom_call.1} parent=5 // pred_fallthru
        _
    $region6: #{tpu_custom_call.1} parent=1 // loop_footer
      %s29 = sadd.s32 1, %s25
    $region7: #{tpu_custom_call.1} parent=1 // loop_footer_branch
      %24 = sbr.rel target = $region3
    $region8: #{tpu_custom_call.1} parent=1 // loop_exit
      _
    %3277 = vsyncpa [#allocation3], 1
    %s3278 = scalar_lea.sflag [#allocation3], 1
    %3279 = vsyncpa %s3278, 1
    %3280 = vsyncpa [#allocation6], 1
    %3281 = vsyncpa [#allocation9], 1
    %3282 = vsyncpa [#allocation12], 1
    %3283 = vsyncpa [#allocation15], 1
    %s3284 = scalar_lea.sflag [#allocation15], 1
    %3285 = vsyncpa %s3284, 1
    %3286 = vsyncpa [#allocation4], 1
    %s3287 = scalar_lea.sflag [#allocation4], 1
    %3288 = vsyncpa %s3287, 1

</llo_original>
